<compile_context>
chip_gen: v7x
topology: tpu7x:2x2x1
jax: 0.10.0
libtpu: 0.0.40
codegen_flags: <defaults>
</compile_context>

<pallas_src>
import functools
import math

import jax
import jax.numpy as jnp
from jax.experimental import pallas as pl
from jax.experimental.pallas import tpu as pltpu

# -------------------- constants from the PyTorch module --------------------
END_LATITUDE = 30.0
END_LONGITUDE = 146.0
INPUT_WIDTH = 64
START_LATITUDE = 46.0
START_LONGITUDE = 128.0

D2R = math.pi / 180.0
START_LON_R = START_LONGITUDE * D2R
END_LON_R = END_LONGITUDE * D2R
START_LAT_R = START_LATITUDE * D2R
END_LAT_R = END_LATITUDE * D2R


# ------------------------------- kernel body --------------------------------
def _intensity_kernel(pex_ref, const_ref, o_ref, *, use_asin):
    # Packed per-example scalars (TB, 8) -> eight (TB, 1) columns.
    pex = pex_ref[...]
    e_slat = pex[:, 0:1]      # sin(epi_lat / 2)
    e_clat = pex[:, 1:2]      # cos(epi_lat / 2)
    e_slon = pex[:, 2:3]      # sin(epi_long / 2)
    e_clon = pex[:, 3:4]      # cos(epi_long / 2)
    cos_elat = pex[:, 4:5]    # cos(epi_lat)
    depth_sq = pex[:, 5:6]    # depth**2
    affine = pex[:, 6:7]      # 0.58*mag + 0.0038*depth - 1.29
    sat = pex[:, 7:8]         # 0.0028 * 10**(0.5*mag)

    # Packed per-cell constants (8, W*W) -> seven (1, W*W) rows (row 7 = pad).
    c_slat = const_ref[0:1, :]     # sin(cell_lat / 2)
    c_clat = const_ref[1:2, :]     # cos(cell_lat / 2)
    c_slon = const_ref[2:3, :]     # sin(cell_long / 2)
    c_clon = const_ref[3:4, :]     # cos(cell_long / 2)
    cos_clat = const_ref[4:5, :]   # cos(cell_lat)
    log_amp = const_ref[5:6, :]    # log(amp)
    mask = const_ref[6:7, :]       # land mask

    # Half-angle sum identity (pure VPU): sin((cell - epi) / 2).
    sin_dlat = c_slat * e_clat - c_clat * e_slat          # (TB, W*W)
    sin_dlon = c_slon * e_clon - c_clon * e_slon
    a = sin_dlat * sin_dlat + (cos_elat * cos_clat) * (sin_dlon * sin_dlon)
    a = jnp.clip(a, 0.0, 1.0)                             # guard f32 round-off

    sqrt_a = jnp.sqrt(a)
    if use_asin:
        # Both atan2 args are >= 0 here, so arcsin(sqrt(a)) is identical but
        # drops sqrt(1-a) and atan2's internal divide/quadrant selects.
        half_c = jnp.arcsin(sqrt_a)
    else:
        half_c = jnp.arctan2(sqrt_a, jnp.sqrt(1.0 - a))
    d_surf = 12742.0 * half_c                             # 2 * 6371 folded
    X = jnp.sqrt(d_surf * d_surf + depth_sq)

    # log(PGV) = log_PGV_b + log(amp)  (exp/log pair removed algebraically).
    lp = affine - jnp.log(X + sat) - 0.002 * X + log_amp

    i_high = 2.002 + lp * (2.603 - 0.213 * lp)            # Horner form
    i_low = 2.165 + 2.262 * lp
    h = jnp.where(i_high > 4.0, i_high, i_low) * mask
    o_ref[...] = h.astype(o_ref.dtype)


@functools.lru_cache(maxsize=None)
def _mosaic_supports_asin():
    """Probe once whether jnp.arcsin lowers cleanly in Pallas/Mosaic here."""
    def probe(x_ref, o_ref):
        o_ref[...] = jnp.arcsin(x_ref[...])
    try:
        out = pl.pallas_call(
            probe, out_shape=jax.ShapeDtypeStruct((8, 128), jnp.float32),
        )(jnp.full((8, 128), 0.5, jnp.float32))
        jax.block_until_ready(out)
        return True
    except Exception:
        return False


# -------------------------------- wrapper ------------------------------------
def baseline_forward(x, y, depth, mag, amp, mask,
                     input_width=INPUT_WIDTH, out_dtype=jnp.float32):
    """x, y, depth, mag: (B,) f32; amp, mask: (W, W) -> (B, W, W) out_dtype."""
    W = input_width
    W2 = W * W
    B = x.shape[0]

    x = x.astype(jnp.float32)
    y = y.astype(jnp.float32)
    depth = depth.astype(jnp.float32)
    mag = mag.astype(jnp.float32)

    # --- per-cell constant tables, lane-flattened and packed into (8, W*W) ---
    cell_width = (END_LON_R - START_LON_R) / W
    cell_longs_1d = jnp.linspace(START_LON_R + cell_width / 2,
                                 END_LON_R - cell_width / 2, W, dtype=jnp.float32)
    cell_height = (END_LAT_R - START_LAT_R) / W
    cell_lats_1d = jnp.linspace(START_LAT_R + cell_height / 2,
                                END_LAT_R - cell_height / 2, W, dtype=jnp.float32)
    cell_longs = jnp.broadcast_to(cell_longs_1d[None, :], (W, W)).reshape(W2)
    cell_lats = jnp.broadcast_to(cell_lats_1d[:, None], (W, W)).reshape(W2)
    consts = jnp.stack([
        jnp.sin(0.5 * cell_lats), jnp.cos(0.5 * cell_lats),
        jnp.sin(0.5 * cell_longs), jnp.cos(0.5 * cell_longs),
        jnp.cos(cell_lats),
        jnp.log(amp.astype(jnp.float32).reshape(W2)),   # assumes amp > 0 (module init = ones)
        mask.astype(jnp.float32).reshape(W2),
        jnp.zeros((W2,), jnp.float32),                  # pad row -> 8 sublanes
    ], axis=0)                                          # (8, W2)

    # --- per-example scalars (all transcendentals hoisted), packed (B, 8) ---
    epi_long = START_LON_R + (END_LON_R - START_LON_R) * (x + 0.5) / W
    epi_lat = START_LAT_R + (END_LAT_R - START_LAT_R) * (y + 0.5) / W
    pex = jnp.stack([
        jnp.sin(0.5 * epi_lat), jnp.cos(0.5 * epi_lat),
        jnp.sin(0.5 * epi_long), jnp.cos(0.5 * epi_long),
        jnp.cos(epi_lat),
        depth * depth,
        0.58 * mag + 0.0038 * depth - 1.29,
        0.0028 * jnp.power(10.0, 0.5 * mag),
    ], axis=1)                                          # (B, 8)

    # --- grid / block selection ---
    # Pad the batch to >= 8 rows (full sublanes).  For B > 16 force an even
    # number (>= 2) of grid steps so v7x's two TensorCores both get work, and
    # cap TB at 512 rows (~17 MiB double-buffered output) to amortise the
    # ~0.35 us per-step overhead with minimal tail padding.
    TB_MAX = 512
    B_pad8 = max(8, -(-B // 8) * 8)
    if B_pad8 <= 16:
        steps, TB = 1, B_pad8
    else:
        steps = max(2, -(-B_pad8 // TB_MAX))
        steps += steps % 2
        TB = -(-B_pad8 // (8 * steps)) * 8
    B_pad = TB * steps

    if B_pad != B:
        # Edge-replicate so padded rows compute finite values (sliced off below).
        pex = jnp.pad(pex, ((0, B_pad - B), (0, 0)), mode="edge")

    # --- VMEM budget: double-buffered output/per-example + resident constants ---
    vmem_need = 2 * TB * W2 * 4 + 2 * TB * 8 * 4 + 2 * 8 * W2 * 4
    vmem_limit = int(min(vmem_need + (8 << 20), 48 << 20))

    kernel = functools.partial(_intensity_kernel, use_asin=_mosaic_supports_asin())

    out_flat = pl.pallas_call(
        kernel,
        out_shape=jax.ShapeDtypeStruct((B_pad, W2), out_dtype),
        grid=(steps,),
        in_specs=[
            pl.BlockSpec((TB, 8), lambda i: (i, 0)),    # per-example pack
            pl.BlockSpec((8, W2), lambda i: (0, 0)),    # constants, resident
        ],
        out_specs=pl.BlockSpec((TB, W2), lambda i: (i, 0)),
        compiler_params=pltpu.CompilerParams(
            dimension_semantics=("parallel",),          # shard batch across TCs
            vmem_limit_bytes=vmem_limit),
    )(pex, consts)

    return out_flat[:B].reshape(B, W, W)


# -------------------- pure-JAX reference (mirrors PyTorch) -------------------
def baseline_ref(x, y, depth, mag, amp, mask, input_width=INPUT_WIDTH):
    W = input_width
    B = x.shape[0]
    cell_width = (END_LON_R - START_LON_R) / W
    cell_longs = jnp.broadcast_to(
        jnp.linspace(START_LON_R + cell_width / 2, END_LON_R - cell_width / 2, W,
                     dtype=jnp.float32)[None, :], (W, W))
    cell_height = (END_LAT_R - START_LAT_R) / W
    cell_lats = jnp.broadcast_to(
        jnp.linspace(START_LAT_R + cell_height / 2, END_LAT_R - cell_height / 2, W,
                     dtype=jnp.float32)[:, None], (W, W))
    xr = x.reshape(B, 1, 1); yr = y.reshape(B, 1, 1)
    dr = depth.reshape(B, 1, 1); mr = mag.reshape(B, 1, 1)
    epi_long = START_LON_R + (END_LON_R - START_LON_R) * (xr + 0.5) / W
    epi_lat = START_LAT_R + (END_LAT_R - START_LAT_R) * (yr + 0.5) / W
    dlon = cell_longs - epi_long
    dlat = cell_lats - epi_lat
    a = jnp.sin(dlat / 2) ** 2 + jnp.cos(epi_lat) * jnp.cos(cell_lats) * jnp.sin(dlon / 2) ** 2
    c = 2 * jnp.arctan2(jnp.sqrt(a), jnp.sqrt(1 - a))
    X = jnp.sqrt((6371.0 * c) ** 2 + dr ** 2)
    log_pgv_b = (0.58 * mr + 0.0038 * dr - 1.29
                 - jnp.log(X + 0.0028 * 10 ** (0.5 * mr)) - 0.002 * X)
    pgv = jnp.exp(log_pgv_b) * amp
    lp = jnp.log(pgv)
    i_high = 2.002 + 2.603 * lp - 0.213 * lp ** 2
    i_low = 2.165 + 2.262 * lp
    return jnp.where(i_high > 4.0, i_high, i_low) * mask


if __name__ == "__main__":
    key = jax.random.PRNGKey(0)
    kx, ky, kd, km, kmask = jax.random.split(key, 5)

    B, W = 2, INPUT_WIDTH
    x = jax.random.uniform(kx, (B,), jnp.float32, 0.0, W - 1.0)    # epicenter cell col
    y = jax.random.uniform(ky, (B,), jnp.float32, 0.0, W - 1.0)    # epicenter cell row
    depth = jax.random.uniform(kd, (B,), jnp.float32, 5.0, 100.0)  # km
    mag = jax.random.uniform(km, (B,), jnp.float32, 4.0, 8.0)

    # Module init: amp = ones(W, W); synthetic deterministic land mask in place
    # of mask.csv (no file I/O allowed).
    amp = jnp.ones((W, W), jnp.float32)
    mask = (jax.random.uniform(kmask, (W, W)) > 0.3).astype(jnp.float32)

    out = baseline_forward(x, y, depth, mag, amp, mask)
    out = jax.block_until_ready(out)

    ref = baseline_ref(x, y, depth, mag, amp, mask)
    assert out.shape == (B, W, W)

    err = jnp.abs(out - ref)
    tol = 2e-4 + 1e-5 * jnp.abs(ref)
    bad = err > tol
    # A cell whose I_high sits at float round-off of the 4.0 branch threshold
    # may legitimately take the other branch under the (more accurate)
    # rewritten arithmetic; allow a handful of such isolated cells, bounded by
    # the max branch gap near the threshold.
    n_bad = int(jnp.sum(bad))
    max_bad_err = float(jnp.max(jnp.where(bad, err, 0.0)))
    assert n_bad <= 4 and max_bad_err < 0.1, (
        f"mismatch vs reference: {n_bad} cells, max err {max_bad_err}")

    print("KERNEL_OK")
</pallas_src>

<mosaic_0001>
module attributes {stable_mosaic.version = 11 : i64} {
  func.func @_intensity_kernel(%arg0: i32, %arg1: memref<8x8xf32, #tpu.memory_space<vmem>>, %arg2: memref<8x4096xf32, #tpu.memory_space<vmem>>, %arg3: memref<8x4096xf32, #tpu.memory_space<vmem>>) attributes {dimension_semantics = [#tpu.dimension_semantics<parallel>], iteration_bounds = array<i64: 1>, scalar_prefetch = 0 : i64, scratch_operands = 0 : i64, tpu.core_type = #tpu.core_type<tc>, window_params = [{transform_indices = @transform_0, window_bounds = array<i64: 8, 8>}, {pipeline_mode = #tpu.pipeline_mode<synchronous>, transform_indices = @transform_1, window_bounds = array<i64: 8, 4096>}, {transform_indices = @transform_2, window_bounds = array<i64: 8, 4096>}]} {
    %c0 = arith.constant 0 : index
    %c0_0 = arith.constant 0 : index
    %0 = vector.load %arg1[%c0, %c0_0] : memref<8x8xf32, #tpu.memory_space<vmem>>, vector<8x8xf32>
    %1 = vector.extract_strided_slice %0 {offsets = [0, 0], sizes = [8, 1], strides = [1, 1]} : vector<8x8xf32> to vector<8x1xf32>
    %2 = vector.extract_strided_slice %0 {offsets = [0, 1], sizes = [8, 1], strides = [1, 1]} : vector<8x8xf32> to vector<8x1xf32>
    %3 = vector.extract_strided_slice %0 {offsets = [0, 2], sizes = [8, 1], strides = [1, 1]} : vector<8x8xf32> to vector<8x1xf32>
    %4 = vector.extract_strided_slice %0 {offsets = [0, 3], sizes = [8, 1], strides = [1, 1]} : vector<8x8xf32> to vector<8x1xf32>
    %5 = vector.extract_strided_slice %0 {offsets = [0, 4], sizes = [8, 1], strides = [1, 1]} : vector<8x8xf32> to vector<8x1xf32>
    %6 = vector.extract_strided_slice %0 {offsets = [0, 5], sizes = [8, 1], strides = [1, 1]} : vector<8x8xf32> to vector<8x1xf32>
    %7 = vector.extract_strided_slice %0 {offsets = [0, 6], sizes = [8, 1], strides = [1, 1]} : vector<8x8xf32> to vector<8x1xf32>
    %8 = vector.extract_strided_slice %0 {offsets = [0, 7], sizes = [8, 1], strides = [1, 1]} : vector<8x8xf32> to vector<8x1xf32>
    %c0_1 = arith.constant 0 : index
    %c0_2 = arith.constant 0 : index
    %9 = vector.load %arg2[%c0_1, %c0_2] : memref<8x4096xf32, #tpu.memory_space<vmem>>, vector<1x4096xf32>
    %c1 = arith.constant 1 : index
    %c0_3 = arith.constant 0 : index
    %10 = vector.load %arg2[%c1, %c0_3] : memref<8x4096xf32, #tpu.memory_space<vmem>>, vector<1x4096xf32>
    %c2 = arith.constant 2 : index
    %c0_4 = arith.constant 0 : index
    %11 = vector.load %arg2[%c2, %c0_4] : memref<8x4096xf32, #tpu.memory_space<vmem>>, vector<1x4096xf32>
    %c3 = arith.constant 3 : index
    %c0_5 = arith.constant 0 : index
    %12 = vector.load %arg2[%c3, %c0_5] : memref<8x4096xf32, #tpu.memory_space<vmem>>, vector<1x4096xf32>
    %c4 = arith.constant 4 : index
    %c0_6 = arith.constant 0 : index
    %13 = vector.load %arg2[%c4, %c0_6] : memref<8x4096xf32, #tpu.memory_space<vmem>>, vector<1x4096xf32>
    %c5 = arith.constant 5 : index
    %c0_7 = arith.constant 0 : index
    %14 = vector.load %arg2[%c5, %c0_7] : memref<8x4096xf32, #tpu.memory_space<vmem>>, vector<1x4096xf32>
    %c6 = arith.constant 6 : index
    %c0_8 = arith.constant 0 : index
    %15 = vector.load %arg2[%c6, %c0_8] : memref<8x4096xf32, #tpu.memory_space<vmem>>, vector<1x4096xf32>
    %16 = vector.broadcast %9 : vector<1x4096xf32> to vector<8x4096xf32>
    %17 = vector.broadcast %2 : vector<8x1xf32> to vector<8x4096xf32>
    %18 = arith.mulf %16, %17 : vector<8x4096xf32>
    %19 = vector.broadcast %10 : vector<1x4096xf32> to vector<8x4096xf32>
    %20 = vector.broadcast %1 : vector<8x1xf32> to vector<8x4096xf32>
    %21 = arith.mulf %19, %20 : vector<8x4096xf32>
    %22 = arith.subf %18, %21 : vector<8x4096xf32>
    %23 = vector.broadcast %11 : vector<1x4096xf32> to vector<8x4096xf32>
    %24 = vector.broadcast %4 : vector<8x1xf32> to vector<8x4096xf32>
    %25 = arith.mulf %23, %24 : vector<8x4096xf32>
    %26 = vector.broadcast %12 : vector<1x4096xf32> to vector<8x4096xf32>
    %27 = vector.broadcast %3 : vector<8x1xf32> to vector<8x4096xf32>
    %28 = arith.mulf %26, %27 : vector<8x4096xf32>
    %29 = arith.subf %25, %28 : vector<8x4096xf32>
    %30 = arith.mulf %22, %22 : vector<8x4096xf32>
    %31 = vector.broadcast %5 : vector<8x1xf32> to vector<8x4096xf32>
    %32 = vector.broadcast %13 : vector<1x4096xf32> to vector<8x4096xf32>
    %33 = arith.mulf %31, %32 : vector<8x4096xf32>
    %34 = arith.mulf %29, %29 : vector<8x4096xf32>
    %35 = arith.mulf %33, %34 : vector<8x4096xf32>
    %36 = arith.addf %30, %35 : vector<8x4096xf32>
    %cst = arith.constant 0.000000e+00 : f32
    %cst_9 = arith.constant 1.000000e+00 : f32
    %37 = vector.broadcast %cst : f32 to vector<8x4096xf32>
    %38 = arith.maximumf %37, %36 : vector<8x4096xf32>
    %39 = vector.broadcast %cst_9 : f32 to vector<8x4096xf32>
    %40 = arith.minimumf %39, %38 : vector<8x4096xf32>
    %41 = math.sqrt %40 : vector<8x4096xf32>
    %cst_10 = arith.constant 1.000000e+00 : f32
    %42 = vector.broadcast %cst_10 : f32 to vector<8x4096xf32>
    %43 = arith.subf %42, %40 : vector<8x4096xf32>
    %44 = math.sqrt %43 : vector<8x4096xf32>
    %45 = math.atan2 %41, %44 : vector<8x4096xf32>
    %cst_11 = arith.constant 1.274200e+04 : f32
    %46 = vector.broadcast %cst_11 : f32 to vector<8x4096xf32>
    %47 = arith.mulf %46, %45 : vector<8x4096xf32>
    %48 = arith.mulf %47, %47 : vector<8x4096xf32>
    %49 = vector.broadcast %6 : vector<8x1xf32> to vector<8x4096xf32>
    %50 = arith.addf %48, %49 : vector<8x4096xf32>
    %51 = math.sqrt %50 : vector<8x4096xf32>
    %52 = vector.broadcast %8 : vector<8x1xf32> to vector<8x4096xf32>
    %53 = arith.addf %51, %52 : vector<8x4096xf32>
    %54 = math.log %53 : vector<8x4096xf32>
    %55 = vector.broadcast %7 : vector<8x1xf32> to vector<8x4096xf32>
    %56 = arith.subf %55, %54 : vector<8x4096xf32>
    %cst_12 = arith.constant 2.000000e-03 : f32
    %57 = vector.broadcast %cst_12 : f32 to vector<8x4096xf32>
    %58 = arith.mulf %57, %51 : vector<8x4096xf32>
    %59 = arith.subf %56, %58 : vector<8x4096xf32>
    %60 = vector.broadcast %14 : vector<1x4096xf32> to vector<8x4096xf32>
    %61 = arith.addf %59, %60 : vector<8x4096xf32>
    %cst_13 = arith.constant 2.130000e-01 : f32
    %62 = vector.broadcast %cst_13 : f32 to vector<8x4096xf32>
    %63 = arith.mulf %62, %61 : vector<8x4096xf32>
    %cst_14 = arith.constant 2.603000e+00 : f32
    %64 = vector.broadcast %cst_14 : f32 to vector<8x4096xf32>
    %65 = arith.subf %64, %63 : vector<8x4096xf32>
    %66 = arith.mulf %61, %65 : vector<8x4096xf32>
    %cst_15 = arith.constant 2.002000e+00 : f32
    %67 = vector.broadcast %cst_15 : f32 to vector<8x4096xf32>
    %68 = arith.addf %67, %66 : vector<8x4096xf32>
    %cst_16 = arith.constant 2.262000e+00 : f32
    %69 = vector.broadcast %cst_16 : f32 to vector<8x4096xf32>
    %70 = arith.mulf %69, %61 : vector<8x4096xf32>
    %cst_17 = arith.constant 2.165000e+00 : f32
    %71 = vector.broadcast %cst_17 : f32 to vector<8x4096xf32>
    %72 = arith.addf %71, %70 : vector<8x4096xf32>
    %cst_18 = arith.constant 4.000000e+00 : f32
    %73 = vector.broadcast %cst_18 : f32 to vector<8x4096xf32>
    %74 = arith.cmpf ogt, %68, %73 : vector<8x4096xf32>
    %75 = arith.select %74, %68, %72 : vector<8x4096xi1>, vector<8x4096xf32>
    %76 = vector.broadcast %15 : vector<1x4096xf32> to vector<8x4096xf32>
    %77 = arith.mulf %75, %76 : vector<8x4096xf32>
    %c0_19 = arith.constant 0 : index
    %c0_20 = arith.constant 0 : index
    %78 = vector.load %arg3[%c0_19, %c0_20] : memref<8x4096xf32, #tpu.memory_space<vmem>>, vector<8x4096xf32>
    tpu.vector_store %arg3[%c0_19, %c0_20], %77 {strides = array<i32>} : memref<8x4096xf32, #tpu.memory_space<vmem>>, vector<8x4096xf32>,
    return
  }
  func.func @transform_0(%arg0: i32) -> (i32, i32) {
    %c0_i32 = arith.constant 0 : i32
    %c0_i32_0 = arith.constant 0 : i32
    return %arg0, %c0_i32 : i32, i32
  }
  func.func @transform_1(%arg0: i32) -> (i32, i32) {
    %c0_i32 = arith.constant 0 : i32
    %c0_i32_0 = arith.constant 0 : i32
    %c0_i32_1 = arith.constant 0 : i32
    return %c0_i32, %c0_i32_0 : i32, i32
  }
  func.func @transform_2(%arg0: i32) -> (i32, i32) {
    %c0_i32 = arith.constant 0 : i32
    %c0_i32_0 = arith.constant 0 : i32
    return %arg0, %c0_i32 : i32, i32
  }
}

</mosaic_0001>

<llo_original>
// kernel: tpu_custom_call.1
$region0: #{tpu_custom_call.1}
  #allocation0 [shape = 'u32[]', space=smem, size = 0x4, offset = 0x4, fixed_abs, tag = 'smem constant byte address 0x4 - core index']
  #allocation1 [shape = 'u32[144,128]{1,0:T(1,128)}', space=vmem, size = 0x12000, scoped, tag = 'internal scratch']
  %s0 = inlined_call_operand.hbm [shape: f32[8,8], index: 0, kind: input, shape index: {}]
  %s1 = inlined_call_operand.hbm [shape: f32[8,4096], index: 1, kind: input, shape index: {}]
  %s2 = inlined_call_operand.hbm [shape: f32[8,4096], index: 2, kind: output, shape index: {}]
  %s3 = sld [smem:[#allocation0]]
  $region26: #{tpu_custom_call.1} parent=0
    _
  %s5 = ssub.s32 1, %s3
  %s6 = scalar_select 0, %s5, %s3
  $region1: #{tpu_custom_call.1} parent=0
    #allocation2 [shape = 'u8[4096]{0}', space=vmem, size = 0x1000, scoped, tag = 'input window, operand 0, single buffered']
    #allocation3 [shape = 's32[1]{0}', space=sflag, size = 0x4, scoped, tag = 'scoped memory for tpu_custom_call.1']
    #allocation4 [shape = 's32[1]{0}', space=sflag, size = 0x4, scoped, tag = 'scoped memory for tpu_custom_call.1']
    #allocation5 [shape = 'u8[131072]{0}', space=vmem, size = 0x20000, scoped, tag = 'input window, operand 1, single buffered']
    #allocation6 [shape = 's32[1]{0}', space=sflag, size = 0x4, scoped, tag = 'scoped memory for tpu_custom_call.1']
    #allocation7 [shape = 'u8[131072]{0}', space=vmem, size = 0x20000, scoped, tag = 'output window, operand 0, single buffered']
    %7 = vsyncpa [#allocation3], 0
    %8 = vsyncpa [#allocation6], 0
    %9 = vsyncpa [#allocation4], 0
    // Predicated region
    $region2: #{tpu_custom_call.1} parent=1 // pred_check
      _
    $region3: #{tpu_custom_call.1} parent=1 // pred_check_branch
      %11 = sbr.rel (0) target = $region5
    $region4: #{tpu_custom_call.1} parent=1 // pred_region
      %s13 = ssub.s32 128, 128
      %14 = vsyncadd [#allocation3], %s13
      %s16 = sshll.u32 [#allocation2], 4
      %s17 = int_to_ptr.vmem [resolvable:$true] %s16
      %19 = dma.hbm_to_vmem [thread:$0]  %s0, 128, %s17, [#allocation3]
    $region5: #{tpu_custom_call.1} parent=1 // pred_fallthru
      _
    // Predicated region
    $region6: #{tpu_custom_call.1} parent=1 // pred_check
      _
    $region7: #{tpu_custom_call.1} parent=1 // pred_check_branch
      %21 = sbr.rel (0) target = $region9
    $region8: #{tpu_custom_call.1} parent=1 // pred_region
      %s23 = ssub.s32 4096, 4096
      %24 = vsyncadd [#allocation6], %s23
      %s26 = sshll.u32 [#allocation5], 4
      %s27 = int_to_ptr.vmem [resolvable:$true] %s26
      %29 = dma.hbm_to_vmem [thread:$0]  %s1, 4096, %s27, [#allocation6]
    $region9: #{tpu_custom_call.1} parent=1 // pred_fallthru
      _
    // Predicated region
    $region10: #{tpu_custom_call.1} parent=1 // pred_check
      _
    $region11: #{tpu_custom_call.1} parent=1 // pred_check_branch
      %31 = sbr.rel (0) target = $region13
    $region12: #{tpu_custom_call.1} parent=1 // pred_region
      %32 = dma.done [#allocation3], 128
    $region13: #{tpu_custom_call.1} parent=1 // pred_fallthru
      _
    // Predicated region
    $region14: #{tpu_custom_call.1} parent=1 // pred_check
      _
    $region15: #{tpu_custom_call.1} parent=1 // pred_check_branch
      %34 = sbr.rel (0) target = $region17
    $region16: #{tpu_custom_call.1} parent=1 // pred_region
      %35 = dma.done [#allocation6], 4096
    $region17: #{tpu_custom_call.1} parent=1 // pred_fallthru
      _
    %v36 = vld [vmem:[#allocation2] sm:$0xff]
    %v37 = vld [vmem:[#allocation5] ss:$8 sm:$0xf]
    %v38 = vld [vmem:[#allocation5] ss:$8 sm:$0xf0]
    %v39 = vor.u32 %v37, %v38
    %s40 = scalar_lea.vmem [#allocation5], 64
    %v41 = vld [vmem:[%s40] ss:$8 sm:$0xf]
    %v42 = vld [vmem:[%s40] ss:$8 sm:$0xf0]
    %v43 = vor.u32 %v41, %v42
    %s44 = scalar_lea.vmem [#allocation5], 128
    %v45 = vld [vmem:[%s44] ss:$8 sm:$0xf]
    %v46 = vld [vmem:[%s44] ss:$8 sm:$0xf0]
    %v47 = vor.u32 %v45, %v46
    %s48 = scalar_lea.vmem [#allocation5], 192
    %v49 = vld [vmem:[%s48] ss:$8 sm:$0xf]
    %v50 = vld [vmem:[%s48] ss:$8 sm:$0xf0]
    %v51 = vor.u32 %v49, %v50
    %s52 = scalar_lea.vmem [#allocation5], 1
    %v53 = vld [vmem:[%s52] ss:$8 sm:$0xf]
    %v54 = vld [vmem:[%s52] ss:$8 sm:$0xf0]
    %v55 = vor.u32 %v53, %v54
    %s56 = scalar_lea.vmem [#allocation5], 65
    %v57 = vld [vmem:[%s56] ss:$8 sm:$0xf]
    %v58 = vld [vmem:[%s56] ss:$8 sm:$0xf0]
    %v59 = vor.u32 %v57, %v58
    %s60 = scalar_lea.vmem [#allocation5], 129
    %v61 = vld [vmem:[%s60] ss:$8 sm:$0xf]
    %v62 = vld [vmem:[%s60] ss:$8 sm:$0xf0]
    %v63 = vor.u32 %v61, %v62
    %s64 = scalar_lea.vmem [#allocation5], 193
    %v65 = vld [vmem:[%s64] ss:$8 sm:$0xf]
    %v66 = vld [vmem:[%s64] ss:$8 sm:$0xf0]
    %v67 = vor.u32 %v65, %v66
    %s68 = scalar_lea.vmem [#allocation5], 2
    %v69 = vld [vmem:[%s68] ss:$8 sm:$0xf]
    %v70 = vld [vmem:[%s68] ss:$8 sm:$0xf0]
    %v71 = vor.u32 %v69, %v70
    %s72 = scalar_lea.vmem [#allocation5], 66
    %v73 = vld [vmem:[%s72] ss:$8 sm:$0xf]
    %v74 = vld [vmem:[%s72] ss:$8 sm:$0xf0]
    %v75 = vor.u32 %v73, %v74
    %s76 = scalar_lea.vmem [#allocation5], 130
    %v77 = vld [vmem:[%s76] ss:$8 sm:$0xf]
    %v78 = vld [vmem:[%s76] ss:$8 sm:$0xf0]
    %v79 = vor.u32 %v77, %v78
    %s80 = scalar_lea.vmem [#allocation5], 194
    %v81 = vld [vmem:[%s80] ss:$8 sm:$0xf]
    %v82 = vld [vmem:[%s80] ss:$8 sm:$0xf0]
    %v83 = vor.u32 %v81, %v82
    %s84 = scalar_lea.vmem [#allocation5], 3
    %v85 = vld [vmem:[%s84] ss:$8 sm:$0xf]
    %v86 = vld [vmem:[%s84] ss:$8 sm:$0xf0]
    %v87 = vor.u32 %v85, %v86
    %s88 = scalar_lea.vmem [#allocation5], 67
    %v89 = vld [vmem:[%s88] ss:$8 sm:$0xf]
    %v90 = vld [vmem:[%s88] ss:$8 sm:$0xf0]
    %v91 = vor.u32 %v89, %v90
    %s92 = scalar_lea.vmem [#allocation5], 131
    %v93 = vld [vmem:[%s92] ss:$8 sm:$0xf]
    %v94 = vld [vmem:[%s92] ss:$8 sm:$0xf0]
    %v95 = vor.u32 %v93, %v94
    %s96 = scalar_lea.vmem [#allocation5], 195
    %v97 = vld [vmem:[%s96] ss:$8 sm:$0xf]
    %v98 = vld [vmem:[%s96] ss:$8 sm:$0xf0]
    %v99 = vor.u32 %v97, %v98
    %s100 = scalar_lea.vmem [#allocation5], 4
    %v101 = vld [vmem:[%s100] ss:$8 sm:$0xf]
    %v102 = vld [vmem:[%s100] ss:$8 sm:$0xf0]
    %v103 = vor.u32 %v101, %v102
    %s104 = scalar_lea.vmem [#allocation5], 68
    %v105 = vld [vmem:[%s104] ss:$8 sm:$0xf]
    %v106 = vld [vmem:[%s104] ss:$8 sm:$0xf0]
    %v107 = vor.u32 %v105, %v106
    %s108 = scalar_lea.vmem [#allocation5], 132
    %v109 = vld [vmem:[%s108] ss:$8 sm:$0xf]
    %v110 = vld [vmem:[%s108] ss:$8 sm:$0xf0]
    %v111 = vor.u32 %v109, %v110
    %s112 = scalar_lea.vmem [#allocation5], 196
    %v113 = vld [vmem:[%s112] ss:$8 sm:$0xf]
    %v114 = vld [vmem:[%s112] ss:$8 sm:$0xf0]
    %v115 = vor.u32 %v113, %v114
    %s116 = scalar_lea.vmem [#allocation5], 5
    %v117 = vld [vmem:[%s116] ss:$8 sm:$0xf]
    %v118 = vld [vmem:[%s116] ss:$8 sm:$0xf0]
    %v119 = vor.u32 %v117, %v118
    %s120 = scalar_lea.vmem [#allocation5], 69
    %v121 = vld [vmem:[%s120] ss:$8 sm:$0xf]
    %v122 = vld [vmem:[%s120] ss:$8 sm:$0xf0]
    %v123 = vor.u32 %v121, %v122
    %s124 = scalar_lea.vmem [#allocation5], 133
    %v125 = vld [vmem:[%s124] ss:$8 sm:$0xf]
    %v126 = vld [vmem:[%s124] ss:$8 sm:$0xf0]
    %v127 = vor.u32 %v125, %v126
    %s128 = scalar_lea.vmem [#allocation5], 197
    %v129 = vld [vmem:[%s128] ss:$8 sm:$0xf]
    %v130 = vld [vmem:[%s128] ss:$8 sm:$0xf0]
    %v131 = vor.u32 %v129, %v130
    %s132 = scalar_lea.vmem [#allocation5], 6
    %v133 = vld [vmem:[%s132] ss:$8 sm:$0xf]
    %v134 = vld [vmem:[%s132] ss:$8 sm:$0xf0]
    %v135 = vor.u32 %v133, %v134
    %s136 = scalar_lea.vmem [#allocation5], 70
    %v137 = vld [vmem:[%s136] ss:$8 sm:$0xf]
    %v138 = vld [vmem:[%s136] ss:$8 sm:$0xf0]
    %v139 = vor.u32 %v137, %v138
    %s140 = scalar_lea.vmem [#allocation5], 134
    %v141 = vld [vmem:[%s140] ss:$8 sm:$0xf]
    %v142 = vld [vmem:[%s140] ss:$8 sm:$0xf0]
    %v143 = vor.u32 %v141, %v142
    %s144 = scalar_lea.vmem [#allocation5], 198
    %v145 = vld [vmem:[%s144] ss:$8 sm:$0xf]
    %v146 = vld [vmem:[%s144] ss:$8 sm:$0xf0]
    %v147 = vor.u32 %v145, %v146
    %v152 = vlaneseq
    %v153 = vshrl.u32 %v152, 7
    %v154 = vsub.s32 0, %v153
    %v155 = vrot.slane %v39, %v154
    %v156 = vlaneseq
    %v157 = vshrl.u32 %v156, 7
    %v158 = vsub.s32 1, %v157
    %v159 = vrot.slane %v39, %v158
    %v160 = vlaneseq
    %v161 = vshrl.u32 %v160, 7
    %v162 = vsub.s32 2, %v161
    %v163 = vrot.slane %v39, %v162
    %v164 = vlaneseq
    %v165 = vshrl.u32 %v164, 7
    %v166 = vsub.s32 3, %v165
    %v167 = vrot.slane %v39, %v166
    %v168 = vlaneseq
    %v169 = vshrl.u32 %v168, 7
    %v170 = vsub.s32 4, %v169
    %v171 = vrot.slane %v39, %v170
    %v172 = vlaneseq
    %v173 = vshrl.u32 %v172, 7
    %v174 = vsub.s32 5, %v173
    %v175 = vrot.slane %v39, %v174
    %v176 = vlaneseq
    %v177 = vshrl.u32 %v176, 7
    %v178 = vsub.s32 6, %v177
    %v179 = vrot.slane %v39, %v178
    %v180 = vlaneseq
    %v181 = vshrl.u32 %v180, 7
    %v182 = vsub.s32 7, %v181
    %v183 = vrot.slane %v39, %v182
    %v184 = vlaneseq
    %v185 = vshrl.u32 %v184, 7
    %v186 = vsub.s32 0, %v185
    %v187 = vrot.slane %v43, %v186
    %v188 = vlaneseq
    %v189 = vshrl.u32 %v188, 7
    %v190 = vsub.s32 1, %v189
    %v191 = vrot.slane %v43, %v190
    %v192 = vlaneseq
    %v193 = vshrl.u32 %v192, 7
    %v194 = vsub.s32 2, %v193
    %v195 = vrot.slane %v43, %v194
    %v196 = vlaneseq
    %v197 = vshrl.u32 %v196, 7
    %v198 = vsub.s32 3, %v197
    %v199 = vrot.slane %v43, %v198
    %v200 = vlaneseq
    %v201 = vshrl.u32 %v200, 7
    %v202 = vsub.s32 4, %v201
    %v203 = vrot.slane %v43, %v202
    %v204 = vlaneseq
    %v205 = vshrl.u32 %v204, 7
    %v206 = vsub.s32 5, %v205
    %v207 = vrot.slane %v43, %v206
    %v208 = vlaneseq
    %v209 = vshrl.u32 %v208, 7
    %v210 = vsub.s32 6, %v209
    %v211 = vrot.slane %v43, %v210
    %v212 = vlaneseq
    %v213 = vshrl.u32 %v212, 7
    %v214 = vsub.s32 7, %v213
    %v215 = vrot.slane %v43, %v214
    %v216 = vlaneseq
    %v217 = vshrl.u32 %v216, 7
    %v218 = vsub.s32 0, %v217
    %v219 = vrot.slane %v47, %v218
    %v220 = vlaneseq
    %v221 = vshrl.u32 %v220, 7
    %v222 = vsub.s32 1, %v221
    %v223 = vrot.slane %v47, %v222
    %v224 = vlaneseq
    %v225 = vshrl.u32 %v224, 7
    %v226 = vsub.s32 2, %v225
    %v227 = vrot.slane %v47, %v226
    %v228 = vlaneseq
    %v229 = vshrl.u32 %v228, 7
    %v230 = vsub.s32 3, %v229
    %v231 = vrot.slane %v47, %v230
    %v232 = vlaneseq
    %v233 = vshrl.u32 %v232, 7
    %v234 = vsub.s32 4, %v233
    %v235 = vrot.slane %v47, %v234
    %v236 = vlaneseq
    %v237 = vshrl.u32 %v236, 7
    %v238 = vsub.s32 5, %v237
    %v239 = vrot.slane %v47, %v238
    %v240 = vlaneseq
    %v241 = vshrl.u32 %v240, 7
    %v242 = vsub.s32 6, %v241
    %v243 = vrot.slane %v47, %v242
    %v244 = vlaneseq
    %v245 = vshrl.u32 %v244, 7
    %v246 = vsub.s32 7, %v245
    %v247 = vrot.slane %v47, %v246
    %v248 = vlaneseq
    %v249 = vshrl.u32 %v248, 7
    %v250 = vsub.s32 0, %v249
    %v251 = vrot.slane %v51, %v250
    %v252 = vlaneseq
    %v253 = vshrl.u32 %v252, 7
    %v254 = vsub.s32 1, %v253
    %v255 = vrot.slane %v51, %v254
    %v256 = vlaneseq
    %v257 = vshrl.u32 %v256, 7
    %v258 = vsub.s32 2, %v257
    %v259 = vrot.slane %v51, %v258
    %v260 = vlaneseq
    %v261 = vshrl.u32 %v260, 7
    %v262 = vsub.s32 3, %v261
    %v263 = vrot.slane %v51, %v262
    %v264 = vlaneseq
    %v265 = vshrl.u32 %v264, 7
    %v266 = vsub.s32 4, %v265
    %v267 = vrot.slane %v51, %v266
    %v268 = vlaneseq
    %v269 = vshrl.u32 %v268, 7
    %v270 = vsub.s32 5, %v269
    %v271 = vrot.slane %v51, %v270
    %v272 = vlaneseq
    %v273 = vshrl.u32 %v272, 7
    %v274 = vsub.s32 6, %v273
    %v275 = vrot.slane %v51, %v274
    %v276 = vlaneseq
    %v277 = vshrl.u32 %v276, 7
    %v278 = vsub.s32 7, %v277
    %v279 = vrot.slane %v51, %v278
    %313 = vset.pattern.permute.xlu0 1
    %314 = vperm.xlu0 %313, %v36
    %v315 = vpop.permute.xlu0 %314
    %v317 = vmul.f32 %v155, %v315
    %v318 = vmul.f32 %v159, %v315
    %v319 = vmul.f32 %v163, %v315
    %v320 = vmul.f32 %v167, %v315
    %v321 = vmul.f32 %v171, %v315
    %v322 = vmul.f32 %v175, %v315
    %v323 = vmul.f32 %v179, %v315
    %v324 = vmul.f32 %v183, %v315
    %v325 = vmul.f32 %v187, %v315
    %v326 = vmul.f32 %v191, %v315
    %v327 = vmul.f32 %v195, %v315
    %v328 = vmul.f32 %v199, %v315
    %v329 = vmul.f32 %v203, %v315
    %v330 = vmul.f32 %v207, %v315
    %v331 = vmul.f32 %v211, %v315
    %v332 = vmul.f32 %v215, %v315
    %v333 = vmul.f32 %v219, %v315
    %v334 = vmul.f32 %v223, %v315
    %v335 = vmul.f32 %v227, %v315
    %v336 = vmul.f32 %v231, %v315
    %v337 = vmul.f32 %v235, %v315
    %v338 = vmul.f32 %v239, %v315
    %v339 = vmul.f32 %v243, %v315
    %v340 = vmul.f32 %v247, %v315
    %v341 = vmul.f32 %v251, %v315
    %v342 = vmul.f32 %v255, %v315
    %v343 = vmul.f32 %v259, %v315
    %v344 = vmul.f32 %v263, %v315
    %v345 = vmul.f32 %v267, %v315
    %v346 = vmul.f32 %v271, %v315
    %v347 = vmul.f32 %v275, %v315
    %v348 = vmul.f32 %v279, %v315
    %v353 = vlaneseq
    %v354 = vshrl.u32 %v353, 7
    %v355 = vsub.s32 0, %v354
    %v356 = vrot.slane %v55, %v355
    %v357 = vlaneseq
    %v358 = vshrl.u32 %v357, 7
    %v359 = vsub.s32 1, %v358
    %v360 = vrot.slane %v55, %v359
    %v361 = vlaneseq
    %v362 = vshrl.u32 %v361, 7
    %v363 = vsub.s32 2, %v362
    %v364 = vrot.slane %v55, %v363
    %v365 = vlaneseq
    %v366 = vshrl.u32 %v365, 7
    %v367 = vsub.s32 3, %v366
    %v368 = vrot.slane %v55, %v367
    %v369 = vlaneseq
    %v370 = vshrl.u32 %v369, 7
    %v371 = vsub.s32 4, %v370
    %v372 = vrot.slane %v55, %v371
    %v373 = vlaneseq
    %v374 = vshrl.u32 %v373, 7
    %v375 = vsub.s32 5, %v374
    %v376 = vrot.slane %v55, %v375
    %v377 = vlaneseq
    %v378 = vshrl.u32 %v377, 7
    %v379 = vsub.s32 6, %v378
    %v380 = vrot.slane %v55, %v379
    %v381 = vlaneseq
    %v382 = vshrl.u32 %v381, 7
    %v383 = vsub.s32 7, %v382
    %v384 = vrot.slane %v55, %v383
    %v385 = vlaneseq
    %v386 = vshrl.u32 %v385, 7
    %v387 = vsub.s32 0, %v386
    %v388 = vrot.slane %v59, %v387
    %v389 = vlaneseq
    %v390 = vshrl.u32 %v389, 7
    %v391 = vsub.s32 1, %v390
    %v392 = vrot.slane %v59, %v391
    %v393 = vlaneseq
    %v394 = vshrl.u32 %v393, 7
    %v395 = vsub.s32 2, %v394
    %v396 = vrot.slane %v59, %v395
    %v397 = vlaneseq
    %v398 = vshrl.u32 %v397, 7
    %v399 = vsub.s32 3, %v398
    %v400 = vrot.slane %v59, %v399
    %v401 = vlaneseq
    %v402 = vshrl.u32 %v401, 7
    %v403 = vsub.s32 4, %v402
    %v404 = vrot.slane %v59, %v403
    %v405 = vlaneseq
    %v406 = vshrl.u32 %v405, 7
    %v407 = vsub.s32 5, %v406
    %v408 = vrot.slane %v59, %v407
    %v409 = vlaneseq
    %v410 = vshrl.u32 %v409, 7
    %v411 = vsub.s32 6, %v410
    %v412 = vrot.slane %v59, %v411
    %v413 = vlaneseq
    %v414 = vshrl.u32 %v413, 7
    %v415 = vsub.s32 7, %v414
    %v416 = vrot.slane %v59, %v415
    %v417 = vlaneseq
    %v418 = vshrl.u32 %v417, 7
    %v419 = vsub.s32 0, %v418
    %v420 = vrot.slane %v63, %v419
    %v421 = vlaneseq
    %v422 = vshrl.u32 %v421, 7
    %v423 = vsub.s32 1, %v422
    %v424 = vrot.slane %v63, %v423
    %v425 = vlaneseq
    %v426 = vshrl.u32 %v425, 7
    %v427 = vsub.s32 2, %v426
    %v428 = vrot.slane %v63, %v427
    %v429 = vlaneseq
    %v430 = vshrl.u32 %v429, 7
    %v431 = vsub.s32 3, %v430
    %v432 = vrot.slane %v63, %v431
    %v433 = vlaneseq
    %v434 = vshrl.u32 %v433, 7
    %v435 = vsub.s32 4, %v434
    %v436 = vrot.slane %v63, %v435
    %v437 = vlaneseq
    %v438 = vshrl.u32 %v437, 7
    %v439 = vsub.s32 5, %v438
    %v440 = vrot.slane %v63, %v439
    %v441 = vlaneseq
    %v442 = vshrl.u32 %v441, 7
    %v443 = vsub.s32 6, %v442
    %v444 = vrot.slane %v63, %v443
    %v445 = vlaneseq
    %v446 = vshrl.u32 %v445, 7
    %v447 = vsub.s32 7, %v446
    %v448 = vrot.slane %v63, %v447
    %v449 = vlaneseq
    %v450 = vshrl.u32 %v449, 7
    %v451 = vsub.s32 0, %v450
    %v452 = vrot.slane %v67, %v451
    %v453 = vlaneseq
    %v454 = vshrl.u32 %v453, 7
    %v455 = vsub.s32 1, %v454
    %v456 = vrot.slane %v67, %v455
    %v457 = vlaneseq
    %v458 = vshrl.u32 %v457, 7
    %v459 = vsub.s32 2, %v458
    %v460 = vrot.slane %v67, %v459
    %v461 = vlaneseq
    %v462 = vshrl.u32 %v461, 7
    %v463 = vsub.s32 3, %v462
    %v464 = vrot.slane %v67, %v463
    %v465 = vlaneseq
    %v466 = vshrl.u32 %v465, 7
    %v467 = vsub.s32 4, %v466
    %v468 = vrot.slane %v67, %v467
    %v469 = vlaneseq
    %v470 = vshrl.u32 %v469, 7
    %v471 = vsub.s32 5, %v470
    %v472 = vrot.slane %v67, %v471
    %v473 = vlaneseq
    %v474 = vshrl.u32 %v473, 7
    %v475 = vsub.s32 6, %v474
    %v476 = vrot.slane %v67, %v475
    %v477 = vlaneseq
    %v478 = vshrl.u32 %v477, 7
    %v479 = vsub.s32 7, %v478
    %v480 = vrot.slane %v67, %v479
    %513 = vset.pattern.permute.xlu0 0
    %514 = vperm.xlu0 %513, %v36
    %v515 = vpop.permute.xlu0 %514
    %v517 = vmul.f32 %v356, %v515
    %v518 = vmul.f32 %v360, %v515
    %v519 = vmul.f32 %v364, %v515
    %v520 = vmul.f32 %v368, %v515
    %v521 = vmul.f32 %v372, %v515
    %v522 = vmul.f32 %v376, %v515
    %v523 = vmul.f32 %v380, %v515
    %v524 = vmul.f32 %v384, %v515
    %v525 = vmul.f32 %v388, %v515
    %v526 = vmul.f32 %v392, %v515
    %v527 = vmul.f32 %v396, %v515
    %v528 = vmul.f32 %v400, %v515
    %v529 = vmul.f32 %v404, %v515
    %v530 = vmul.f32 %v408, %v515
    %v531 = vmul.f32 %v412, %v515
    %v532 = vmul.f32 %v416, %v515
    %v533 = vmul.f32 %v420, %v515
    %v534 = vmul.f32 %v424, %v515
    %v535 = vmul.f32 %v428, %v515
    %v536 = vmul.f32 %v432, %v515
    %v537 = vmul.f32 %v436, %v515
    %v538 = vmul.f32 %v440, %v515
    %v539 = vmul.f32 %v444, %v515
    %v540 = vmul.f32 %v448, %v515
    %v541 = vmul.f32 %v452, %v515
    %v542 = vmul.f32 %v456, %v515
    %v543 = vmul.f32 %v460, %v515
    %v544 = vmul.f32 %v464, %v515
    %v545 = vmul.f32 %v468, %v515
    %v546 = vmul.f32 %v472, %v515
    %v547 = vmul.f32 %v476, %v515
    %v548 = vmul.f32 %v480, %v515
    %v549 = vsub.f32 %v317, %v517
    %v550 = vsub.f32 %v318, %v518
    %v551 = vsub.f32 %v319, %v519
    %v552 = vsub.f32 %v320, %v520
    %v553 = vsub.f32 %v321, %v521
    %v554 = vsub.f32 %v322, %v522
    %v555 = vsub.f32 %v323, %v523
    %v556 = vsub.f32 %v324, %v524
    %v557 = vsub.f32 %v325, %v525
    %v558 = vsub.f32 %v326, %v526
    %v559 = vsub.f32 %v327, %v527
    %v560 = vsub.f32 %v328, %v528
    %v561 = vsub.f32 %v329, %v529
    %v562 = vsub.f32 %v330, %v530
    %v563 = vsub.f32 %v331, %v531
    %v564 = vsub.f32 %v332, %v532
    %v565 = vsub.f32 %v333, %v533
    %v566 = vsub.f32 %v334, %v534
    %v567 = vsub.f32 %v335, %v535
    %v568 = vsub.f32 %v336, %v536
    %v569 = vsub.f32 %v337, %v537
    %v570 = vsub.f32 %v338, %v538
    %v571 = vsub.f32 %v339, %v539
    %v572 = vsub.f32 %v340, %v540
    %v573 = vsub.f32 %v341, %v541
    %v574 = vsub.f32 %v342, %v542
    %v575 = vsub.f32 %v343, %v543
    %v576 = vsub.f32 %v344, %v544
    %v577 = vsub.f32 %v345, %v545
    %v578 = vsub.f32 %v346, %v546
    %v579 = vsub.f32 %v347, %v547
    %v580 = vsub.f32 %v348, %v548
    %v585 = vlaneseq
    %v586 = vshrl.u32 %v585, 7
    %v587 = vsub.s32 0, %v586
    %v588 = vrot.slane %v71, %v587
    %v589 = vlaneseq
    %v590 = vshrl.u32 %v589, 7
    %v591 = vsub.s32 1, %v590
    %v592 = vrot.slane %v71, %v591
    %v593 = vlaneseq
    %v594 = vshrl.u32 %v593, 7
    %v595 = vsub.s32 2, %v594
    %v596 = vrot.slane %v71, %v595
    %v597 = vlaneseq
    %v598 = vshrl.u32 %v597, 7
    %v599 = vsub.s32 3, %v598
    %v600 = vrot.slane %v71, %v599
    %v601 = vlaneseq
    %v602 = vshrl.u32 %v601, 7
    %v603 = vsub.s32 4, %v602
    %v604 = vrot.slane %v71, %v603
    %v605 = vlaneseq
    %v606 = vshrl.u32 %v605, 7
    %v607 = vsub.s32 5, %v606
    %v608 = vrot.slane %v71, %v607
    %v609 = vlaneseq
    %v610 = vshrl.u32 %v609, 7
    %v611 = vsub.s32 6, %v610
    %v612 = vrot.slane %v71, %v611
    %v613 = vlaneseq
    %v614 = vshrl.u32 %v613, 7
    %v615 = vsub.s32 7, %v614
    %v616 = vrot.slane %v71, %v615
    %v617 = vlaneseq
    %v618 = vshrl.u32 %v617, 7
    %v619 = vsub.s32 0, %v618
    %v620 = vrot.slane %v75, %v619
    %v621 = vlaneseq
    %v622 = vshrl.u32 %v621, 7
    %v623 = vsub.s32 1, %v622
    %v624 = vrot.slane %v75, %v623
    %v625 = vlaneseq
    %v626 = vshrl.u32 %v625, 7
    %v627 = vsub.s32 2, %v626
    %v628 = vrot.slane %v75, %v627
    %v629 = vlaneseq
    %v630 = vshrl.u32 %v629, 7
    %v631 = vsub.s32 3, %v630
    %v632 = vrot.slane %v75, %v631
    %v633 = vlaneseq
    %v634 = vshrl.u32 %v633, 7
    %v635 = vsub.s32 4, %v634
    %v636 = vrot.slane %v75, %v635
    %v637 = vlaneseq
    %v638 = vshrl.u32 %v637, 7
    %v639 = vsub.s32 5, %v638
    %v640 = vrot.slane %v75, %v639
    %v641 = vlaneseq
    %v642 = vshrl.u32 %v641, 7
    %v643 = vsub.s32 6, %v642
    %v644 = vrot.slane %v75, %v643
    %v645 = vlaneseq
    %v646 = vshrl.u32 %v645, 7
    %v647 = vsub.s32 7, %v646
    %v648 = vrot.slane %v75, %v647
    %v649 = vlaneseq
    %v650 = vshrl.u32 %v649, 7
    %v651 = vsub.s32 0, %v650
    %v652 = vrot.slane %v79, %v651
    %v653 = vlaneseq
    %v654 = vshrl.u32 %v653, 7
    %v655 = vsub.s32 1, %v654
    %v656 = vrot.slane %v79, %v655
    %v657 = vlaneseq
    %v658 = vshrl.u32 %v657, 7
    %v659 = vsub.s32 2, %v658
    %v660 = vrot.slane %v79, %v659
    %v661 = vlaneseq
    %v662 = vshrl.u32 %v661, 7
    %v663 = vsub.s32 3, %v662
    %v664 = vrot.slane %v79, %v663
    %v665 = vlaneseq
    %v666 = vshrl.u32 %v665, 7
    %v667 = vsub.s32 4, %v666
    %v668 = vrot.slane %v79, %v667
    %v669 = vlaneseq
    %v670 = vshrl.u32 %v669, 7
    %v671 = vsub.s32 5, %v670
    %v672 = vrot.slane %v79, %v671
    %v673 = vlaneseq
    %v674 = vshrl.u32 %v673, 7
    %v675 = vsub.s32 6, %v674
    %v676 = vrot.slane %v79, %v675
    %v677 = vlaneseq
    %v678 = vshrl.u32 %v677, 7
    %v679 = vsub.s32 7, %v678
    %v680 = vrot.slane %v79, %v679
    %v681 = vlaneseq
    %v682 = vshrl.u32 %v681, 7
    %v683 = vsub.s32 0, %v682
    %v684 = vrot.slane %v83, %v683
    %v685 = vlaneseq
    %v686 = vshrl.u32 %v685, 7
    %v687 = vsub.s32 1, %v686
    %v688 = vrot.slane %v83, %v687
    %v689 = vlaneseq
    %v690 = vshrl.u32 %v689, 7
    %v691 = vsub.s32 2, %v690
    %v692 = vrot.slane %v83, %v691
    %v693 = vlaneseq
    %v694 = vshrl.u32 %v693, 7
    %v695 = vsub.s32 3, %v694
    %v696 = vrot.slane %v83, %v695
    %v697 = vlaneseq
    %v698 = vshrl.u32 %v697, 7
    %v699 = vsub.s32 4, %v698
    %v700 = vrot.slane %v83, %v699
    %v701 = vlaneseq
    %v702 = vshrl.u32 %v701, 7
    %v703 = vsub.s32 5, %v702
    %v704 = vrot.slane %v83, %v703
    %v705 = vlaneseq
    %v706 = vshrl.u32 %v705, 7
    %v707 = vsub.s32 6, %v706
    %v708 = vrot.slane %v83, %v707
    %v709 = vlaneseq
    %v710 = vshrl.u32 %v709, 7
    %v711 = vsub.s32 7, %v710
    %v712 = vrot.slane %v83, %v711
    %745 = vset.pattern.permute.xlu0 3
    %746 = vperm.xlu0 %745, %v36
    %v747 = vpop.permute.xlu0 %746
    %v749 = vmul.f32 %v588, %v747
    %v750 = vmul.f32 %v592, %v747
    %v751 = vmul.f32 %v596, %v747
    %v752 = vmul.f32 %v600, %v747
    %v753 = vmul.f32 %v604, %v747
    %v754 = vmul.f32 %v608, %v747
    %v755 = vmul.f32 %v612, %v747
    %v756 = vmul.f32 %v616, %v747
    %v757 = vmul.f32 %v620, %v747
    %v758 = vmul.f32 %v624, %v747
    %v759 = vmul.f32 %v628, %v747
    %v760 = vmul.f32 %v632, %v747
    %v761 = vmul.f32 %v636, %v747
    %v762 = vmul.f32 %v640, %v747
    %v763 = vmul.f32 %v644, %v747
    %v764 = vmul.f32 %v648, %v747
    %v765 = vmul.f32 %v652, %v747
    %v766 = vmul.f32 %v656, %v747
    %v767 = vmul.f32 %v660, %v747
    %v768 = vmul.f32 %v664, %v747
    %v769 = vmul.f32 %v668, %v747
    %v770 = vmul.f32 %v672, %v747
    %v771 = vmul.f32 %v676, %v747
    %v772 = vmul.f32 %v680, %v747
    %v773 = vmul.f32 %v684, %v747
    %v774 = vmul.f32 %v688, %v747
    %v775 = vmul.f32 %v692, %v747
    %v776 = vmul.f32 %v696, %v747
    %v777 = vmul.f32 %v700, %v747
    %v778 = vmul.f32 %v704, %v747
    %v779 = vmul.f32 %v708, %v747
    %v780 = vmul.f32 %v712, %v747
    %v785 = vlaneseq
    %v786 = vshrl.u32 %v785, 7
    %v787 = vsub.s32 0, %v786
    %v788 = vrot.slane %v87, %v787
    %v789 = vlaneseq
    %v790 = vshrl.u32 %v789, 7
    %v791 = vsub.s32 1, %v790
    %v792 = vrot.slane %v87, %v791
    %v793 = vlaneseq
    %v794 = vshrl.u32 %v793, 7
    %v795 = vsub.s32 2, %v794
    %v796 = vrot.slane %v87, %v795
    %v797 = vlaneseq
    %v798 = vshrl.u32 %v797, 7
    %v799 = vsub.s32 3, %v798
    %v800 = vrot.slane %v87, %v799
    %v801 = vlaneseq
    %v802 = vshrl.u32 %v801, 7
    %v803 = vsub.s32 4, %v802
    %v804 = vrot.slane %v87, %v803
    %v805 = vlaneseq
    %v806 = vshrl.u32 %v805, 7
    %v807 = vsub.s32 5, %v806
    %v808 = vrot.slane %v87, %v807
    %v809 = vlaneseq
    %v810 = vshrl.u32 %v809, 7
    %v811 = vsub.s32 6, %v810
    %v812 = vrot.slane %v87, %v811
    %v813 = vlaneseq
    %v814 = vshrl.u32 %v813, 7
    %v815 = vsub.s32 7, %v814
    %v816 = vrot.slane %v87, %v815
    %v817 = vlaneseq
    %v818 = vshrl.u32 %v817, 7
    %v819 = vsub.s32 0, %v818
    %v820 = vrot.slane %v91, %v819
    %v821 = vlaneseq
    %v822 = vshrl.u32 %v821, 7
    %v823 = vsub.s32 1, %v822
    %v824 = vrot.slane %v91, %v823
    %v825 = vlaneseq
    %v826 = vshrl.u32 %v825, 7
    %v827 = vsub.s32 2, %v826
    %v828 = vrot.slane %v91, %v827
    %v829 = vlaneseq
    %v830 = vshrl.u32 %v829, 7
    %v831 = vsub.s32 3, %v830
    %v832 = vrot.slane %v91, %v831
    %v833 = vlaneseq
    %v834 = vshrl.u32 %v833, 7
    %v835 = vsub.s32 4, %v834
    %v836 = vrot.slane %v91, %v835
    %v837 = vlaneseq
    %v838 = vshrl.u32 %v837, 7
    %v839 = vsub.s32 5, %v838
    %v840 = vrot.slane %v91, %v839
    %v841 = vlaneseq
    %v842 = vshrl.u32 %v841, 7
    %v843 = vsub.s32 6, %v842
    %v844 = vrot.slane %v91, %v843
    %v845 = vlaneseq
    %v846 = vshrl.u32 %v845, 7
    %v847 = vsub.s32 7, %v846
    %v848 = vrot.slane %v91, %v847
    %v849 = vlaneseq
    %v850 = vshrl.u32 %v849, 7
    %v851 = vsub.s32 0, %v850
    %v852 = vrot.slane %v95, %v851
    %v853 = vlaneseq
    %v854 = vshrl.u32 %v853, 7
    %v855 = vsub.s32 1, %v854
    %v856 = vrot.slane %v95, %v855
    %v857 = vlaneseq
    %v858 = vshrl.u32 %v857, 7
    %v859 = vsub.s32 2, %v858
    %v860 = vrot.slane %v95, %v859
    %v861 = vlaneseq
    %v862 = vshrl.u32 %v861, 7
    %v863 = vsub.s32 3, %v862
    %v864 = vrot.slane %v95, %v863
    %v865 = vlaneseq
    %v866 = vshrl.u32 %v865, 7
    %v867 = vsub.s32 4, %v866
    %v868 = vrot.slane %v95, %v867
    %v869 = vlaneseq
    %v870 = vshrl.u32 %v869, 7
    %v871 = vsub.s32 5, %v870
    %v872 = vrot.slane %v95, %v871
    %v873 = vlaneseq
    %v874 = vshrl.u32 %v873, 7
    %v875 = vsub.s32 6, %v874
    %v876 = vrot.slane %v95, %v875
    %v877 = vlaneseq
    %v878 = vshrl.u32 %v877, 7
    %v879 = vsub.s32 7, %v878
    %v880 = vrot.slane %v95, %v879
    %v881 = vlaneseq
    %v882 = vshrl.u32 %v881, 7
    %v883 = vsub.s32 0, %v882
    %v884 = vrot.slane %v99, %v883
    %v885 = vlaneseq
    %v886 = vshrl.u32 %v885, 7
    %v887 = vsub.s32 1, %v886
    %v888 = vrot.slane %v99, %v887
    %v889 = vlaneseq
    %v890 = vshrl.u32 %v889, 7
    %v891 = vsub.s32 2, %v890
    %v892 = vrot.slane %v99, %v891
    %v893 = vlaneseq
    %v894 = vshrl.u32 %v893, 7
    %v895 = vsub.s32 3, %v894
    %v896 = vrot.slane %v99, %v895
    %v897 = vlaneseq
    %v898 = vshrl.u32 %v897, 7
    %v899 = vsub.s32 4, %v898
    %v900 = vrot.slane %v99, %v899
    %v901 = vlaneseq
    %v902 = vshrl.u32 %v901, 7
    %v903 = vsub.s32 5, %v902
    %v904 = vrot.slane %v99, %v903
    %v905 = vlaneseq
    %v906 = vshrl.u32 %v905, 7
    %v907 = vsub.s32 6, %v906
    %v908 = vrot.slane %v99, %v907
    %v909 = vlaneseq
    %v910 = vshrl.u32 %v909, 7
    %v911 = vsub.s32 7, %v910
    %v912 = vrot.slane %v99, %v911
    %945 = vset.pattern.permute.xlu0 2
    %946 = vperm.xlu0 %945, %v36
    %v947 = vpop.permute.xlu0 %946
    %v949 = vmul.f32 %v788, %v947
    %v950 = vmul.f32 %v792, %v947
    %v951 = vmul.f32 %v796, %v947
    %v952 = vmul.f32 %v800, %v947
    %v953 = vmul.f32 %v804, %v947
    %v954 = vmul.f32 %v808, %v947
    %v955 = vmul.f32 %v812, %v947
    %v956 = vmul.f32 %v816, %v947
    %v957 = vmul.f32 %v820, %v947
    %v958 = vmul.f32 %v824, %v947
    %v959 = vmul.f32 %v828, %v947
    %v960 = vmul.f32 %v832, %v947
    %v961 = vmul.f32 %v836, %v947
    %v962 = vmul.f32 %v840, %v947
    %v963 = vmul.f32 %v844, %v947
    %v964 = vmul.f32 %v848, %v947
    %v965 = vmul.f32 %v852, %v947
    %v966 = vmul.f32 %v856, %v947
    %v967 = vmul.f32 %v860, %v947
    %v968 = vmul.f32 %v864, %v947
    %v969 = vmul.f32 %v868, %v947
    %v970 = vmul.f32 %v872, %v947
    %v971 = vmul.f32 %v876, %v947
    %v972 = vmul.f32 %v880, %v947
    %v973 = vmul.f32 %v884, %v947
    %v974 = vmul.f32 %v888, %v947
    %v975 = vmul.f32 %v892, %v947
    %v976 = vmul.f32 %v896, %v947
    %v977 = vmul.f32 %v900, %v947
    %v978 = vmul.f32 %v904, %v947
    %v979 = vmul.f32 %v908, %v947
    %v980 = vmul.f32 %v912, %v947
    %v981 = vsub.f32 %v749, %v949
    %v982 = vsub.f32 %v750, %v950
    %v983 = vsub.f32 %v751, %v951
    %v984 = vsub.f32 %v752, %v952
    %v985 = vsub.f32 %v753, %v953
    %v986 = vsub.f32 %v754, %v954
    %v987 = vsub.f32 %v755, %v955
    %v988 = vsub.f32 %v756, %v956
    %v989 = vsub.f32 %v757, %v957
    %v990 = vsub.f32 %v758, %v958
    %v991 = vsub.f32 %v759, %v959
    %v992 = vsub.f32 %v760, %v960
    %v993 = vsub.f32 %v761, %v961
    %v994 = vsub.f32 %v762, %v962
    %v995 = vsub.f32 %v763, %v963
    %v996 = vsub.f32 %v764, %v964
    %v997 = vsub.f32 %v765, %v965
    %v998 = vsub.f32 %v766, %v966
    %v999 = vsub.f32 %v767, %v967
    %v1000 = vsub.f32 %v768, %v968
    %v1001 = vsub.f32 %v769, %v969
    %v1002 = vsub.f32 %v770, %v970
    %v1003 = vsub.f32 %v771, %v971
    %v1004 = vsub.f32 %v772, %v972
    %v1005 = vsub.f32 %v773, %v973
    %v1006 = vsub.f32 %v774, %v974
    %v1007 = vsub.f32 %v775, %v975
    %v1008 = vsub.f32 %v776, %v976
    %v1009 = vsub.f32 %v777, %v977
    %v1010 = vsub.f32 %v778, %v978
    %v1011 = vsub.f32 %v779, %v979
    %v1012 = vsub.f32 %v780, %v980
    %v1013 = vmul.f32 %v549, %v549
    %v1014 = vmul.f32 %v550, %v550
    %v1015 = vmul.f32 %v551, %v551
    %v1016 = vmul.f32 %v552, %v552
    %v1017 = vmul.f32 %v553, %v553
    %v1018 = vmul.f32 %v554, %v554
    %v1019 = vmul.f32 %v555, %v555
    %v1020 = vmul.f32 %v556, %v556
    %v1021 = vmul.f32 %v557, %v557
    %v1022 = vmul.f32 %v558, %v558
    %v1023 = vmul.f32 %v559, %v559
    %v1024 = vmul.f32 %v560, %v560
    %v1025 = vmul.f32 %v561, %v561
    %v1026 = vmul.f32 %v562, %v562
    %v1027 = vmul.f32 %v563, %v563
    %v1028 = vmul.f32 %v564, %v564
    %v1029 = vmul.f32 %v565, %v565
    %v1030 = vmul.f32 %v566, %v566
    %v1031 = vmul.f32 %v567, %v567
    %v1032 = vmul.f32 %v568, %v568
    %v1033 = vmul.f32 %v569, %v569
    %v1034 = vmul.f32 %v570, %v570
    %v1035 = vmul.f32 %v571, %v571
    %v1036 = vmul.f32 %v572, %v572
    %v1037 = vmul.f32 %v573, %v573
    %v1038 = vmul.f32 %v574, %v574
    %v1039 = vmul.f32 %v575, %v575
    %v1040 = vmul.f32 %v576, %v576
    %v1041 = vmul.f32 %v577, %v577
    %v1042 = vmul.f32 %v578, %v578
    %v1043 = vmul.f32 %v579, %v579
    %v1044 = vmul.f32 %v580, %v580
    %1045 = vset.pattern.permute.xlu0 4
    %1046 = vperm.xlu0 %1045, %v36
    %v1047 = vpop.permute.xlu0 %1046
    %v1053 = vlaneseq
    %v1054 = vshrl.u32 %v1053, 7
    %v1055 = vsub.s32 0, %v1054
    %v1056 = vrot.slane %v103, %v1055
    %v1057 = vlaneseq
    %v1058 = vshrl.u32 %v1057, 7
    %v1059 = vsub.s32 1, %v1058
    %v1060 = vrot.slane %v103, %v1059
    %v1061 = vlaneseq
    %v1062 = vshrl.u32 %v1061, 7
    %v1063 = vsub.s32 2, %v1062
    %v1064 = vrot.slane %v103, %v1063
    %v1065 = vlaneseq
    %v1066 = vshrl.u32 %v1065, 7
    %v1067 = vsub.s32 3, %v1066
    %v1068 = vrot.slane %v103, %v1067
    %v1069 = vlaneseq
    %v1070 = vshrl.u32 %v1069, 7
    %v1071 = vsub.s32 4, %v1070
    %v1072 = vrot.slane %v103, %v1071
    %v1073 = vlaneseq
    %v1074 = vshrl.u32 %v1073, 7
    %v1075 = vsub.s32 5, %v1074
    %v1076 = vrot.slane %v103, %v1075
    %v1077 = vlaneseq
    %v1078 = vshrl.u32 %v1077, 7
    %v1079 = vsub.s32 6, %v1078
    %v1080 = vrot.slane %v103, %v1079
    %v1081 = vlaneseq
    %v1082 = vshrl.u32 %v1081, 7
    %v1083 = vsub.s32 7, %v1082
    %v1084 = vrot.slane %v103, %v1083
    %v1085 = vlaneseq
    %v1086 = vshrl.u32 %v1085, 7
    %v1087 = vsub.s32 0, %v1086
    %v1088 = vrot.slane %v107, %v1087
    %v1089 = vlaneseq
    %v1090 = vshrl.u32 %v1089, 7
    %v1091 = vsub.s32 1, %v1090
    %v1092 = vrot.slane %v107, %v1091
    %v1093 = vlaneseq
    %v1094 = vshrl.u32 %v1093, 7
    %v1095 = vsub.s32 2, %v1094
    %v1096 = vrot.slane %v107, %v1095
    %v1097 = vlaneseq
    %v1098 = vshrl.u32 %v1097, 7
    %v1099 = vsub.s32 3, %v1098
    %v1100 = vrot.slane %v107, %v1099
    %v1101 = vlaneseq
    %v1102 = vshrl.u32 %v1101, 7
    %v1103 = vsub.s32 4, %v1102
    %v1104 = vrot.slane %v107, %v1103
    %v1105 = vlaneseq
    %v1106 = vshrl.u32 %v1105, 7
    %v1107 = vsub.s32 5, %v1106
    %v1108 = vrot.slane %v107, %v1107
    %v1109 = vlaneseq
    %v1110 = vshrl.u32 %v1109, 7
    %v1111 = vsub.s32 6, %v1110
    %v1112 = vrot.slane %v107, %v1111
    %v1113 = vlaneseq
    %v1114 = vshrl.u32 %v1113, 7
    %v1115 = vsub.s32 7, %v1114
    %v1116 = vrot.slane %v107, %v1115
    %v1117 = vlaneseq
    %v1118 = vshrl.u32 %v1117, 7
    %v1119 = vsub.s32 0, %v1118
    %v1120 = vrot.slane %v111, %v1119
    %v1121 = vlaneseq
    %v1122 = vshrl.u32 %v1121, 7
    %v1123 = vsub.s32 1, %v1122
    %v1124 = vrot.slane %v111, %v1123
    %v1125 = vlaneseq
    %v1126 = vshrl.u32 %v1125, 7
    %v1127 = vsub.s32 2, %v1126
    %v1128 = vrot.slane %v111, %v1127
    %v1129 = vlaneseq
    %v1130 = vshrl.u32 %v1129, 7
    %v1131 = vsub.s32 3, %v1130
    %v1132 = vrot.slane %v111, %v1131
    %v1133 = vlaneseq
    %v1134 = vshrl.u32 %v1133, 7
    %v1135 = vsub.s32 4, %v1134
    %v1136 = vrot.slane %v111, %v1135
    %v1137 = vlaneseq
    %v1138 = vshrl.u32 %v1137, 7
    %v1139 = vsub.s32 5, %v1138
    %v1140 = vrot.slane %v111, %v1139
    %v1141 = vlaneseq
    %v1142 = vshrl.u32 %v1141, 7
    %v1143 = vsub.s32 6, %v1142
    %v1144 = vrot.slane %v111, %v1143
    %v1145 = vlaneseq
    %v1146 = vshrl.u32 %v1145, 7
    %v1147 = vsub.s32 7, %v1146
    %v1148 = vrot.slane %v111, %v1147
    %v1149 = vlaneseq
    %v1150 = vshrl.u32 %v1149, 7
    %v1151 = vsub.s32 0, %v1150
    %v1152 = vrot.slane %v115, %v1151
    %v1153 = vlaneseq
    %v1154 = vshrl.u32 %v1153, 7
    %v1155 = vsub.s32 1, %v1154
    %v1156 = vrot.slane %v115, %v1155
    %v1157 = vlaneseq
    %v1158 = vshrl.u32 %v1157, 7
    %v1159 = vsub.s32 2, %v1158
    %v1160 = vrot.slane %v115, %v1159
    %v1161 = vlaneseq
    %v1162 = vshrl.u32 %v1161, 7
    %v1163 = vsub.s32 3, %v1162
    %v1164 = vrot.slane %v115, %v1163
    %v1165 = vlaneseq
    %v1166 = vshrl.u32 %v1165, 7
    %v1167 = vsub.s32 4, %v1166
    %v1168 = vrot.slane %v115, %v1167
    %v1169 = vlaneseq
    %v1170 = vshrl.u32 %v1169, 7
    %v1171 = vsub.s32 5, %v1170
    %v1172 = vrot.slane %v115, %v1171
    %v1173 = vlaneseq
    %v1174 = vshrl.u32 %v1173, 7
    %v1175 = vsub.s32 6, %v1174
    %v1176 = vrot.slane %v115, %v1175
    %v1177 = vlaneseq
    %v1178 = vshrl.u32 %v1177, 7
    %v1179 = vsub.s32 7, %v1178
    %v1180 = vrot.slane %v115, %v1179
    %v1213 = vmul.f32 %v1047, %v1056
    %v1214 = vmul.f32 %v1047, %v1060
    %v1215 = vmul.f32 %v1047, %v1064
    %v1216 = vmul.f32 %v1047, %v1068
    %v1217 = vmul.f32 %v1047, %v1072
    %v1218 = vmul.f32 %v1047, %v1076
    %v1219 = vmul.f32 %v1047, %v1080
    %v1220 = vmul.f32 %v1047, %v1084
    %v1221 = vmul.f32 %v1047, %v1088
    %v1222 = vmul.f32 %v1047, %v1092
    %v1223 = vmul.f32 %v1047, %v1096
    %v1224 = vmul.f32 %v1047, %v1100
    %v1225 = vmul.f32 %v1047, %v1104
    %v1226 = vmul.f32 %v1047, %v1108
    %v1227 = vmul.f32 %v1047, %v1112
    %v1228 = vmul.f32 %v1047, %v1116
    %v1229 = vmul.f32 %v1047, %v1120
    %v1230 = vmul.f32 %v1047, %v1124
    %v1231 = vmul.f32 %v1047, %v1128
    %v1232 = vmul.f32 %v1047, %v1132
    %v1233 = vmul.f32 %v1047, %v1136
    %v1234 = vmul.f32 %v1047, %v1140
    %v1235 = vmul.f32 %v1047, %v1144
    %v1236 = vmul.f32 %v1047, %v1148
    %v1237 = vmul.f32 %v1047, %v1152
    %v1238 = vmul.f32 %v1047, %v1156
    %v1239 = vmul.f32 %v1047, %v1160
    %v1240 = vmul.f32 %v1047, %v1164
    %v1241 = vmul.f32 %v1047, %v1168
    %v1242 = vmul.f32 %v1047, %v1172
    %v1243 = vmul.f32 %v1047, %v1176
    %v1244 = vmul.f32 %v1047, %v1180
    %v1245 = vmul.f32 %v981, %v981
    %v1246 = vmul.f32 %v982, %v982
    %v1247 = vmul.f32 %v983, %v983
    %v1248 = vmul.f32 %v984, %v984
    %v1249 = vmul.f32 %v985, %v985
    %v1250 = vmul.f32 %v986, %v986
    %v1251 = vmul.f32 %v987, %v987
    %v1252 = vmul.f32 %v988, %v988
    %v1253 = vmul.f32 %v989, %v989
    %v1254 = vmul.f32 %v990, %v990
    %v1255 = vmul.f32 %v991, %v991
    %v1256 = vmul.f32 %v992, %v992
    %v1257 = vmul.f32 %v993, %v993
    %v1258 = vmul.f32 %v994, %v994
    %v1259 = vmul.f32 %v995, %v995
    %v1260 = vmul.f32 %v996, %v996
    %v1261 = vmul.f32 %v997, %v997
    %v1262 = vmul.f32 %v998, %v998
    %v1263 = vmul.f32 %v999, %v999
    %v1264 = vmul.f32 %v1000, %v1000
    %v1265 = vmul.f32 %v1001, %v1001
    %v1266 = vmul.f32 %v1002, %v1002
    %v1267 = vmul.f32 %v1003, %v1003
    %v1268 = vmul.f32 %v1004, %v1004
    %v1269 = vmul.f32 %v1005, %v1005
    %v1270 = vmul.f32 %v1006, %v1006
    %v1271 = vmul.f32 %v1007, %v1007
    %v1272 = vmul.f32 %v1008, %v1008
    %v1273 = vmul.f32 %v1009, %v1009
    %v1274 = vmul.f32 %v1010, %v1010
    %v1275 = vmul.f32 %v1011, %v1011
    %v1276 = vmul.f32 %v1012, %v1012
    %v1277 = vmul.f32 %v1213, %v1245
    %v1278 = vmul.f32 %v1214, %v1246
    %v1279 = vmul.f32 %v1215, %v1247
    %v1280 = vmul.f32 %v1216, %v1248
    %v1281 = vmul.f32 %v1217, %v1249
    %v1282 = vmul.f32 %v1218, %v1250
    %v1283 = vmul.f32 %v1219, %v1251
    %v1284 = vmul.f32 %v1220, %v1252
    %v1285 = vmul.f32 %v1221, %v1253
    %v1286 = vmul.f32 %v1222, %v1254
    %v1287 = vmul.f32 %v1223, %v1255
    %v1288 = vmul.f32 %v1224, %v1256
    %v1289 = vmul.f32 %v1225, %v1257
    %v1290 = vmul.f32 %v1226, %v1258
    %v1291 = vmul.f32 %v1227, %v1259
    %v1292 = vmul.f32 %v1228, %v1260
    %v1293 = vmul.f32 %v1229, %v1261
    %v1294 = vmul.f32 %v1230, %v1262
    %v1295 = vmul.f32 %v1231, %v1263
    %v1296 = vmul.f32 %v1232, %v1264
    %v1297 = vmul.f32 %v1233, %v1265
    %v1298 = vmul.f32 %v1234, %v1266
    %v1299 = vmul.f32 %v1235, %v1267
    %v1300 = vmul.f32 %v1236, %v1268
    %v1301 = vmul.f32 %v1237, %v1269
    %v1302 = vmul.f32 %v1238, %v1270
    %v1303 = vmul.f32 %v1239, %v1271
    %v1304 = vmul.f32 %v1240, %v1272
    %v1305 = vmul.f32 %v1241, %v1273
    %v1306 = vmul.f32 %v1242, %v1274
    %v1307 = vmul.f32 %v1243, %v1275
    %v1308 = vmul.f32 %v1244, %v1276
    %v1309 = vadd.f32 %v1013, %v1277
    %v1310 = vadd.f32 %v1014, %v1278
    %v1311 = vadd.f32 %v1015, %v1279
    %v1312 = vadd.f32 %v1016, %v1280
    %v1313 = vadd.f32 %v1017, %v1281
    %v1314 = vadd.f32 %v1018, %v1282
    %v1315 = vadd.f32 %v1019, %v1283
    %v1316 = vadd.f32 %v1020, %v1284
    %v1317 = vadd.f32 %v1021, %v1285
    %v1318 = vadd.f32 %v1022, %v1286
    %v1319 = vadd.f32 %v1023, %v1287
    %v1320 = vadd.f32 %v1024, %v1288
    %v1321 = vadd.f32 %v1025, %v1289
    %v1322 = vadd.f32 %v1026, %v1290
    %v1323 = vadd.f32 %v1027, %v1291
    %v1324 = vadd.f32 %v1028, %v1292
    %v1325 = vadd.f32 %v1029, %v1293
    %v1326 = vadd.f32 %v1030, %v1294
    %v1327 = vadd.f32 %v1031, %v1295
    %v1328 = vadd.f32 %v1032, %v1296
    %v1329 = vadd.f32 %v1033, %v1297
    %v1330 = vadd.f32 %v1034, %v1298
    %v1331 = vadd.f32 %v1035, %v1299
    %v1332 = vadd.f32 %v1036, %v1300
    %v1333 = vadd.f32 %v1037, %v1301
    %v1334 = vadd.f32 %v1038, %v1302
    %v1335 = vadd.f32 %v1039, %v1303
    %v1336 = vadd.f32 %v1040, %v1304
    %v1337 = vadd.f32 %v1041, %v1305
    %v1338 = vadd.f32 %v1042, %v1306
    %v1339 = vadd.f32 %v1043, %v1307
    %v1340 = vadd.f32 %v1044, %v1308
    %v1341 = vmax.f32 %v1309, 0.0
    %v1342 = vmax.f32 %v1310, 0.0
    %v1343 = vmax.f32 %v1311, 0.0
    %v1344 = vmax.f32 %v1312, 0.0
    %v1345 = vmax.f32 %v1313, 0.0
    %v1346 = vmax.f32 %v1314, 0.0
    %v1347 = vmax.f32 %v1315, 0.0
    %v1348 = vmax.f32 %v1316, 0.0
    %v1349 = vmax.f32 %v1317, 0.0
    %v1350 = vmax.f32 %v1318, 0.0
    %v1351 = vmax.f32 %v1319, 0.0
    %v1352 = vmax.f32 %v1320, 0.0
    %v1353 = vmax.f32 %v1321, 0.0
    %v1354 = vmax.f32 %v1322, 0.0
    %v1355 = vmax.f32 %v1323, 0.0
    %v1356 = vmax.f32 %v1324, 0.0
    %v1357 = vmax.f32 %v1325, 0.0
    %v1358 = vmax.f32 %v1326, 0.0
    %v1359 = vmax.f32 %v1327, 0.0
    %v1360 = vmax.f32 %v1328, 0.0
    %v1361 = vmax.f32 %v1329, 0.0
    %v1362 = vmax.f32 %v1330, 0.0
    %v1363 = vmax.f32 %v1331, 0.0
    %v1364 = vmax.f32 %v1332, 0.0
    %v1365 = vmax.f32 %v1333, 0.0
    %v1366 = vmax.f32 %v1334, 0.0
    %v1367 = vmax.f32 %v1335, 0.0
    %v1368 = vmax.f32 %v1336, 0.0
    %v1369 = vmax.f32 %v1337, 0.0
    %v1370 = vmax.f32 %v1338, 0.0
    %v1371 = vmax.f32 %v1339, 0.0
    %v1372 = vmax.f32 %v1340, 0.0
    %v1373 = vmin.f32 %v1341, 1.0
    %v1374 = vmin.f32 %v1342, 1.0
    %v1375 = vmin.f32 %v1343, 1.0
    %v1376 = vmin.f32 %v1344, 1.0
    %v1377 = vmin.f32 %v1345, 1.0
    %v1378 = vmin.f32 %v1346, 1.0
    %v1379 = vmin.f32 %v1347, 1.0
    %v1380 = vmin.f32 %v1348, 1.0
    %v1381 = vmin.f32 %v1349, 1.0
    %v1382 = vmin.f32 %v1350, 1.0
    %v1383 = vmin.f32 %v1351, 1.0
    %v1384 = vmin.f32 %v1352, 1.0
    %v1385 = vmin.f32 %v1353, 1.0
    %v1386 = vmin.f32 %v1354, 1.0
    %v1387 = vmin.f32 %v1355, 1.0
    %v1388 = vmin.f32 %v1356, 1.0
    %v1389 = vmin.f32 %v1357, 1.0
    %v1390 = vmin.f32 %v1358, 1.0
    %v1391 = vmin.f32 %v1359, 1.0
    %v1392 = vmin.f32 %v1360, 1.0
    %v1393 = vmin.f32 %v1361, 1.0
    %v1394 = vmin.f32 %v1362, 1.0
    %v1395 = vmin.f32 %v1363, 1.0
    %v1396 = vmin.f32 %v1364, 1.0
    %v1397 = vmin.f32 %v1365, 1.0
    %v1398 = vmin.f32 %v1366, 1.0
    %v1399 = vmin.f32 %v1367, 1.0
    %v1400 = vmin.f32 %v1368, 1.0
    %v1401 = vmin.f32 %v1369, 1.0
    %v1402 = vmin.f32 %v1370, 1.0
    %v1403 = vmin.f32 %v1371, 1.0
    %v1404 = vmin.f32 %v1372, 1.0
    %v1405 = vrsqrt.pop %v1373
    %v1406 = vmul.f32 %v1373, %v1405
    %vm1407 = vcmp.eq.f32.partialorder %v1373, inf
    %v1408 = vsel %vm1407, %v1373, %v1406
    %vm1409 = vcmp.eq.f32.partialorder %v1373, 0.0
    %v1410 = vand.u32 %v1373, 2147483648
    %v1411 = vsel %vm1409, %v1410, %v1408
    %v1412 = vrsqrt.pop %v1374
    %v1413 = vmul.f32 %v1374, %v1412
    %vm1414 = vcmp.eq.f32.partialorder %v1374, inf
    %v1415 = vsel %vm1414, %v1374, %v1413
    %vm1416 = vcmp.eq.f32.partialorder %v1374, 0.0
    %v1417 = vand.u32 %v1374, 2147483648
    %v1418 = vsel %vm1416, %v1417, %v1415
    %v1419 = vrsqrt.pop %v1375
    %v1420 = vmul.f32 %v1375, %v1419
    %vm1421 = vcmp.eq.f32.partialorder %v1375, inf
    %v1422 = vsel %vm1421, %v1375, %v1420
    %vm1423 = vcmp.eq.f32.partialorder %v1375, 0.0
    %v1424 = vand.u32 %v1375, 2147483648
    %v1425 = vsel %vm1423, %v1424, %v1422
    %v1426 = vrsqrt.pop %v1376
    %v1427 = vmul.f32 %v1376, %v1426
    %vm1428 = vcmp.eq.f32.partialorder %v1376, inf
    %v1429 = vsel %vm1428, %v1376, %v1427
    %vm1430 = vcmp.eq.f32.partialorder %v1376, 0.0
    %v1431 = vand.u32 %v1376, 2147483648
    %v1432 = vsel %vm1430, %v1431, %v1429
    %v1433 = vrsqrt.pop %v1377
    %v1434 = vmul.f32 %v1377, %v1433
    %vm1435 = vcmp.eq.f32.partialorder %v1377, inf
    %v1436 = vsel %vm1435, %v1377, %v1434
    %vm1437 = vcmp.eq.f32.partialorder %v1377, 0.0
    %v1438 = vand.u32 %v1377, 2147483648
    %v1439 = vsel %vm1437, %v1438, %v1436
    %v1440 = vrsqrt.pop %v1378
    %v1441 = vmul.f32 %v1378, %v1440
    %vm1442 = vcmp.eq.f32.partialorder %v1378, inf
    %v1443 = vsel %vm1442, %v1378, %v1441
    %vm1444 = vcmp.eq.f32.partialorder %v1378, 0.0
    %v1445 = vand.u32 %v1378, 2147483648
    %v1446 = vsel %vm1444, %v1445, %v1443
    %v1447 = vrsqrt.pop %v1379
    %v1448 = vmul.f32 %v1379, %v1447
    %vm1449 = vcmp.eq.f32.partialorder %v1379, inf
    %v1450 = vsel %vm1449, %v1379, %v1448
    %vm1451 = vcmp.eq.f32.partialorder %v1379, 0.0
    %v1452 = vand.u32 %v1379, 2147483648
    %v1453 = vsel %vm1451, %v1452, %v1450
    %v1454 = vrsqrt.pop %v1380
    %v1455 = vmul.f32 %v1380, %v1454
    %vm1456 = vcmp.eq.f32.partialorder %v1380, inf
    %v1457 = vsel %vm1456, %v1380, %v1455
    %vm1458 = vcmp.eq.f32.partialorder %v1380, 0.0
    %v1459 = vand.u32 %v1380, 2147483648
    %v1460 = vsel %vm1458, %v1459, %v1457
    %v1461 = vrsqrt.pop %v1381
    %v1462 = vmul.f32 %v1381, %v1461
    %vm1463 = vcmp.eq.f32.partialorder %v1381, inf
    %v1464 = vsel %vm1463, %v1381, %v1462
    %vm1465 = vcmp.eq.f32.partialorder %v1381, 0.0
    %v1466 = vand.u32 %v1381, 2147483648
    %v1467 = vsel %vm1465, %v1466, %v1464
    %v1468 = vrsqrt.pop %v1382
    %v1469 = vmul.f32 %v1382, %v1468
    %vm1470 = vcmp.eq.f32.partialorder %v1382, inf
    %v1471 = vsel %vm1470, %v1382, %v1469
    %vm1472 = vcmp.eq.f32.partialorder %v1382, 0.0
    %v1473 = vand.u32 %v1382, 2147483648
    %v1474 = vsel %vm1472, %v1473, %v1471
    %v1475 = vrsqrt.pop %v1383
    %v1476 = vmul.f32 %v1383, %v1475
    %vm1477 = vcmp.eq.f32.partialorder %v1383, inf
    %v1478 = vsel %vm1477, %v1383, %v1476
    %vm1479 = vcmp.eq.f32.partialorder %v1383, 0.0
    %v1480 = vand.u32 %v1383, 2147483648
    %v1481 = vsel %vm1479, %v1480, %v1478
    %v1482 = vrsqrt.pop %v1384
    %v1483 = vmul.f32 %v1384, %v1482
    %vm1484 = vcmp.eq.f32.partialorder %v1384, inf
    %v1485 = vsel %vm1484, %v1384, %v1483
    %vm1486 = vcmp.eq.f32.partialorder %v1384, 0.0
    %v1487 = vand.u32 %v1384, 2147483648
    %v1488 = vsel %vm1486, %v1487, %v1485
    %v1489 = vrsqrt.pop %v1385
    %v1490 = vmul.f32 %v1385, %v1489
    %vm1491 = vcmp.eq.f32.partialorder %v1385, inf
    %v1492 = vsel %vm1491, %v1385, %v1490
    %vm1493 = vcmp.eq.f32.partialorder %v1385, 0.0
    %v1494 = vand.u32 %v1385, 2147483648
    %v1495 = vsel %vm1493, %v1494, %v1492
    %v1496 = vrsqrt.pop %v1386
    %v1497 = vmul.f32 %v1386, %v1496
    %vm1498 = vcmp.eq.f32.partialorder %v1386, inf
    %v1499 = vsel %vm1498, %v1386, %v1497
    %vm1500 = vcmp.eq.f32.partialorder %v1386, 0.0
    %v1501 = vand.u32 %v1386, 2147483648
    %v1502 = vsel %vm1500, %v1501, %v1499
    %v1503 = vrsqrt.pop %v1387
    %v1504 = vmul.f32 %v1387, %v1503
    %vm1505 = vcmp.eq.f32.partialorder %v1387, inf
    %v1506 = vsel %vm1505, %v1387, %v1504
    %vm1507 = vcmp.eq.f32.partialorder %v1387, 0.0
    %v1508 = vand.u32 %v1387, 2147483648
    %v1509 = vsel %vm1507, %v1508, %v1506
    %v1510 = vrsqrt.pop %v1388
    %v1511 = vmul.f32 %v1388, %v1510
    %vm1512 = vcmp.eq.f32.partialorder %v1388, inf
    %v1513 = vsel %vm1512, %v1388, %v1511
    %vm1514 = vcmp.eq.f32.partialorder %v1388, 0.0
    %v1515 = vand.u32 %v1388, 2147483648
    %v1516 = vsel %vm1514, %v1515, %v1513
    %v1517 = vrsqrt.pop %v1389
    %v1518 = vmul.f32 %v1389, %v1517
    %vm1519 = vcmp.eq.f32.partialorder %v1389, inf
    %v1520 = vsel %vm1519, %v1389, %v1518
    %vm1521 = vcmp.eq.f32.partialorder %v1389, 0.0
    %v1522 = vand.u32 %v1389, 2147483648
    %v1523 = vsel %vm1521, %v1522, %v1520
    %v1524 = vrsqrt.pop %v1390
    %v1525 = vmul.f32 %v1390, %v1524
    %vm1526 = vcmp.eq.f32.partialorder %v1390, inf
    %v1527 = vsel %vm1526, %v1390, %v1525
    %vm1528 = vcmp.eq.f32.partialorder %v1390, 0.0
    %v1529 = vand.u32 %v1390, 2147483648
    %v1530 = vsel %vm1528, %v1529, %v1527
    %v1531 = vrsqrt.pop %v1391
    %v1532 = vmul.f32 %v1391, %v1531
    %vm1533 = vcmp.eq.f32.partialorder %v1391, inf
    %v1534 = vsel %vm1533, %v1391, %v1532
    %vm1535 = vcmp.eq.f32.partialorder %v1391, 0.0
    %v1536 = vand.u32 %v1391, 2147483648
    %v1537 = vsel %vm1535, %v1536, %v1534
    %v1538 = vrsqrt.pop %v1392
    %v1539 = vmul.f32 %v1392, %v1538
    %vm1540 = vcmp.eq.f32.partialorder %v1392, inf
    %v1541 = vsel %vm1540, %v1392, %v1539
    %vm1542 = vcmp.eq.f32.partialorder %v1392, 0.0
    %v1543 = vand.u32 %v1392, 2147483648
    %v1544 = vsel %vm1542, %v1543, %v1541
    %v1545 = vrsqrt.pop %v1393
    %v1546 = vmul.f32 %v1393, %v1545
    %vm1547 = vcmp.eq.f32.partialorder %v1393, inf
    %v1548 = vsel %vm1547, %v1393, %v1546
    %vm1549 = vcmp.eq.f32.partialorder %v1393, 0.0
    %v1550 = vand.u32 %v1393, 2147483648
    %v1551 = vsel %vm1549, %v1550, %v1548
    %v1552 = vrsqrt.pop %v1394
    %v1553 = vmul.f32 %v1394, %v1552
    %vm1554 = vcmp.eq.f32.partialorder %v1394, inf
    %v1555 = vsel %vm1554, %v1394, %v1553
    %vm1556 = vcmp.eq.f32.partialorder %v1394, 0.0
    %v1557 = vand.u32 %v1394, 2147483648
    %v1558 = vsel %vm1556, %v1557, %v1555
    %v1559 = vrsqrt.pop %v1395
    %v1560 = vmul.f32 %v1395, %v1559
    %vm1561 = vcmp.eq.f32.partialorder %v1395, inf
    %v1562 = vsel %vm1561, %v1395, %v1560
    %vm1563 = vcmp.eq.f32.partialorder %v1395, 0.0
    %v1564 = vand.u32 %v1395, 2147483648
    %v1565 = vsel %vm1563, %v1564, %v1562
    %v1566 = vrsqrt.pop %v1396
    %v1567 = vmul.f32 %v1396, %v1566
    %vm1568 = vcmp.eq.f32.partialorder %v1396, inf
    %v1569 = vsel %vm1568, %v1396, %v1567
    %vm1570 = vcmp.eq.f32.partialorder %v1396, 0.0
    %v1571 = vand.u32 %v1396, 2147483648
    %v1572 = vsel %vm1570, %v1571, %v1569
    %v1573 = vrsqrt.pop %v1397
    %v1574 = vmul.f32 %v1397, %v1573
    %vm1575 = vcmp.eq.f32.partialorder %v1397, inf
    %v1576 = vsel %vm1575, %v1397, %v1574
    %vm1577 = vcmp.eq.f32.partialorder %v1397, 0.0
    %v1578 = vand.u32 %v1397, 2147483648
    %v1579 = vsel %vm1577, %v1578, %v1576
    %v1580 = vrsqrt.pop %v1398
    %v1581 = vmul.f32 %v1398, %v1580
    %vm1582 = vcmp.eq.f32.partialorder %v1398, inf
    %v1583 = vsel %vm1582, %v1398, %v1581
    %vm1584 = vcmp.eq.f32.partialorder %v1398, 0.0
    %v1585 = vand.u32 %v1398, 2147483648
    %v1586 = vsel %vm1584, %v1585, %v1583
    %v1587 = vrsqrt.pop %v1399
    %v1588 = vmul.f32 %v1399, %v1587
    %vm1589 = vcmp.eq.f32.partialorder %v1399, inf
    %v1590 = vsel %vm1589, %v1399, %v1588
    %vm1591 = vcmp.eq.f32.partialorder %v1399, 0.0
    %v1592 = vand.u32 %v1399, 2147483648
    %v1593 = vsel %vm1591, %v1592, %v1590
    %v1594 = vrsqrt.pop %v1400
    %v1595 = vmul.f32 %v1400, %v1594
    %vm1596 = vcmp.eq.f32.partialorder %v1400, inf
    %v1597 = vsel %vm1596, %v1400, %v1595
    %vm1598 = vcmp.eq.f32.partialorder %v1400, 0.0
    %v1599 = vand.u32 %v1400, 2147483648
    %v1600 = vsel %vm1598, %v1599, %v1597
    %v1601 = vrsqrt.pop %v1401
    %v1602 = vmul.f32 %v1401, %v1601
    %vm1603 = vcmp.eq.f32.partialorder %v1401, inf
    %v1604 = vsel %vm1603, %v1401, %v1602
    %vm1605 = vcmp.eq.f32.partialorder %v1401, 0.0
    %v1606 = vand.u32 %v1401, 2147483648
    %v1607 = vsel %vm1605, %v1606, %v1604
    %v1608 = vrsqrt.pop %v1402
    %v1609 = vmul.f32 %v1402, %v1608
    %vm1610 = vcmp.eq.f32.partialorder %v1402, inf
    %v1611 = vsel %vm1610, %v1402, %v1609
    %vm1612 = vcmp.eq.f32.partialorder %v1402, 0.0
    %v1613 = vand.u32 %v1402, 2147483648
    %v1614 = vsel %vm1612, %v1613, %v1611
    %v1615 = vrsqrt.pop %v1403
    %v1616 = vmul.f32 %v1403, %v1615
    %vm1617 = vcmp.eq.f32.partialorder %v1403, inf
    %v1618 = vsel %vm1617, %v1403, %v1616
    %vm1619 = vcmp.eq.f32.partialorder %v1403, 0.0
    %v1620 = vand.u32 %v1403, 2147483648
    %v1621 = vsel %vm1619, %v1620, %v1618
    %v1622 = vrsqrt.pop %v1404
    %v1623 = vmul.f32 %v1404, %v1622
    %vm1624 = vcmp.eq.f32.partialorder %v1404, inf
    %v1625 = vsel %vm1624, %v1404, %v1623
    %vm1626 = vcmp.eq.f32.partialorder %v1404, 0.0
    %v1627 = vand.u32 %v1404, 2147483648
    %v1628 = vsel %vm1626, %v1627, %v1625
    %v1629 = vsub.f32 1.0, %v1373
    %v1630 = vsub.f32 1.0, %v1374
    %v1631 = vsub.f32 1.0, %v1375
    %v1632 = vsub.f32 1.0, %v1376
    %v1633 = vsub.f32 1.0, %v1377
    %v1634 = vsub.f32 1.0, %v1378
    %v1635 = vsub.f32 1.0, %v1379
    %v1636 = vsub.f32 1.0, %v1380
    %v1637 = vsub.f32 1.0, %v1381
    %v1638 = vsub.f32 1.0, %v1382
    %v1639 = vsub.f32 1.0, %v1383
    %v1640 = vsub.f32 1.0, %v1384
    %v1641 = vsub.f32 1.0, %v1385
    %v1642 = vsub.f32 1.0, %v1386
    %v1643 = vsub.f32 1.0, %v1387
    %v1644 = vsub.f32 1.0, %v1388
    %v1645 = vsub.f32 1.0, %v1389
    %v1646 = vsub.f32 1.0, %v1390
    %v1647 = vsub.f32 1.0, %v1391
    %v1648 = vsub.f32 1.0, %v1392
    %v1649 = vsub.f32 1.0, %v1393
    %v1650 = vsub.f32 1.0, %v1394
    %v1651 = vsub.f32 1.0, %v1395
    %v1652 = vsub.f32 1.0, %v1396
    %v1653 = vsub.f32 1.0, %v1397
    %v1654 = vsub.f32 1.0, %v1398
    %v1655 = vsub.f32 1.0, %v1399
    %v1656 = vsub.f32 1.0, %v1400
    %v1657 = vsub.f32 1.0, %v1401
    %v1658 = vsub.f32 1.0, %v1402
    %v1659 = vsub.f32 1.0, %v1403
    %v1660 = vsub.f32 1.0, %v1404
    %v1661 = vrsqrt.pop %v1629
    %v1662 = vmul.f32 %v1629, %v1661
    %vm1663 = vcmp.eq.f32.partialorder %v1629, inf
    %v1664 = vsel %vm1663, %v1629, %v1662
    %vm1665 = vcmp.eq.f32.partialorder %v1629, 0.0
    %v1666 = vand.u32 %v1629, 2147483648
    %v1667 = vsel %vm1665, %v1666, %v1664
    %v1668 = vrsqrt.pop %v1630
    %v1669 = vmul.f32 %v1630, %v1668
    %vm1670 = vcmp.eq.f32.partialorder %v1630, inf
    %v1671 = vsel %vm1670, %v1630, %v1669
    %vm1672 = vcmp.eq.f32.partialorder %v1630, 0.0
    %v1673 = vand.u32 %v1630, 2147483648
    %v1674 = vsel %vm1672, %v1673, %v1671
    %v1675 = vrsqrt.pop %v1631
    %v1676 = vmul.f32 %v1631, %v1675
    %vm1677 = vcmp.eq.f32.partialorder %v1631, inf
    %v1678 = vsel %vm1677, %v1631, %v1676
    %vm1679 = vcmp.eq.f32.partialorder %v1631, 0.0
    %v1680 = vand.u32 %v1631, 2147483648
    %v1681 = vsel %vm1679, %v1680, %v1678
    %v1682 = vrsqrt.pop %v1632
    %v1683 = vmul.f32 %v1632, %v1682
    %vm1684 = vcmp.eq.f32.partialorder %v1632, inf
    %v1685 = vsel %vm1684, %v1632, %v1683
    %vm1686 = vcmp.eq.f32.partialorder %v1632, 0.0
    %v1687 = vand.u32 %v1632, 2147483648
    %v1688 = vsel %vm1686, %v1687, %v1685
    %v1689 = vrsqrt.pop %v1633
    %v1690 = vmul.f32 %v1633, %v1689
    %vm1691 = vcmp.eq.f32.partialorder %v1633, inf
    %v1692 = vsel %vm1691, %v1633, %v1690
    %vm1693 = vcmp.eq.f32.partialorder %v1633, 0.0
    %v1694 = vand.u32 %v1633, 2147483648
    %v1695 = vsel %vm1693, %v1694, %v1692
    %v1696 = vrsqrt.pop %v1634
    %v1697 = vmul.f32 %v1634, %v1696
    %vm1698 = vcmp.eq.f32.partialorder %v1634, inf
    %v1699 = vsel %vm1698, %v1634, %v1697
    %vm1700 = vcmp.eq.f32.partialorder %v1634, 0.0
    %v1701 = vand.u32 %v1634, 2147483648
    %v1702 = vsel %vm1700, %v1701, %v1699
    %v1703 = vrsqrt.pop %v1635
    %v1704 = vmul.f32 %v1635, %v1703
    %vm1705 = vcmp.eq.f32.partialorder %v1635, inf
    %v1706 = vsel %vm1705, %v1635, %v1704
    %vm1707 = vcmp.eq.f32.partialorder %v1635, 0.0
    %v1708 = vand.u32 %v1635, 2147483648
    %v1709 = vsel %vm1707, %v1708, %v1706
    %v1710 = vrsqrt.pop %v1636
    %v1711 = vmul.f32 %v1636, %v1710
    %vm1712 = vcmp.eq.f32.partialorder %v1636, inf
    %v1713 = vsel %vm1712, %v1636, %v1711
    %vm1714 = vcmp.eq.f32.partialorder %v1636, 0.0
    %v1715 = vand.u32 %v1636, 2147483648
    %v1716 = vsel %vm1714, %v1715, %v1713
    %v1717 = vrsqrt.pop %v1637
    %v1718 = vmul.f32 %v1637, %v1717
    %vm1719 = vcmp.eq.f32.partialorder %v1637, inf
    %v1720 = vsel %vm1719, %v1637, %v1718
    %vm1721 = vcmp.eq.f32.partialorder %v1637, 0.0
    %v1722 = vand.u32 %v1637, 2147483648
    %v1723 = vsel %vm1721, %v1722, %v1720
    %v1724 = vrsqrt.pop %v1638
    %v1725 = vmul.f32 %v1638, %v1724
    %vm1726 = vcmp.eq.f32.partialorder %v1638, inf
    %v1727 = vsel %vm1726, %v1638, %v1725
    %vm1728 = vcmp.eq.f32.partialorder %v1638, 0.0
    %v1729 = vand.u32 %v1638, 2147483648
    %v1730 = vsel %vm1728, %v1729, %v1727
    %v1731 = vrsqrt.pop %v1639
    %v1732 = vmul.f32 %v1639, %v1731
    %vm1733 = vcmp.eq.f32.partialorder %v1639, inf
    %v1734 = vsel %vm1733, %v1639, %v1732
    %vm1735 = vcmp.eq.f32.partialorder %v1639, 0.0
    %v1736 = vand.u32 %v1639, 2147483648
    %v1737 = vsel %vm1735, %v1736, %v1734
    %v1738 = vrsqrt.pop %v1640
    %v1739 = vmul.f32 %v1640, %v1738
    %vm1740 = vcmp.eq.f32.partialorder %v1640, inf
    %v1741 = vsel %vm1740, %v1640, %v1739
    %vm1742 = vcmp.eq.f32.partialorder %v1640, 0.0
    %v1743 = vand.u32 %v1640, 2147483648
    %v1744 = vsel %vm1742, %v1743, %v1741
    %v1745 = vrsqrt.pop %v1641
    %v1746 = vmul.f32 %v1641, %v1745
    %vm1747 = vcmp.eq.f32.partialorder %v1641, inf
    %v1748 = vsel %vm1747, %v1641, %v1746
    %vm1749 = vcmp.eq.f32.partialorder %v1641, 0.0
    %v1750 = vand.u32 %v1641, 2147483648
    %v1751 = vsel %vm1749, %v1750, %v1748
    %v1752 = vrsqrt.pop %v1642
    %v1753 = vmul.f32 %v1642, %v1752
    %vm1754 = vcmp.eq.f32.partialorder %v1642, inf
    %v1755 = vsel %vm1754, %v1642, %v1753
    %vm1756 = vcmp.eq.f32.partialorder %v1642, 0.0
    %v1757 = vand.u32 %v1642, 2147483648
    %v1758 = vsel %vm1756, %v1757, %v1755
    %v1759 = vrsqrt.pop %v1643
    %v1760 = vmul.f32 %v1643, %v1759
    %vm1761 = vcmp.eq.f32.partialorder %v1643, inf
    %v1762 = vsel %vm1761, %v1643, %v1760
    %vm1763 = vcmp.eq.f32.partialorder %v1643, 0.0
    %v1764 = vand.u32 %v1643, 2147483648
    %v1765 = vsel %vm1763, %v1764, %v1762
    %v1766 = vrsqrt.pop %v1644
    %v1767 = vmul.f32 %v1644, %v1766
    %vm1768 = vcmp.eq.f32.partialorder %v1644, inf
    %v1769 = vsel %vm1768, %v1644, %v1767
    %vm1770 = vcmp.eq.f32.partialorder %v1644, 0.0
    %v1771 = vand.u32 %v1644, 2147483648
    %v1772 = vsel %vm1770, %v1771, %v1769
    %v1773 = vrsqrt.pop %v1645
    %v1774 = vmul.f32 %v1645, %v1773
    %vm1775 = vcmp.eq.f32.partialorder %v1645, inf
    %v1776 = vsel %vm1775, %v1645, %v1774
    %vm1777 = vcmp.eq.f32.partialorder %v1645, 0.0
    %v1778 = vand.u32 %v1645, 2147483648
    %v1779 = vsel %vm1777, %v1778, %v1776
    %v1780 = vrsqrt.pop %v1646
    %v1781 = vmul.f32 %v1646, %v1780
    %vm1782 = vcmp.eq.f32.partialorder %v1646, inf
    %v1783 = vsel %vm1782, %v1646, %v1781
    %vm1784 = vcmp.eq.f32.partialorder %v1646, 0.0
    %v1785 = vand.u32 %v1646, 2147483648
    %v1786 = vsel %vm1784, %v1785, %v1783
    %v1787 = vrsqrt.pop %v1647
    %v1788 = vmul.f32 %v1647, %v1787
    %vm1789 = vcmp.eq.f32.partialorder %v1647, inf
    %v1790 = vsel %vm1789, %v1647, %v1788
    %vm1791 = vcmp.eq.f32.partialorder %v1647, 0.0
    %v1792 = vand.u32 %v1647, 2147483648
    %v1793 = vsel %vm1791, %v1792, %v1790
    %v1794 = vrsqrt.pop %v1648
    %v1795 = vmul.f32 %v1648, %v1794
    %vm1796 = vcmp.eq.f32.partialorder %v1648, inf
    %v1797 = vsel %vm1796, %v1648, %v1795
    %vm1798 = vcmp.eq.f32.partialorder %v1648, 0.0
    %v1799 = vand.u32 %v1648, 2147483648
    %v1800 = vsel %vm1798, %v1799, %v1797
    %v1801 = vrsqrt.pop %v1649
    %v1802 = vmul.f32 %v1649, %v1801
    %vm1803 = vcmp.eq.f32.partialorder %v1649, inf
    %v1804 = vsel %vm1803, %v1649, %v1802
    %vm1805 = vcmp.eq.f32.partialorder %v1649, 0.0
    %v1806 = vand.u32 %v1649, 2147483648
    %v1807 = vsel %vm1805, %v1806, %v1804
    %v1808 = vrsqrt.pop %v1650
    %v1809 = vmul.f32 %v1650, %v1808
    %vm1810 = vcmp.eq.f32.partialorder %v1650, inf
    %v1811 = vsel %vm1810, %v1650, %v1809
    %vm1812 = vcmp.eq.f32.partialorder %v1650, 0.0
    %v1813 = vand.u32 %v1650, 2147483648
    %v1814 = vsel %vm1812, %v1813, %v1811
    %v1815 = vrsqrt.pop %v1651
    %v1816 = vmul.f32 %v1651, %v1815
    %vm1817 = vcmp.eq.f32.partialorder %v1651, inf
    %v1818 = vsel %vm1817, %v1651, %v1816
    %vm1819 = vcmp.eq.f32.partialorder %v1651, 0.0
    %v1820 = vand.u32 %v1651, 2147483648
    %v1821 = vsel %vm1819, %v1820, %v1818
    %v1822 = vrsqrt.pop %v1652
    %v1823 = vmul.f32 %v1652, %v1822
    %vm1824 = vcmp.eq.f32.partialorder %v1652, inf
    %v1825 = vsel %vm1824, %v1652, %v1823
    %vm1826 = vcmp.eq.f32.partialorder %v1652, 0.0
    %v1827 = vand.u32 %v1652, 2147483648
    %v1828 = vsel %vm1826, %v1827, %v1825
    %v1829 = vrsqrt.pop %v1653
    %v1830 = vmul.f32 %v1653, %v1829
    %vm1831 = vcmp.eq.f32.partialorder %v1653, inf
    %v1832 = vsel %vm1831, %v1653, %v1830
    %vm1833 = vcmp.eq.f32.partialorder %v1653, 0.0
    %v1834 = vand.u32 %v1653, 2147483648
    %v1835 = vsel %vm1833, %v1834, %v1832
    %v1836 = vrsqrt.pop %v1654
    %v1837 = vmul.f32 %v1654, %v1836
    %vm1838 = vcmp.eq.f32.partialorder %v1654, inf
    %v1839 = vsel %vm1838, %v1654, %v1837
    %vm1840 = vcmp.eq.f32.partialorder %v1654, 0.0
    %v1841 = vand.u32 %v1654, 2147483648
    %v1842 = vsel %vm1840, %v1841, %v1839
    %v1843 = vrsqrt.pop %v1655
    %v1844 = vmul.f32 %v1655, %v1843
    %vm1845 = vcmp.eq.f32.partialorder %v1655, inf
    %v1846 = vsel %vm1845, %v1655, %v1844
    %vm1847 = vcmp.eq.f32.partialorder %v1655, 0.0
    %v1848 = vand.u32 %v1655, 2147483648
    %v1849 = vsel %vm1847, %v1848, %v1846
    %v1850 = vrsqrt.pop %v1656
    %v1851 = vmul.f32 %v1656, %v1850
    %vm1852 = vcmp.eq.f32.partialorder %v1656, inf
    %v1853 = vsel %vm1852, %v1656, %v1851
    %vm1854 = vcmp.eq.f32.partialorder %v1656, 0.0
    %v1855 = vand.u32 %v1656, 2147483648
    %v1856 = vsel %vm1854, %v1855, %v1853
    %v1857 = vrsqrt.pop %v1657
    %v1858 = vmul.f32 %v1657, %v1857
    %vm1859 = vcmp.eq.f32.partialorder %v1657, inf
    %v1860 = vsel %vm1859, %v1657, %v1858
    %vm1861 = vcmp.eq.f32.partialorder %v1657, 0.0
    %v1862 = vand.u32 %v1657, 2147483648
    %v1863 = vsel %vm1861, %v1862, %v1860
    %v1864 = vrsqrt.pop %v1658
    %v1865 = vmul.f32 %v1658, %v1864
    %vm1866 = vcmp.eq.f32.partialorder %v1658, inf
    %v1867 = vsel %vm1866, %v1658, %v1865
    %vm1868 = vcmp.eq.f32.partialorder %v1658, 0.0
    %v1869 = vand.u32 %v1658, 2147483648
    %v1870 = vsel %vm1868, %v1869, %v1867
    %v1871 = vrsqrt.pop %v1659
    %v1872 = vmul.f32 %v1659, %v1871
    %vm1873 = vcmp.eq.f32.partialorder %v1659, inf
    %v1874 = vsel %vm1873, %v1659, %v1872
    %vm1875 = vcmp.eq.f32.partialorder %v1659, 0.0
    %v1876 = vand.u32 %v1659, 2147483648
    %v1877 = vsel %vm1875, %v1876, %v1874
    %v1878 = vrsqrt.pop %v1660
    %v1879 = vmul.f32 %v1660, %v1878
    %vm1880 = vcmp.eq.f32.partialorder %v1660, inf
    %v1881 = vsel %vm1880, %v1660, %v1879
    %vm1882 = vcmp.eq.f32.partialorder %v1660, 0.0
    %v1883 = vand.u32 %v1660, 2147483648
    %v1884 = vsel %vm1882, %v1883, %v1881
    %v1885 = vand.u32 2147483647, %v1667
    %v1886 = vand.u32 2147483647, %v1411
    %v1887 = vmin.f32 %v1885, %v1886
    %v1888 = vmax.f32 %v1885, %v1886
    %v1889 = vrcp.pop %v1888
    %v1890 = vmul.f32 %v1887, %v1889
    %v1891 = vmul.f32 %v1890, %v1890
    %v1892 = vmul.f32 0.002785687, %v1891
    %v1893 = vadd.f32 %v1892, -0.015866
    %v1894 = vmul.f32 %v1893, %v1891
    %v1895 = vadd.f32 %v1894, 0.04247222
    %v1896 = vmul.f32 %v1895, %v1891
    %v1897 = vadd.f32 %v1896, -0.074975304
    %v1898 = vmul.f32 %v1897, %v1891
    %v1899 = vadd.f32 %v1898, 0.1064488
    %v1900 = vmul.f32 %v1899, %v1891
    %v1901 = vadd.f32 %v1900, -0.14207031
    %v1902 = vmul.f32 %v1901, %v1891
    %v1903 = vadd.f32 %v1902, 0.19993454
    %v1904 = vmul.f32 %v1903, %v1891
    %v1905 = vadd.f32 %v1904, -0.33333147
    %v1906 = vmul.f32 %v1905, %v1891
    %v1907 = vmul.f32 %v1906, %v1890
    %v1908 = vadd.f32 %v1907, %v1890
    %vm1909 = vcmp.gt.f32.partialorder %v1886, %v1885
    %v1910 = vsub.f32 1.5707964, %v1908
    %v1911 = vsel %vm1909, %v1910, %v1908
    %vm1912 = vcmp.lt.f32.partialorder %v1667, 0.0
    %v1913 = vsub.f32 3.1415927, %v1911
    %v1914 = vsel %vm1912, %v1913, %v1911
    %vm1915 = vcmp.lt.s32.totalorder %v1667, 0
    %v1916 = vsel %vm1915, 3.1415927, 0.0
    %vm1917 = vcmp.eq.f32.partialorder %v1411, 0.0
    %v1918 = vsel %vm1917, %v1916, %v1914
    %vm1919 = vcmp.ne.f32.partialorder %v1667, %v1667
    %vm1920 = vcmp.ne.f32.partialorder %v1411, %v1411
    %vm1921 = vmor %vm1919, %vm1920
    %v1922 = vsel %vm1921, nan, %v1918
    %vm1923 = vcmp.lt.f32.partialorder %v1667, 0.0
    %v1924 = vsel %vm1923, 2.3561945, 0.7853982
    %vm1925 = vcmp.eq.s32.totalorder %v1885, inf
    %vm1926 = vcmp.eq.s32.totalorder %v1886, inf
    %vm1927 = vmand %vm1925, %vm1926
    %v1928 = vsel %vm1927, %v1924, %v1922
    %v1929 = vand.u32 2147483647, %v1928
    %v1930 = vand.u32 %v1411, 2147483648
    %v1931 = vor.u32 %v1929, %v1930
    %v1932 = vand.u32 2147483647, %v1674
    %v1933 = vand.u32 2147483647, %v1418
    %v1934 = vmin.f32 %v1932, %v1933
    %v1935 = vmax.f32 %v1932, %v1933
    %v1936 = vrcp.pop %v1935
    %v1937 = vmul.f32 %v1934, %v1936
    %v1938 = vmul.f32 %v1937, %v1937
    %v1939 = vmul.f32 0.002785687, %v1938
    %v1940 = vadd.f32 %v1939, -0.015866
    %v1941 = vmul.f32 %v1940, %v1938
    %v1942 = vadd.f32 %v1941, 0.04247222
    %v1943 = vmul.f32 %v1942, %v1938
    %v1944 = vadd.f32 %v1943, -0.074975304
    %v1945 = vmul.f32 %v1944, %v1938
    %v1946 = vadd.f32 %v1945, 0.1064488
    %v1947 = vmul.f32 %v1946, %v1938
    %v1948 = vadd.f32 %v1947, -0.14207031
    %v1949 = vmul.f32 %v1948, %v1938
    %v1950 = vadd.f32 %v1949, 0.19993454
    %v1951 = vmul.f32 %v1950, %v1938
    %v1952 = vadd.f32 %v1951, -0.33333147
    %v1953 = vmul.f32 %v1952, %v1938
    %v1954 = vmul.f32 %v1953, %v1937
    %v1955 = vadd.f32 %v1954, %v1937
    %vm1956 = vcmp.gt.f32.partialorder %v1933, %v1932
    %v1957 = vsub.f32 1.5707964, %v1955
    %v1958 = vsel %vm1956, %v1957, %v1955
    %vm1959 = vcmp.lt.f32.partialorder %v1674, 0.0
    %v1960 = vsub.f32 3.1415927, %v1958
    %v1961 = vsel %vm1959, %v1960, %v1958
    %vm1962 = vcmp.lt.s32.totalorder %v1674, 0
    %v1963 = vsel %vm1962, 3.1415927, 0.0
    %vm1964 = vcmp.eq.f32.partialorder %v1418, 0.0
    %v1965 = vsel %vm1964, %v1963, %v1961
    %vm1966 = vcmp.ne.f32.partialorder %v1674, %v1674
    %vm1967 = vcmp.ne.f32.partialorder %v1418, %v1418
    %vm1968 = vmor %vm1966, %vm1967
    %v1969 = vsel %vm1968, nan, %v1965
    %vm1970 = vcmp.lt.f32.partialorder %v1674, 0.0
    %v1971 = vsel %vm1970, 2.3561945, 0.7853982
    %vm1972 = vcmp.eq.s32.totalorder %v1932, inf
    %vm1973 = vcmp.eq.s32.totalorder %v1933, inf
    %vm1974 = vmand %vm1972, %vm1973
    %v1975 = vsel %vm1974, %v1971, %v1969
    %v1976 = vand.u32 2147483647, %v1975
    %v1977 = vand.u32 %v1418, 2147483648
    %v1978 = vor.u32 %v1976, %v1977
    %v1979 = vand.u32 2147483647, %v1681
    %v1980 = vand.u32 2147483647, %v1425
    %v1981 = vmin.f32 %v1979, %v1980
    %v1982 = vmax.f32 %v1979, %v1980
    %v1983 = vrcp.pop %v1982
    %v1984 = vmul.f32 %v1981, %v1983
    %v1985 = vmul.f32 %v1984, %v1984
    %v1986 = vmul.f32 0.002785687, %v1985
    %v1987 = vadd.f32 %v1986, -0.015866
    %v1988 = vmul.f32 %v1987, %v1985
    %v1989 = vadd.f32 %v1988, 0.04247222
    %v1990 = vmul.f32 %v1989, %v1985
    %v1991 = vadd.f32 %v1990, -0.074975304
    %v1992 = vmul.f32 %v1991, %v1985
    %v1993 = vadd.f32 %v1992, 0.1064488
    %v1994 = vmul.f32 %v1993, %v1985
    %v1995 = vadd.f32 %v1994, -0.14207031
    %v1996 = vmul.f32 %v1995, %v1985
    %v1997 = vadd.f32 %v1996, 0.19993454
    %v1998 = vmul.f32 %v1997, %v1985
    %v1999 = vadd.f32 %v1998, -0.33333147
    %v2000 = vmul.f32 %v1999, %v1985
    %v2001 = vmul.f32 %v2000, %v1984
    %v2002 = vadd.f32 %v2001, %v1984
    %vm2003 = vcmp.gt.f32.partialorder %v1980, %v1979
    %v2004 = vsub.f32 1.5707964, %v2002
    %v2005 = vsel %vm2003, %v2004, %v2002
    %vm2006 = vcmp.lt.f32.partialorder %v1681, 0.0
    %v2007 = vsub.f32 3.1415927, %v2005
    %v2008 = vsel %vm2006, %v2007, %v2005
    %vm2009 = vcmp.lt.s32.totalorder %v1681, 0
    %v2010 = vsel %vm2009, 3.1415927, 0.0
    %vm2011 = vcmp.eq.f32.partialorder %v1425, 0.0
    %v2012 = vsel %vm2011, %v2010, %v2008
    %vm2013 = vcmp.ne.f32.partialorder %v1681, %v1681
    %vm2014 = vcmp.ne.f32.partialorder %v1425, %v1425
    %vm2015 = vmor %vm2013, %vm2014
    %v2016 = vsel %vm2015, nan, %v2012
    %vm2017 = vcmp.lt.f32.partialorder %v1681, 0.0
    %v2018 = vsel %vm2017, 2.3561945, 0.7853982
    %vm2019 = vcmp.eq.s32.totalorder %v1979, inf
    %vm2020 = vcmp.eq.s32.totalorder %v1980, inf
    %vm2021 = vmand %vm2019, %vm2020
    %v2022 = vsel %vm2021, %v2018, %v2016
    %v2023 = vand.u32 2147483647, %v2022
    %v2024 = vand.u32 %v1425, 2147483648
    %v2025 = vor.u32 %v2023, %v2024
    %v2026 = vand.u32 2147483647, %v1688
    %v2027 = vand.u32 2147483647, %v1432
    %v2028 = vmin.f32 %v2026, %v2027
    %v2029 = vmax.f32 %v2026, %v2027
    %v2030 = vrcp.pop %v2029
    %v2031 = vmul.f32 %v2028, %v2030
    %v2032 = vmul.f32 %v2031, %v2031
    %v2033 = vmul.f32 0.002785687, %v2032
    %v2034 = vadd.f32 %v2033, -0.015866
    %v2035 = vmul.f32 %v2034, %v2032
    %v2036 = vadd.f32 %v2035, 0.04247222
    %v2037 = vmul.f32 %v2036, %v2032
    %v2038 = vadd.f32 %v2037, -0.074975304
    %v2039 = vmul.f32 %v2038, %v2032
    %v2040 = vadd.f32 %v2039, 0.1064488
    %v2041 = vmul.f32 %v2040, %v2032
    %v2042 = vadd.f32 %v2041, -0.14207031
    %v2043 = vmul.f32 %v2042, %v2032
    %v2044 = vadd.f32 %v2043, 0.19993454
    %v2045 = vmul.f32 %v2044, %v2032
    %v2046 = vadd.f32 %v2045, -0.33333147
    %v2047 = vmul.f32 %v2046, %v2032
    %v2048 = vmul.f32 %v2047, %v2031
    %v2049 = vadd.f32 %v2048, %v2031
    %vm2050 = vcmp.gt.f32.partialorder %v2027, %v2026
    %v2051 = vsub.f32 1.5707964, %v2049
    %v2052 = vsel %vm2050, %v2051, %v2049
    %vm2053 = vcmp.lt.f32.partialorder %v1688, 0.0
    %v2054 = vsub.f32 3.1415927, %v2052
    %v2055 = vsel %vm2053, %v2054, %v2052
    %vm2056 = vcmp.lt.s32.totalorder %v1688, 0
    %v2057 = vsel %vm2056, 3.1415927, 0.0
    %vm2058 = vcmp.eq.f32.partialorder %v1432, 0.0
    %v2059 = vsel %vm2058, %v2057, %v2055
    %vm2060 = vcmp.ne.f32.partialorder %v1688, %v1688
    %vm2061 = vcmp.ne.f32.partialorder %v1432, %v1432
    %vm2062 = vmor %vm2060, %vm2061
    %v2063 = vsel %vm2062, nan, %v2059
    %vm2064 = vcmp.lt.f32.partialorder %v1688, 0.0
    %v2065 = vsel %vm2064, 2.3561945, 0.7853982
    %vm2066 = vcmp.eq.s32.totalorder %v2026, inf
    %vm2067 = vcmp.eq.s32.totalorder %v2027, inf
    %vm2068 = vmand %vm2066, %vm2067
    %v2069 = vsel %vm2068, %v2065, %v2063
    %v2070 = vand.u32 2147483647, %v2069
    %v2071 = vand.u32 %v1432, 2147483648
    %v2072 = vor.u32 %v2070, %v2071
    %v2073 = vand.u32 2147483647, %v1695
    %v2074 = vand.u32 2147483647, %v1439
    %v2075 = vmin.f32 %v2073, %v2074
    %v2076 = vmax.f32 %v2073, %v2074
    %v2077 = vrcp.pop %v2076
    %v2078 = vmul.f32 %v2075, %v2077
    %v2079 = vmul.f32 %v2078, %v2078
    %v2080 = vmul.f32 0.002785687, %v2079
    %v2081 = vadd.f32 %v2080, -0.015866
    %v2082 = vmul.f32 %v2081, %v2079
    %v2083 = vadd.f32 %v2082, 0.04247222
    %v2084 = vmul.f32 %v2083, %v2079
    %v2085 = vadd.f32 %v2084, -0.074975304
    %v2086 = vmul.f32 %v2085, %v2079
    %v2087 = vadd.f32 %v2086, 0.1064488
    %v2088 = vmul.f32 %v2087, %v2079
    %v2089 = vadd.f32 %v2088, -0.14207031
    %v2090 = vmul.f32 %v2089, %v2079
    %v2091 = vadd.f32 %v2090, 0.19993454
    %v2092 = vmul.f32 %v2091, %v2079
    %v2093 = vadd.f32 %v2092, -0.33333147
    %v2094 = vmul.f32 %v2093, %v2079
    %v2095 = vmul.f32 %v2094, %v2078
    %v2096 = vadd.f32 %v2095, %v2078
    %vm2097 = vcmp.gt.f32.partialorder %v2074, %v2073
    %v2098 = vsub.f32 1.5707964, %v2096
    %v2099 = vsel %vm2097, %v2098, %v2096
    %vm2100 = vcmp.lt.f32.partialorder %v1695, 0.0
    %v2101 = vsub.f32 3.1415927, %v2099
    %v2102 = vsel %vm2100, %v2101, %v2099
    %vm2103 = vcmp.lt.s32.totalorder %v1695, 0
    %v2104 = vsel %vm2103, 3.1415927, 0.0
    %vm2105 = vcmp.eq.f32.partialorder %v1439, 0.0
    %v2106 = vsel %vm2105, %v2104, %v2102
    %vm2107 = vcmp.ne.f32.partialorder %v1695, %v1695
    %vm2108 = vcmp.ne.f32.partialorder %v1439, %v1439
    %vm2109 = vmor %vm2107, %vm2108
    %v2110 = vsel %vm2109, nan, %v2106
    %vm2111 = vcmp.lt.f32.partialorder %v1695, 0.0
    %v2112 = vsel %vm2111, 2.3561945, 0.7853982
    %vm2113 = vcmp.eq.s32.totalorder %v2073, inf
    %vm2114 = vcmp.eq.s32.totalorder %v2074, inf
    %vm2115 = vmand %vm2113, %vm2114
    %v2116 = vsel %vm2115, %v2112, %v2110
    %v2117 = vand.u32 2147483647, %v2116
    %v2118 = vand.u32 %v1439, 2147483648
    %v2119 = vor.u32 %v2117, %v2118
    %v2120 = vand.u32 2147483647, %v1702
    %v2121 = vand.u32 2147483647, %v1446
    %v2122 = vmin.f32 %v2120, %v2121
    %v2123 = vmax.f32 %v2120, %v2121
    %v2124 = vrcp.pop %v2123
    %v2125 = vmul.f32 %v2122, %v2124
    %v2126 = vmul.f32 %v2125, %v2125
    %v2127 = vmul.f32 0.002785687, %v2126
    %v2128 = vadd.f32 %v2127, -0.015866
    %v2129 = vmul.f32 %v2128, %v2126
    %v2130 = vadd.f32 %v2129, 0.04247222
    %v2131 = vmul.f32 %v2130, %v2126
    %v2132 = vadd.f32 %v2131, -0.074975304
    %v2133 = vmul.f32 %v2132, %v2126
    %v2134 = vadd.f32 %v2133, 0.1064488
    %v2135 = vmul.f32 %v2134, %v2126
    %v2136 = vadd.f32 %v2135, -0.14207031
    %v2137 = vmul.f32 %v2136, %v2126
    %v2138 = vadd.f32 %v2137, 0.19993454
    %v2139 = vmul.f32 %v2138, %v2126
    %v2140 = vadd.f32 %v2139, -0.33333147
    %v2141 = vmul.f32 %v2140, %v2126
    %v2142 = vmul.f32 %v2141, %v2125
    %v2143 = vadd.f32 %v2142, %v2125
    %vm2144 = vcmp.gt.f32.partialorder %v2121, %v2120
    %v2145 = vsub.f32 1.5707964, %v2143
    %v2146 = vsel %vm2144, %v2145, %v2143
    %vm2147 = vcmp.lt.f32.partialorder %v1702, 0.0
    %v2148 = vsub.f32 3.1415927, %v2146
    %v2149 = vsel %vm2147, %v2148, %v2146
    %vm2150 = vcmp.lt.s32.totalorder %v1702, 0
    %v2151 = vsel %vm2150, 3.1415927, 0.0
    %vm2152 = vcmp.eq.f32.partialorder %v1446, 0.0
    %v2153 = vsel %vm2152, %v2151, %v2149
    %vm2154 = vcmp.ne.f32.partialorder %v1702, %v1702
    %vm2155 = vcmp.ne.f32.partialorder %v1446, %v1446
    %vm2156 = vmor %vm2154, %vm2155
    %v2157 = vsel %vm2156, nan, %v2153
    %vm2158 = vcmp.lt.f32.partialorder %v1702, 0.0
    %v2159 = vsel %vm2158, 2.3561945, 0.7853982
    %vm2160 = vcmp.eq.s32.totalorder %v2120, inf
    %vm2161 = vcmp.eq.s32.totalorder %v2121, inf
    %vm2162 = vmand %vm2160, %vm2161
    %v2163 = vsel %vm2162, %v2159, %v2157
    %v2164 = vand.u32 2147483647, %v2163
    %v2165 = vand.u32 %v1446, 2147483648
    %v2166 = vor.u32 %v2164, %v2165
    %v2167 = vand.u32 2147483647, %v1709
    %v2168 = vand.u32 2147483647, %v1453
    %v2169 = vmin.f32 %v2167, %v2168
    %v2170 = vmax.f32 %v2167, %v2168
    %v2171 = vrcp.pop %v2170
    %v2172 = vmul.f32 %v2169, %v2171
    %v2173 = vmul.f32 %v2172, %v2172
    %v2174 = vmul.f32 0.002785687, %v2173
    %v2175 = vadd.f32 %v2174, -0.015866
    %v2176 = vmul.f32 %v2175, %v2173
    %v2177 = vadd.f32 %v2176, 0.04247222
    %v2178 = vmul.f32 %v2177, %v2173
    %v2179 = vadd.f32 %v2178, -0.074975304
    %v2180 = vmul.f32 %v2179, %v2173
    %v2181 = vadd.f32 %v2180, 0.1064488
    %v2182 = vmul.f32 %v2181, %v2173
    %v2183 = vadd.f32 %v2182, -0.14207031
    %v2184 = vmul.f32 %v2183, %v2173
    %v2185 = vadd.f32 %v2184, 0.19993454
    %v2186 = vmul.f32 %v2185, %v2173
    %v2187 = vadd.f32 %v2186, -0.33333147
    %v2188 = vmul.f32 %v2187, %v2173
    %v2189 = vmul.f32 %v2188, %v2172
    %v2190 = vadd.f32 %v2189, %v2172
    %vm2191 = vcmp.gt.f32.partialorder %v2168, %v2167
    %v2192 = vsub.f32 1.5707964, %v2190
    %v2193 = vsel %vm2191, %v2192, %v2190
    %vm2194 = vcmp.lt.f32.partialorder %v1709, 0.0
    %v2195 = vsub.f32 3.1415927, %v2193
    %v2196 = vsel %vm2194, %v2195, %v2193
    %vm2197 = vcmp.lt.s32.totalorder %v1709, 0
    %v2198 = vsel %vm2197, 3.1415927, 0.0
    %vm2199 = vcmp.eq.f32.partialorder %v1453, 0.0
    %v2200 = vsel %vm2199, %v2198, %v2196
    %vm2201 = vcmp.ne.f32.partialorder %v1709, %v1709
    %vm2202 = vcmp.ne.f32.partialorder %v1453, %v1453
    %vm2203 = vmor %vm2201, %vm2202
    %v2204 = vsel %vm2203, nan, %v2200
    %vm2205 = vcmp.lt.f32.partialorder %v1709, 0.0
    %v2206 = vsel %vm2205, 2.3561945, 0.7853982
    %vm2207 = vcmp.eq.s32.totalorder %v2167, inf
    %vm2208 = vcmp.eq.s32.totalorder %v2168, inf
    %vm2209 = vmand %vm2207, %vm2208
    %v2210 = vsel %vm2209, %v2206, %v2204
    %v2211 = vand.u32 2147483647, %v2210
    %v2212 = vand.u32 %v1453, 2147483648
    %v2213 = vor.u32 %v2211, %v2212
    %v2214 = vand.u32 2147483647, %v1716
    %v2215 = vand.u32 2147483647, %v1460
    %v2216 = vmin.f32 %v2214, %v2215
    %v2217 = vmax.f32 %v2214, %v2215
    %v2218 = vrcp.pop %v2217
    %v2219 = vmul.f32 %v2216, %v2218
    %v2220 = vmul.f32 %v2219, %v2219
    %v2221 = vmul.f32 0.002785687, %v2220
    %v2222 = vadd.f32 %v2221, -0.015866
    %v2223 = vmul.f32 %v2222, %v2220
    %v2224 = vadd.f32 %v2223, 0.04247222
    %v2225 = vmul.f32 %v2224, %v2220
    %v2226 = vadd.f32 %v2225, -0.074975304
    %v2227 = vmul.f32 %v2226, %v2220
    %v2228 = vadd.f32 %v2227, 0.1064488
    %v2229 = vmul.f32 %v2228, %v2220
    %v2230 = vadd.f32 %v2229, -0.14207031
    %v2231 = vmul.f32 %v2230, %v2220
    %v2232 = vadd.f32 %v2231, 0.19993454
    %v2233 = vmul.f32 %v2232, %v2220
    %v2234 = vadd.f32 %v2233, -0.33333147
    %v2235 = vmul.f32 %v2234, %v2220
    %v2236 = vmul.f32 %v2235, %v2219
    %v2237 = vadd.f32 %v2236, %v2219
    %vm2238 = vcmp.gt.f32.partialorder %v2215, %v2214
    %v2239 = vsub.f32 1.5707964, %v2237
    %v2240 = vsel %vm2238, %v2239, %v2237
    %vm2241 = vcmp.lt.f32.partialorder %v1716, 0.0
    %v2242 = vsub.f32 3.1415927, %v2240
    %v2243 = vsel %vm2241, %v2242, %v2240
    %vm2244 = vcmp.lt.s32.totalorder %v1716, 0
    %v2245 = vsel %vm2244, 3.1415927, 0.0
    %vm2246 = vcmp.eq.f32.partialorder %v1460, 0.0
    %v2247 = vsel %vm2246, %v2245, %v2243
    %vm2248 = vcmp.ne.f32.partialorder %v1716, %v1716
    %vm2249 = vcmp.ne.f32.partialorder %v1460, %v1460
    %vm2250 = vmor %vm2248, %vm2249
    %v2251 = vsel %vm2250, nan, %v2247
    %vm2252 = vcmp.lt.f32.partialorder %v1716, 0.0
    %v2253 = vsel %vm2252, 2.3561945, 0.7853982
    %vm2254 = vcmp.eq.s32.totalorder %v2214, inf
    %vm2255 = vcmp.eq.s32.totalorder %v2215, inf
    %vm2256 = vmand %vm2254, %vm2255
    %v2257 = vsel %vm2256, %v2253, %v2251
    %v2258 = vand.u32 2147483647, %v2257
    %v2259 = vand.u32 %v1460, 2147483648
    %v2260 = vor.u32 %v2258, %v2259
    %v2261 = vand.u32 2147483647, %v1723
    %v2262 = vand.u32 2147483647, %v1467
    %v2263 = vmin.f32 %v2261, %v2262
    %v2264 = vmax.f32 %v2261, %v2262
    %v2265 = vrcp.pop %v2264
    %v2266 = vmul.f32 %v2263, %v2265
    %v2267 = vmul.f32 %v2266, %v2266
    %v2268 = vmul.f32 0.002785687, %v2267
    %v2269 = vadd.f32 %v2268, -0.015866
    %v2270 = vmul.f32 %v2269, %v2267
    %v2271 = vadd.f32 %v2270, 0.04247222
    %v2272 = vmul.f32 %v2271, %v2267
    %v2273 = vadd.f32 %v2272, -0.074975304
    %v2274 = vmul.f32 %v2273, %v2267
    %v2275 = vadd.f32 %v2274, 0.1064488
    %v2276 = vmul.f32 %v2275, %v2267
    %v2277 = vadd.f32 %v2276, -0.14207031
    %v2278 = vmul.f32 %v2277, %v2267
    %v2279 = vadd.f32 %v2278, 0.19993454
    %v2280 = vmul.f32 %v2279, %v2267
    %v2281 = vadd.f32 %v2280, -0.33333147
    %v2282 = vmul.f32 %v2281, %v2267
    %v2283 = vmul.f32 %v2282, %v2266
    %v2284 = vadd.f32 %v2283, %v2266
    %vm2285 = vcmp.gt.f32.partialorder %v2262, %v2261
    %v2286 = vsub.f32 1.5707964, %v2284
    %v2287 = vsel %vm2285, %v2286, %v2284
    %vm2288 = vcmp.lt.f32.partialorder %v1723, 0.0
    %v2289 = vsub.f32 3.1415927, %v2287
    %v2290 = vsel %vm2288, %v2289, %v2287
    %vm2291 = vcmp.lt.s32.totalorder %v1723, 0
    %v2292 = vsel %vm2291, 3.1415927, 0.0
    %vm2293 = vcmp.eq.f32.partialorder %v1467, 0.0
    %v2294 = vsel %vm2293, %v2292, %v2290
    %vm2295 = vcmp.ne.f32.partialorder %v1723, %v1723
    %vm2296 = vcmp.ne.f32.partialorder %v1467, %v1467
    %vm2297 = vmor %vm2295, %vm2296
    %v2298 = vsel %vm2297, nan, %v2294
    %vm2299 = vcmp.lt.f32.partialorder %v1723, 0.0
    %v2300 = vsel %vm2299, 2.3561945, 0.7853982
    %vm2301 = vcmp.eq.s32.totalorder %v2261, inf
    %vm2302 = vcmp.eq.s32.totalorder %v2262, inf
    %vm2303 = vmand %vm2301, %vm2302
    %v2304 = vsel %vm2303, %v2300, %v2298
    %v2305 = vand.u32 2147483647, %v2304
    %v2306 = vand.u32 %v1467, 2147483648
    %v2307 = vor.u32 %v2305, %v2306
    %v2308 = vand.u32 2147483647, %v1730
    %v2309 = vand.u32 2147483647, %v1474
    %v2310 = vmin.f32 %v2308, %v2309
    %v2311 = vmax.f32 %v2308, %v2309
    %v2312 = vrcp.pop %v2311
    %v2313 = vmul.f32 %v2310, %v2312
    %v2314 = vmul.f32 %v2313, %v2313
    %v2315 = vmul.f32 0.002785687, %v2314
    %v2316 = vadd.f32 %v2315, -0.015866
    %v2317 = vmul.f32 %v2316, %v2314
    %v2318 = vadd.f32 %v2317, 0.04247222
    %v2319 = vmul.f32 %v2318, %v2314
    %v2320 = vadd.f32 %v2319, -0.074975304
    %v2321 = vmul.f32 %v2320, %v2314
    %v2322 = vadd.f32 %v2321, 0.1064488
    %v2323 = vmul.f32 %v2322, %v2314
    %v2324 = vadd.f32 %v2323, -0.14207031
    %v2325 = vmul.f32 %v2324, %v2314
    %v2326 = vadd.f32 %v2325, 0.19993454
    %v2327 = vmul.f32 %v2326, %v2314
    %v2328 = vadd.f32 %v2327, -0.33333147
    %v2329 = vmul.f32 %v2328, %v2314
    %v2330 = vmul.f32 %v2329, %v2313
    %v2331 = vadd.f32 %v2330, %v2313
    %vm2332 = vcmp.gt.f32.partialorder %v2309, %v2308
    %v2333 = vsub.f32 1.5707964, %v2331
    %v2334 = vsel %vm2332, %v2333, %v2331
    %vm2335 = vcmp.lt.f32.partialorder %v1730, 0.0
    %v2336 = vsub.f32 3.1415927, %v2334
    %v2337 = vsel %vm2335, %v2336, %v2334
    %vm2338 = vcmp.lt.s32.totalorder %v1730, 0
    %v2339 = vsel %vm2338, 3.1415927, 0.0
    %vm2340 = vcmp.eq.f32.partialorder %v1474, 0.0
    %v2341 = vsel %vm2340, %v2339, %v2337
    %vm2342 = vcmp.ne.f32.partialorder %v1730, %v1730
    %vm2343 = vcmp.ne.f32.partialorder %v1474, %v1474
    %vm2344 = vmor %vm2342, %vm2343
    %v2345 = vsel %vm2344, nan, %v2341
    %vm2346 = vcmp.lt.f32.partialorder %v1730, 0.0
    %v2347 = vsel %vm2346, 2.3561945, 0.7853982
    %vm2348 = vcmp.eq.s32.totalorder %v2308, inf
    %vm2349 = vcmp.eq.s32.totalorder %v2309, inf
    %vm2350 = vmand %vm2348, %vm2349
    %v2351 = vsel %vm2350, %v2347, %v2345
    %v2352 = vand.u32 2147483647, %v2351
    %v2353 = vand.u32 %v1474, 2147483648
    %v2354 = vor.u32 %v2352, %v2353
    %v2355 = vand.u32 2147483647, %v1737
    %v2356 = vand.u32 2147483647, %v1481
    %v2357 = vmin.f32 %v2355, %v2356
    %v2358 = vmax.f32 %v2355, %v2356
    %v2359 = vrcp.pop %v2358
    %v2360 = vmul.f32 %v2357, %v2359
    %v2361 = vmul.f32 %v2360, %v2360
    %v2362 = vmul.f32 0.002785687, %v2361
    %v2363 = vadd.f32 %v2362, -0.015866
    %v2364 = vmul.f32 %v2363, %v2361
    %v2365 = vadd.f32 %v2364, 0.04247222
    %v2366 = vmul.f32 %v2365, %v2361
    %v2367 = vadd.f32 %v2366, -0.074975304
    %v2368 = vmul.f32 %v2367, %v2361
    %v2369 = vadd.f32 %v2368, 0.1064488
    %v2370 = vmul.f32 %v2369, %v2361
    %v2371 = vadd.f32 %v2370, -0.14207031
    %v2372 = vmul.f32 %v2371, %v2361
    %v2373 = vadd.f32 %v2372, 0.19993454
    %v2374 = vmul.f32 %v2373, %v2361
    %v2375 = vadd.f32 %v2374, -0.33333147
    %v2376 = vmul.f32 %v2375, %v2361
    %v2377 = vmul.f32 %v2376, %v2360
    %v2378 = vadd.f32 %v2377, %v2360
    %vm2379 = vcmp.gt.f32.partialorder %v2356, %v2355
    %v2380 = vsub.f32 1.5707964, %v2378
    %v2381 = vsel %vm2379, %v2380, %v2378
    %vm2382 = vcmp.lt.f32.partialorder %v1737, 0.0
    %v2383 = vsub.f32 3.1415927, %v2381
    %v2384 = vsel %vm2382, %v2383, %v2381
    %vm2385 = vcmp.lt.s32.totalorder %v1737, 0
    %v2386 = vsel %vm2385, 3.1415927, 0.0
    %vm2387 = vcmp.eq.f32.partialorder %v1481, 0.0
    %v2388 = vsel %vm2387, %v2386, %v2384
    %vm2389 = vcmp.ne.f32.partialorder %v1737, %v1737
    %vm2390 = vcmp.ne.f32.partialorder %v1481, %v1481
    %vm2391 = vmor %vm2389, %vm2390
    %v2392 = vsel %vm2391, nan, %v2388
    %vm2393 = vcmp.lt.f32.partialorder %v1737, 0.0
    %v2394 = vsel %vm2393, 2.3561945, 0.7853982
    %vm2395 = vcmp.eq.s32.totalorder %v2355, inf
    %vm2396 = vcmp.eq.s32.totalorder %v2356, inf
    %vm2397 = vmand %vm2395, %vm2396
    %v2398 = vsel %vm2397, %v2394, %v2392
    %v2399 = vand.u32 2147483647, %v2398
    %v2400 = vand.u32 %v1481, 2147483648
    %v2401 = vor.u32 %v2399, %v2400
    %v2402 = vand.u32 2147483647, %v1744
    %v2403 = vand.u32 2147483647, %v1488
    %v2404 = vmin.f32 %v2402, %v2403
    %v2405 = vmax.f32 %v2402, %v2403
    %v2406 = vrcp.pop %v2405
    %v2407 = vmul.f32 %v2404, %v2406
    %v2408 = vmul.f32 %v2407, %v2407
    %v2409 = vmul.f32 0.002785687, %v2408
    %v2410 = vadd.f32 %v2409, -0.015866
    %v2411 = vmul.f32 %v2410, %v2408
    %v2412 = vadd.f32 %v2411, 0.04247222
    %v2413 = vmul.f32 %v2412, %v2408
    %v2414 = vadd.f32 %v2413, -0.074975304
    %v2415 = vmul.f32 %v2414, %v2408
    %v2416 = vadd.f32 %v2415, 0.1064488
    %v2417 = vmul.f32 %v2416, %v2408
    %v2418 = vadd.f32 %v2417, -0.14207031
    %v2419 = vmul.f32 %v2418, %v2408
    %v2420 = vadd.f32 %v2419, 0.19993454
    %v2421 = vmul.f32 %v2420, %v2408
    %v2422 = vadd.f32 %v2421, -0.33333147
    %v2423 = vmul.f32 %v2422, %v2408
    %v2424 = vmul.f32 %v2423, %v2407
    %v2425 = vadd.f32 %v2424, %v2407
    %vm2426 = vcmp.gt.f32.partialorder %v2403, %v2402
    %v2427 = vsub.f32 1.5707964, %v2425
    %v2428 = vsel %vm2426, %v2427, %v2425
    %vm2429 = vcmp.lt.f32.partialorder %v1744, 0.0
    %v2430 = vsub.f32 3.1415927, %v2428
    %v2431 = vsel %vm2429, %v2430, %v2428
    %vm2432 = vcmp.lt.s32.totalorder %v1744, 0
    %v2433 = vsel %vm2432, 3.1415927, 0.0
    %vm2434 = vcmp.eq.f32.partialorder %v1488, 0.0
    %v2435 = vsel %vm2434, %v2433, %v2431
    %vm2436 = vcmp.ne.f32.partialorder %v1744, %v1744
    %vm2437 = vcmp.ne.f32.partialorder %v1488, %v1488
    %vm2438 = vmor %vm2436, %vm2437
    %v2439 = vsel %vm2438, nan, %v2435
    %vm2440 = vcmp.lt.f32.partialorder %v1744, 0.0
    %v2441 = vsel %vm2440, 2.3561945, 0.7853982
    %vm2442 = vcmp.eq.s32.totalorder %v2402, inf
    %vm2443 = vcmp.eq.s32.totalorder %v2403, inf
    %vm2444 = vmand %vm2442, %vm2443
    %v2445 = vsel %vm2444, %v2441, %v2439
    %v2446 = vand.u32 2147483647, %v2445
    %v2447 = vand.u32 %v1488, 2147483648
    %v2448 = vor.u32 %v2446, %v2447
    %v2449 = vand.u32 2147483647, %v1751
    %v2450 = vand.u32 2147483647, %v1495
    %v2451 = vmin.f32 %v2449, %v2450
    %v2452 = vmax.f32 %v2449, %v2450
    %v2453 = vrcp.pop %v2452
    %v2454 = vmul.f32 %v2451, %v2453
    %v2455 = vmul.f32 %v2454, %v2454
    %v2456 = vmul.f32 0.002785687, %v2455
    %v2457 = vadd.f32 %v2456, -0.015866
    %v2458 = vmul.f32 %v2457, %v2455
    %v2459 = vadd.f32 %v2458, 0.04247222
    %v2460 = vmul.f32 %v2459, %v2455
    %v2461 = vadd.f32 %v2460, -0.074975304
    %v2462 = vmul.f32 %v2461, %v2455
    %v2463 = vadd.f32 %v2462, 0.1064488
    %v2464 = vmul.f32 %v2463, %v2455
    %v2465 = vadd.f32 %v2464, -0.14207031
    %v2466 = vmul.f32 %v2465, %v2455
    %v2467 = vadd.f32 %v2466, 0.19993454
    %v2468 = vmul.f32 %v2467, %v2455
    %v2469 = vadd.f32 %v2468, -0.33333147
    %v2470 = vmul.f32 %v2469, %v2455
    %v2471 = vmul.f32 %v2470, %v2454
    %v2472 = vadd.f32 %v2471, %v2454
    %vm2473 = vcmp.gt.f32.partialorder %v2450, %v2449
    %v2474 = vsub.f32 1.5707964, %v2472
    %v2475 = vsel %vm2473, %v2474, %v2472
    %vm2476 = vcmp.lt.f32.partialorder %v1751, 0.0
    %v2477 = vsub.f32 3.1415927, %v2475
    %v2478 = vsel %vm2476, %v2477, %v2475
    %vm2479 = vcmp.lt.s32.totalorder %v1751, 0
    %v2480 = vsel %vm2479, 3.1415927, 0.0
    %vm2481 = vcmp.eq.f32.partialorder %v1495, 0.0
    %v2482 = vsel %vm2481, %v2480, %v2478
    %vm2483 = vcmp.ne.f32.partialorder %v1751, %v1751
    %vm2484 = vcmp.ne.f32.partialorder %v1495, %v1495
    %vm2485 = vmor %vm2483, %vm2484
    %v2486 = vsel %vm2485, nan, %v2482
    %vm2487 = vcmp.lt.f32.partialorder %v1751, 0.0
    %v2488 = vsel %vm2487, 2.3561945, 0.7853982
    %vm2489 = vcmp.eq.s32.totalorder %v2449, inf
    %vm2490 = vcmp.eq.s32.totalorder %v2450, inf
    %vm2491 = vmand %vm2489, %vm2490
    %v2492 = vsel %vm2491, %v2488, %v2486
    %v2493 = vand.u32 2147483647, %v2492
    %v2494 = vand.u32 %v1495, 2147483648
    %v2495 = vor.u32 %v2493, %v2494
    %v2496 = vand.u32 2147483647, %v1758
    %v2497 = vand.u32 2147483647, %v1502
    %v2498 = vmin.f32 %v2496, %v2497
    %v2499 = vmax.f32 %v2496, %v2497
    %v2500 = vrcp.pop %v2499
    %v2501 = vmul.f32 %v2498, %v2500
    %v2502 = vmul.f32 %v2501, %v2501
    %v2503 = vmul.f32 0.002785687, %v2502
    %v2504 = vadd.f32 %v2503, -0.015866
    %v2505 = vmul.f32 %v2504, %v2502
    %v2506 = vadd.f32 %v2505, 0.04247222
    %v2507 = vmul.f32 %v2506, %v2502
    %v2508 = vadd.f32 %v2507, -0.074975304
    %v2509 = vmul.f32 %v2508, %v2502
    %v2510 = vadd.f32 %v2509, 0.1064488
    %v2511 = vmul.f32 %v2510, %v2502
    %v2512 = vadd.f32 %v2511, -0.14207031
    %v2513 = vmul.f32 %v2512, %v2502
    %v2514 = vadd.f32 %v2513, 0.19993454
    %v2515 = vmul.f32 %v2514, %v2502
    %v2516 = vadd.f32 %v2515, -0.33333147
    %v2517 = vmul.f32 %v2516, %v2502
    %v2518 = vmul.f32 %v2517, %v2501
    %v2519 = vadd.f32 %v2518, %v2501
    %vm2520 = vcmp.gt.f32.partialorder %v2497, %v2496
    %v2521 = vsub.f32 1.5707964, %v2519
    %v2522 = vsel %vm2520, %v2521, %v2519
    %vm2523 = vcmp.lt.f32.partialorder %v1758, 0.0
    %v2524 = vsub.f32 3.1415927, %v2522
    %v2525 = vsel %vm2523, %v2524, %v2522
    %vm2526 = vcmp.lt.s32.totalorder %v1758, 0
    %v2527 = vsel %vm2526, 3.1415927, 0.0
    %vm2528 = vcmp.eq.f32.partialorder %v1502, 0.0
    %v2529 = vsel %vm2528, %v2527, %v2525
    %vm2530 = vcmp.ne.f32.partialorder %v1758, %v1758
    %vm2531 = vcmp.ne.f32.partialorder %v1502, %v1502
    %vm2532 = vmor %vm2530, %vm2531
    %v2533 = vsel %vm2532, nan, %v2529
    %vm2534 = vcmp.lt.f32.partialorder %v1758, 0.0
    %v2535 = vsel %vm2534, 2.3561945, 0.7853982
    %vm2536 = vcmp.eq.s32.totalorder %v2496, inf
    %vm2537 = vcmp.eq.s32.totalorder %v2497, inf
    %vm2538 = vmand %vm2536, %vm2537
    %v2539 = vsel %vm2538, %v2535, %v2533
    %v2540 = vand.u32 2147483647, %v2539
    %v2541 = vand.u32 %v1502, 2147483648
    %v2542 = vor.u32 %v2540, %v2541
    %v2543 = vand.u32 2147483647, %v1765
    %v2544 = vand.u32 2147483647, %v1509
    %v2545 = vmin.f32 %v2543, %v2544
    %v2546 = vmax.f32 %v2543, %v2544
    %v2547 = vrcp.pop %v2546
    %v2548 = vmul.f32 %v2545, %v2547
    %v2549 = vmul.f32 %v2548, %v2548
    %v2550 = vmul.f32 0.002785687, %v2549
    %v2551 = vadd.f32 %v2550, -0.015866
    %v2552 = vmul.f32 %v2551, %v2549
    %v2553 = vadd.f32 %v2552, 0.04247222
    %v2554 = vmul.f32 %v2553, %v2549
    %v2555 = vadd.f32 %v2554, -0.074975304
    %v2556 = vmul.f32 %v2555, %v2549
    %v2557 = vadd.f32 %v2556, 0.1064488
    %v2558 = vmul.f32 %v2557, %v2549
    %v2559 = vadd.f32 %v2558, -0.14207031
    %v2560 = vmul.f32 %v2559, %v2549
    %v2561 = vadd.f32 %v2560, 0.19993454
    %v2562 = vmul.f32 %v2561, %v2549
    %v2563 = vadd.f32 %v2562, -0.33333147
    %v2564 = vmul.f32 %v2563, %v2549
    %v2565 = vmul.f32 %v2564, %v2548
    %v2566 = vadd.f32 %v2565, %v2548
    %vm2567 = vcmp.gt.f32.partialorder %v2544, %v2543
    %v2568 = vsub.f32 1.5707964, %v2566
    %v2569 = vsel %vm2567, %v2568, %v2566
    %vm2570 = vcmp.lt.f32.partialorder %v1765, 0.0
    %v2571 = vsub.f32 3.1415927, %v2569
    %v2572 = vsel %vm2570, %v2571, %v2569
    %vm2573 = vcmp.lt.s32.totalorder %v1765, 0
    %v2574 = vsel %vm2573, 3.1415927, 0.0
    %vm2575 = vcmp.eq.f32.partialorder %v1509, 0.0
    %v2576 = vsel %vm2575, %v2574, %v2572
    %vm2577 = vcmp.ne.f32.partialorder %v1765, %v1765
    %vm2578 = vcmp.ne.f32.partialorder %v1509, %v1509
    %vm2579 = vmor %vm2577, %vm2578
    %v2580 = vsel %vm2579, nan, %v2576
    %vm2581 = vcmp.lt.f32.partialorder %v1765, 0.0
    %v2582 = vsel %vm2581, 2.3561945, 0.7853982
    %vm2583 = vcmp.eq.s32.totalorder %v2543, inf
    %vm2584 = vcmp.eq.s32.totalorder %v2544, inf
    %vm2585 = vmand %vm2583, %vm2584
    %v2586 = vsel %vm2585, %v2582, %v2580
    %v2587 = vand.u32 2147483647, %v2586
    %v2588 = vand.u32 %v1509, 2147483648
    %v2589 = vor.u32 %v2587, %v2588
    %v2590 = vand.u32 2147483647, %v1772
    %v2591 = vand.u32 2147483647, %v1516
    %v2592 = vmin.f32 %v2590, %v2591
    %v2593 = vmax.f32 %v2590, %v2591
    %v2594 = vrcp.pop %v2593
    %v2595 = vmul.f32 %v2592, %v2594
    %v2596 = vmul.f32 %v2595, %v2595
    %v2597 = vmul.f32 0.002785687, %v2596
    %v2598 = vadd.f32 %v2597, -0.015866
    %v2599 = vmul.f32 %v2598, %v2596
    %v2600 = vadd.f32 %v2599, 0.04247222
    %v2601 = vmul.f32 %v2600, %v2596
    %v2602 = vadd.f32 %v2601, -0.074975304
    %v2603 = vmul.f32 %v2602, %v2596
    %v2604 = vadd.f32 %v2603, 0.1064488
    %v2605 = vmul.f32 %v2604, %v2596
    %v2606 = vadd.f32 %v2605, -0.14207031
    %v2607 = vmul.f32 %v2606, %v2596
    %v2608 = vadd.f32 %v2607, 0.19993454
    %v2609 = vmul.f32 %v2608, %v2596
    %v2610 = vadd.f32 %v2609, -0.33333147
    %v2611 = vmul.f32 %v2610, %v2596
    %v2612 = vmul.f32 %v2611, %v2595
    %v2613 = vadd.f32 %v2612, %v2595
    %vm2614 = vcmp.gt.f32.partialorder %v2591, %v2590
    %v2615 = vsub.f32 1.5707964, %v2613
    %v2616 = vsel %vm2614, %v2615, %v2613
    %vm2617 = vcmp.lt.f32.partialorder %v1772, 0.0
    %v2618 = vsub.f32 3.1415927, %v2616
    %v2619 = vsel %vm2617, %v2618, %v2616
    %vm2620 = vcmp.lt.s32.totalorder %v1772, 0
    %v2621 = vsel %vm2620, 3.1415927, 0.0
    %vm2622 = vcmp.eq.f32.partialorder %v1516, 0.0
    %v2623 = vsel %vm2622, %v2621, %v2619
    %vm2624 = vcmp.ne.f32.partialorder %v1772, %v1772
    %vm2625 = vcmp.ne.f32.partialorder %v1516, %v1516
    %vm2626 = vmor %vm2624, %vm2625
    %v2627 = vsel %vm2626, nan, %v2623
    %vm2628 = vcmp.lt.f32.partialorder %v1772, 0.0
    %v2629 = vsel %vm2628, 2.3561945, 0.7853982
    %vm2630 = vcmp.eq.s32.totalorder %v2590, inf
    %vm2631 = vcmp.eq.s32.totalorder %v2591, inf
    %vm2632 = vmand %vm2630, %vm2631
    %v2633 = vsel %vm2632, %v2629, %v2627
    %v2634 = vand.u32 2147483647, %v2633
    %v2635 = vand.u32 %v1516, 2147483648
    %v2636 = vor.u32 %v2634, %v2635
    %v2637 = vand.u32 2147483647, %v1779
    %v2638 = vand.u32 2147483647, %v1523
    %v2639 = vmin.f32 %v2637, %v2638
    %v2640 = vmax.f32 %v2637, %v2638
    %v2641 = vrcp.pop %v2640
    %v2642 = vmul.f32 %v2639, %v2641
    %v2643 = vmul.f32 %v2642, %v2642
    %v2644 = vmul.f32 0.002785687, %v2643
    %v2645 = vadd.f32 %v2644, -0.015866
    %v2646 = vmul.f32 %v2645, %v2643
    %v2647 = vadd.f32 %v2646, 0.04247222
    %v2648 = vmul.f32 %v2647, %v2643
    %v2649 = vadd.f32 %v2648, -0.074975304
    %v2650 = vmul.f32 %v2649, %v2643
    %v2651 = vadd.f32 %v2650, 0.1064488
    %v2652 = vmul.f32 %v2651, %v2643
    %v2653 = vadd.f32 %v2652, -0.14207031
    %v2654 = vmul.f32 %v2653, %v2643
    %v2655 = vadd.f32 %v2654, 0.19993454
    %v2656 = vmul.f32 %v2655, %v2643
    %v2657 = vadd.f32 %v2656, -0.33333147
    %v2658 = vmul.f32 %v2657, %v2643
    %v2659 = vmul.f32 %v2658, %v2642
    %v2660 = vadd.f32 %v2659, %v2642
    %vm2661 = vcmp.gt.f32.partialorder %v2638, %v2637
    %v2662 = vsub.f32 1.5707964, %v2660
    %v2663 = vsel %vm2661, %v2662, %v2660
    %vm2664 = vcmp.lt.f32.partialorder %v1779, 0.0
    %v2665 = vsub.f32 3.1415927, %v2663
    %v2666 = vsel %vm2664, %v2665, %v2663
    %vm2667 = vcmp.lt.s32.totalorder %v1779, 0
    %v2668 = vsel %vm2667, 3.1415927, 0.0
    %vm2669 = vcmp.eq.f32.partialorder %v1523, 0.0
    %v2670 = vsel %vm2669, %v2668, %v2666
    %vm2671 = vcmp.ne.f32.partialorder %v1779, %v1779
    %vm2672 = vcmp.ne.f32.partialorder %v1523, %v1523
    %vm2673 = vmor %vm2671, %vm2672
    %v2674 = vsel %vm2673, nan, %v2670
    %vm2675 = vcmp.lt.f32.partialorder %v1779, 0.0
    %v2676 = vsel %vm2675, 2.3561945, 0.7853982
    %vm2677 = vcmp.eq.s32.totalorder %v2637, inf
    %vm2678 = vcmp.eq.s32.totalorder %v2638, inf
    %vm2679 = vmand %vm2677, %vm2678
    %v2680 = vsel %vm2679, %v2676, %v2674
    %v2681 = vand.u32 2147483647, %v2680
    %v2682 = vand.u32 %v1523, 2147483648
    %v2683 = vor.u32 %v2681, %v2682
    %v2684 = vand.u32 2147483647, %v1786
    %v2685 = vand.u32 2147483647, %v1530
    %v2686 = vmin.f32 %v2684, %v2685
    %v2687 = vmax.f32 %v2684, %v2685
    %v2688 = vrcp.pop %v2687
    %v2689 = vmul.f32 %v2686, %v2688
    %v2690 = vmul.f32 %v2689, %v2689
    %v2691 = vmul.f32 0.002785687, %v2690
    %v2692 = vadd.f32 %v2691, -0.015866
    %v2693 = vmul.f32 %v2692, %v2690
    %v2694 = vadd.f32 %v2693, 0.04247222
    %v2695 = vmul.f32 %v2694, %v2690
    %v2696 = vadd.f32 %v2695, -0.074975304
    %v2697 = vmul.f32 %v2696, %v2690
    %v2698 = vadd.f32 %v2697, 0.1064488
    %v2699 = vmul.f32 %v2698, %v2690
    %v2700 = vadd.f32 %v2699, -0.14207031
    %v2701 = vmul.f32 %v2700, %v2690
    %v2702 = vadd.f32 %v2701, 0.19993454
    %v2703 = vmul.f32 %v2702, %v2690
    %v2704 = vadd.f32 %v2703, -0.33333147
    %v2705 = vmul.f32 %v2704, %v2690
    %v2706 = vmul.f32 %v2705, %v2689
    %v2707 = vadd.f32 %v2706, %v2689
    %vm2708 = vcmp.gt.f32.partialorder %v2685, %v2684
    %v2709 = vsub.f32 1.5707964, %v2707
    %v2710 = vsel %vm2708, %v2709, %v2707
    %vm2711 = vcmp.lt.f32.partialorder %v1786, 0.0
    %v2712 = vsub.f32 3.1415927, %v2710
    %v2713 = vsel %vm2711, %v2712, %v2710
    %vm2714 = vcmp.lt.s32.totalorder %v1786, 0
    %v2715 = vsel %vm2714, 3.1415927, 0.0
    %vm2716 = vcmp.eq.f32.partialorder %v1530, 0.0
    %v2717 = vsel %vm2716, %v2715, %v2713
    %vm2718 = vcmp.ne.f32.partialorder %v1786, %v1786
    %vm2719 = vcmp.ne.f32.partialorder %v1530, %v1530
    %vm2720 = vmor %vm2718, %vm2719
    %v2721 = vsel %vm2720, nan, %v2717
    %vm2722 = vcmp.lt.f32.partialorder %v1786, 0.0
    %v2723 = vsel %vm2722, 2.3561945, 0.7853982
    %vm2724 = vcmp.eq.s32.totalorder %v2684, inf
    %vm2725 = vcmp.eq.s32.totalorder %v2685, inf
    %vm2726 = vmand %vm2724, %vm2725
    %v2727 = vsel %vm2726, %v2723, %v2721
    %v2728 = vand.u32 2147483647, %v2727
    %v2729 = vand.u32 %v1530, 2147483648
    %v2730 = vor.u32 %v2728, %v2729
    %v2731 = vand.u32 2147483647, %v1793
    %v2732 = vand.u32 2147483647, %v1537
    %v2733 = vmin.f32 %v2731, %v2732
    %v2734 = vmax.f32 %v2731, %v2732
    %v2735 = vrcp.pop %v2734
    %v2736 = vmul.f32 %v2733, %v2735
    %v2737 = vmul.f32 %v2736, %v2736
    %v2738 = vmul.f32 0.002785687, %v2737
    %v2739 = vadd.f32 %v2738, -0.015866
    %v2740 = vmul.f32 %v2739, %v2737
    %v2741 = vadd.f32 %v2740, 0.04247222
    %v2742 = vmul.f32 %v2741, %v2737
    %v2743 = vadd.f32 %v2742, -0.074975304
    %v2744 = vmul.f32 %v2743, %v2737
    %v2745 = vadd.f32 %v2744, 0.1064488
    %v2746 = vmul.f32 %v2745, %v2737
    %v2747 = vadd.f32 %v2746, -0.14207031
    %v2748 = vmul.f32 %v2747, %v2737
    %v2749 = vadd.f32 %v2748, 0.19993454
    %v2750 = vmul.f32 %v2749, %v2737
    %v2751 = vadd.f32 %v2750, -0.33333147
    %v2752 = vmul.f32 %v2751, %v2737
    %v2753 = vmul.f32 %v2752, %v2736
    %v2754 = vadd.f32 %v2753, %v2736
    %vm2755 = vcmp.gt.f32.partialorder %v2732, %v2731
    %v2756 = vsub.f32 1.5707964, %v2754
    %v2757 = vsel %vm2755, %v2756, %v2754
    %vm2758 = vcmp.lt.f32.partialorder %v1793, 0.0
    %v2759 = vsub.f32 3.1415927, %v2757
    %v2760 = vsel %vm2758, %v2759, %v2757
    %vm2761 = vcmp.lt.s32.totalorder %v1793, 0
    %v2762 = vsel %vm2761, 3.1415927, 0.0
    %vm2763 = vcmp.eq.f32.partialorder %v1537, 0.0
    %v2764 = vsel %vm2763, %v2762, %v2760
    %vm2765 = vcmp.ne.f32.partialorder %v1793, %v1793
    %vm2766 = vcmp.ne.f32.partialorder %v1537, %v1537
    %vm2767 = vmor %vm2765, %vm2766
    %v2768 = vsel %vm2767, nan, %v2764
    %vm2769 = vcmp.lt.f32.partialorder %v1793, 0.0
    %v2770 = vsel %vm2769, 2.3561945, 0.7853982
    %vm2771 = vcmp.eq.s32.totalorder %v2731, inf
    %vm2772 = vcmp.eq.s32.totalorder %v2732, inf
    %vm2773 = vmand %vm2771, %vm2772
    %v2774 = vsel %vm2773, %v2770, %v2768
    %v2775 = vand.u32 2147483647, %v2774
    %v2776 = vand.u32 %v1537, 2147483648
    %v2777 = vor.u32 %v2775, %v2776
    %v2778 = vand.u32 2147483647, %v1800
    %v2779 = vand.u32 2147483647, %v1544
    %v2780 = vmin.f32 %v2778, %v2779
    %v2781 = vmax.f32 %v2778, %v2779
    %v2782 = vrcp.pop %v2781
    %v2783 = vmul.f32 %v2780, %v2782
    %v2784 = vmul.f32 %v2783, %v2783
    %v2785 = vmul.f32 0.002785687, %v2784
    %v2786 = vadd.f32 %v2785, -0.015866
    %v2787 = vmul.f32 %v2786, %v2784
    %v2788 = vadd.f32 %v2787, 0.04247222
    %v2789 = vmul.f32 %v2788, %v2784
    %v2790 = vadd.f32 %v2789, -0.074975304
    %v2791 = vmul.f32 %v2790, %v2784
    %v2792 = vadd.f32 %v2791, 0.1064488
    %v2793 = vmul.f32 %v2792, %v2784
    %v2794 = vadd.f32 %v2793, -0.14207031
    %v2795 = vmul.f32 %v2794, %v2784
    %v2796 = vadd.f32 %v2795, 0.19993454
    %v2797 = vmul.f32 %v2796, %v2784
    %v2798 = vadd.f32 %v2797, -0.33333147
    %v2799 = vmul.f32 %v2798, %v2784
    %v2800 = vmul.f32 %v2799, %v2783
    %v2801 = vadd.f32 %v2800, %v2783
    %vm2802 = vcmp.gt.f32.partialorder %v2779, %v2778
    %v2803 = vsub.f32 1.5707964, %v2801
    %v2804 = vsel %vm2802, %v2803, %v2801
    %vm2805 = vcmp.lt.f32.partialorder %v1800, 0.0
    %v2806 = vsub.f32 3.1415927, %v2804
    %v2807 = vsel %vm2805, %v2806, %v2804
    %vm2808 = vcmp.lt.s32.totalorder %v1800, 0
    %v2809 = vsel %vm2808, 3.1415927, 0.0
    %vm2810 = vcmp.eq.f32.partialorder %v1544, 0.0
    %v2811 = vsel %vm2810, %v2809, %v2807
    %vm2812 = vcmp.ne.f32.partialorder %v1800, %v1800
    %vm2813 = vcmp.ne.f32.partialorder %v1544, %v1544
    %vm2814 = vmor %vm2812, %vm2813
    %v2815 = vsel %vm2814, nan, %v2811
    %vm2816 = vcmp.lt.f32.partialorder %v1800, 0.0
    %v2817 = vsel %vm2816, 2.3561945, 0.7853982
    %vm2818 = vcmp.eq.s32.totalorder %v2778, inf
    %vm2819 = vcmp.eq.s32.totalorder %v2779, inf
    %vm2820 = vmand %vm2818, %vm2819
    %v2821 = vsel %vm2820, %v2817, %v2815
    %v2822 = vand.u32 2147483647, %v2821
    %v2823 = vand.u32 %v1544, 2147483648
    %v2824 = vor.u32 %v2822, %v2823
    %v2825 = vand.u32 2147483647, %v1807
    %v2826 = vand.u32 2147483647, %v1551
    %v2827 = vmin.f32 %v2825, %v2826
    %v2828 = vmax.f32 %v2825, %v2826
    %v2829 = vrcp.pop %v2828
    %v2830 = vmul.f32 %v2827, %v2829
    %v2831 = vmul.f32 %v2830, %v2830
    %v2832 = vmul.f32 0.002785687, %v2831
    %v2833 = vadd.f32 %v2832, -0.015866
    %v2834 = vmul.f32 %v2833, %v2831
    %v2835 = vadd.f32 %v2834, 0.04247222
    %v2836 = vmul.f32 %v2835, %v2831
    %v2837 = vadd.f32 %v2836, -0.074975304
    %v2838 = vmul.f32 %v2837, %v2831
    %v2839 = vadd.f32 %v2838, 0.1064488
    %v2840 = vmul.f32 %v2839, %v2831
    %v2841 = vadd.f32 %v2840, -0.14207031
    %v2842 = vmul.f32 %v2841, %v2831
    %v2843 = vadd.f32 %v2842, 0.19993454
    %v2844 = vmul.f32 %v2843, %v2831
    %v2845 = vadd.f32 %v2844, -0.33333147
    %v2846 = vmul.f32 %v2845, %v2831
    %v2847 = vmul.f32 %v2846, %v2830
    %v2848 = vadd.f32 %v2847, %v2830
    %vm2849 = vcmp.gt.f32.partialorder %v2826, %v2825
    %v2850 = vsub.f32 1.5707964, %v2848
    %v2851 = vsel %vm2849, %v2850, %v2848
    %vm2852 = vcmp.lt.f32.partialorder %v1807, 0.0
    %v2853 = vsub.f32 3.1415927, %v2851
    %v2854 = vsel %vm2852, %v2853, %v2851
    %vm2855 = vcmp.lt.s32.totalorder %v1807, 0
    %v2856 = vsel %vm2855, 3.1415927, 0.0
    %vm2857 = vcmp.eq.f32.partialorder %v1551, 0.0
    %v2858 = vsel %vm2857, %v2856, %v2854
    %vm2859 = vcmp.ne.f32.partialorder %v1807, %v1807
    %vm2860 = vcmp.ne.f32.partialorder %v1551, %v1551
    %vm2861 = vmor %vm2859, %vm2860
    %v2862 = vsel %vm2861, nan, %v2858
    %vm2863 = vcmp.lt.f32.partialorder %v1807, 0.0
    %v2864 = vsel %vm2863, 2.3561945, 0.7853982
    %vm2865 = vcmp.eq.s32.totalorder %v2825, inf
    %vm2866 = vcmp.eq.s32.totalorder %v2826, inf
    %vm2867 = vmand %vm2865, %vm2866
    %v2868 = vsel %vm2867, %v2864, %v2862
    %v2869 = vand.u32 2147483647, %v2868
    %v2870 = vand.u32 %v1551, 2147483648
    %v2871 = vor.u32 %v2869, %v2870
    %v2872 = vand.u32 2147483647, %v1814
    %v2873 = vand.u32 2147483647, %v1558
    %v2874 = vmin.f32 %v2872, %v2873
    %v2875 = vmax.f32 %v2872, %v2873
    %v2876 = vrcp.pop %v2875
    %v2877 = vmul.f32 %v2874, %v2876
    %v2878 = vmul.f32 %v2877, %v2877
    %v2879 = vmul.f32 0.002785687, %v2878
    %v2880 = vadd.f32 %v2879, -0.015866
    %v2881 = vmul.f32 %v2880, %v2878
    %v2882 = vadd.f32 %v2881, 0.04247222
    %v2883 = vmul.f32 %v2882, %v2878
    %v2884 = vadd.f32 %v2883, -0.074975304
    %v2885 = vmul.f32 %v2884, %v2878
    %v2886 = vadd.f32 %v2885, 0.1064488
    %v2887 = vmul.f32 %v2886, %v2878
    %v2888 = vadd.f32 %v2887, -0.14207031
    %v2889 = vmul.f32 %v2888, %v2878
    %v2890 = vadd.f32 %v2889, 0.19993454
    %v2891 = vmul.f32 %v2890, %v2878
    %v2892 = vadd.f32 %v2891, -0.33333147
    %v2893 = vmul.f32 %v2892, %v2878
    %v2894 = vmul.f32 %v2893, %v2877
    %v2895 = vadd.f32 %v2894, %v2877
    %vm2896 = vcmp.gt.f32.partialorder %v2873, %v2872
    %v2897 = vsub.f32 1.5707964, %v2895
    %v2898 = vsel %vm2896, %v2897, %v2895
    %vm2899 = vcmp.lt.f32.partialorder %v1814, 0.0
    %v2900 = vsub.f32 3.1415927, %v2898
    %v2901 = vsel %vm2899, %v2900, %v2898
    %vm2902 = vcmp.lt.s32.totalorder %v1814, 0
    %v2903 = vsel %vm2902, 3.1415927, 0.0
    %vm2904 = vcmp.eq.f32.partialorder %v1558, 0.0
    %v2905 = vsel %vm2904, %v2903, %v2901
    %vm2906 = vcmp.ne.f32.partialorder %v1814, %v1814
    %vm2907 = vcmp.ne.f32.partialorder %v1558, %v1558
    %vm2908 = vmor %vm2906, %vm2907
    %v2909 = vsel %vm2908, nan, %v2905
    %vm2910 = vcmp.lt.f32.partialorder %v1814, 0.0
    %v2911 = vsel %vm2910, 2.3561945, 0.7853982
    %vm2912 = vcmp.eq.s32.totalorder %v2872, inf
    %vm2913 = vcmp.eq.s32.totalorder %v2873, inf
    %vm2914 = vmand %vm2912, %vm2913
    %v2915 = vsel %vm2914, %v2911, %v2909
    %v2916 = vand.u32 2147483647, %v2915
    %v2917 = vand.u32 %v1558, 2147483648
    %v2918 = vor.u32 %v2916, %v2917
    %v2919 = vand.u32 2147483647, %v1821
    %v2920 = vand.u32 2147483647, %v1565
    %v2921 = vmin.f32 %v2919, %v2920
    %v2922 = vmax.f32 %v2919, %v2920
    %v2923 = vrcp.pop %v2922
    %v2924 = vmul.f32 %v2921, %v2923
    %v2925 = vmul.f32 %v2924, %v2924
    %v2926 = vmul.f32 0.002785687, %v2925
    %v2927 = vadd.f32 %v2926, -0.015866
    %v2928 = vmul.f32 %v2927, %v2925
    %v2929 = vadd.f32 %v2928, 0.04247222
    %v2930 = vmul.f32 %v2929, %v2925
    %v2931 = vadd.f32 %v2930, -0.074975304
    %v2932 = vmul.f32 %v2931, %v2925
    %v2933 = vadd.f32 %v2932, 0.1064488
    %v2934 = vmul.f32 %v2933, %v2925
    %v2935 = vadd.f32 %v2934, -0.14207031
    %v2936 = vmul.f32 %v2935, %v2925
    %v2937 = vadd.f32 %v2936, 0.19993454
    %v2938 = vmul.f32 %v2937, %v2925
    %v2939 = vadd.f32 %v2938, -0.33333147
    %v2940 = vmul.f32 %v2939, %v2925
    %v2941 = vmul.f32 %v2940, %v2924
    %v2942 = vadd.f32 %v2941, %v2924
    %vm2943 = vcmp.gt.f32.partialorder %v2920, %v2919
    %v2944 = vsub.f32 1.5707964, %v2942
    %v2945 = vsel %vm2943, %v2944, %v2942
    %vm2946 = vcmp.lt.f32.partialorder %v1821, 0.0
    %v2947 = vsub.f32 3.1415927, %v2945
    %v2948 = vsel %vm2946, %v2947, %v2945
    %vm2949 = vcmp.lt.s32.totalorder %v1821, 0
    %v2950 = vsel %vm2949, 3.1415927, 0.0
    %vm2951 = vcmp.eq.f32.partialorder %v1565, 0.0
    %v2952 = vsel %vm2951, %v2950, %v2948
    %vm2953 = vcmp.ne.f32.partialorder %v1821, %v1821
    %vm2954 = vcmp.ne.f32.partialorder %v1565, %v1565
    %vm2955 = vmor %vm2953, %vm2954
    %v2956 = vsel %vm2955, nan, %v2952
    %vm2957 = vcmp.lt.f32.partialorder %v1821, 0.0
    %v2958 = vsel %vm2957, 2.3561945, 0.7853982
    %vm2959 = vcmp.eq.s32.totalorder %v2919, inf
    %vm2960 = vcmp.eq.s32.totalorder %v2920, inf
    %vm2961 = vmand %vm2959, %vm2960
    %v2962 = vsel %vm2961, %v2958, %v2956
    %v2963 = vand.u32 2147483647, %v2962
    %v2964 = vand.u32 %v1565, 2147483648
    %v2965 = vor.u32 %v2963, %v2964
    %v2966 = vand.u32 2147483647, %v1828
    %v2967 = vand.u32 2147483647, %v1572
    %v2968 = vmin.f32 %v2966, %v2967
    %v2969 = vmax.f32 %v2966, %v2967
    %v2970 = vrcp.pop %v2969
    %v2971 = vmul.f32 %v2968, %v2970
    %v2972 = vmul.f32 %v2971, %v2971
    %v2973 = vmul.f32 0.002785687, %v2972
    %v2974 = vadd.f32 %v2973, -0.015866
    %v2975 = vmul.f32 %v2974, %v2972
    %v2976 = vadd.f32 %v2975, 0.04247222
    %v2977 = vmul.f32 %v2976, %v2972
    %v2978 = vadd.f32 %v2977, -0.074975304
    %v2979 = vmul.f32 %v2978, %v2972
    %v2980 = vadd.f32 %v2979, 0.1064488
    %v2981 = vmul.f32 %v2980, %v2972
    %v2982 = vadd.f32 %v2981, -0.14207031
    %v2983 = vmul.f32 %v2982, %v2972
    %v2984 = vadd.f32 %v2983, 0.19993454
    %v2985 = vmul.f32 %v2984, %v2972
    %v2986 = vadd.f32 %v2985, -0.33333147
    %v2987 = vmul.f32 %v2986, %v2972
    %v2988 = vmul.f32 %v2987, %v2971
    %v2989 = vadd.f32 %v2988, %v2971
    %vm2990 = vcmp.gt.f32.partialorder %v2967, %v2966
    %v2991 = vsub.f32 1.5707964, %v2989
    %v2992 = vsel %vm2990, %v2991, %v2989
    %vm2993 = vcmp.lt.f32.partialorder %v1828, 0.0
    %v2994 = vsub.f32 3.1415927, %v2992
    %v2995 = vsel %vm2993, %v2994, %v2992
    %vm2996 = vcmp.lt.s32.totalorder %v1828, 0
    %v2997 = vsel %vm2996, 3.1415927, 0.0
    %vm2998 = vcmp.eq.f32.partialorder %v1572, 0.0
    %v2999 = vsel %vm2998, %v2997, %v2995
    %vm3000 = vcmp.ne.f32.partialorder %v1828, %v1828
    %vm3001 = vcmp.ne.f32.partialorder %v1572, %v1572
    %vm3002 = vmor %vm3000, %vm3001
    %v3003 = vsel %vm3002, nan, %v2999
    %vm3004 = vcmp.lt.f32.partialorder %v1828, 0.0
    %v3005 = vsel %vm3004, 2.3561945, 0.7853982
    %vm3006 = vcmp.eq.s32.totalorder %v2966, inf
    %vm3007 = vcmp.eq.s32.totalorder %v2967, inf
    %vm3008 = vmand %vm3006, %vm3007
    %v3009 = vsel %vm3008, %v3005, %v3003
    %v3010 = vand.u32 2147483647, %v3009
    %v3011 = vand.u32 %v1572, 2147483648
    %v3012 = vor.u32 %v3010, %v3011
    %v3013 = vand.u32 2147483647, %v1835
    %v3014 = vand.u32 2147483647, %v1579
    %v3015 = vmin.f32 %v3013, %v3014
    %v3016 = vmax.f32 %v3013, %v3014
    %v3017 = vrcp.pop %v3016
    %v3018 = vmul.f32 %v3015, %v3017
    %v3019 = vmul.f32 %v3018, %v3018
    %v3020 = vmul.f32 0.002785687, %v3019
    %v3021 = vadd.f32 %v3020, -0.015866
    %v3022 = vmul.f32 %v3021, %v3019
    %v3023 = vadd.f32 %v3022, 0.04247222
    %v3024 = vmul.f32 %v3023, %v3019
    %v3025 = vadd.f32 %v3024, -0.074975304
    %v3026 = vmul.f32 %v3025, %v3019
    %v3027 = vadd.f32 %v3026, 0.1064488
    %v3028 = vmul.f32 %v3027, %v3019
    %v3029 = vadd.f32 %v3028, -0.14207031
    %v3030 = vmul.f32 %v3029, %v3019
    %v3031 = vadd.f32 %v3030, 0.19993454
    %v3032 = vmul.f32 %v3031, %v3019
    %v3033 = vadd.f32 %v3032, -0.33333147
    %v3034 = vmul.f32 %v3033, %v3019
    %v3035 = vmul.f32 %v3034, %v3018
    %v3036 = vadd.f32 %v3035, %v3018
    %vm3037 = vcmp.gt.f32.partialorder %v3014, %v3013
    %v3038 = vsub.f32 1.5707964, %v3036
    %v3039 = vsel %vm3037, %v3038, %v3036
    %vm3040 = vcmp.lt.f32.partialorder %v1835, 0.0
    %v3041 = vsub.f32 3.1415927, %v3039
    %v3042 = vsel %vm3040, %v3041, %v3039
    %vm3043 = vcmp.lt.s32.totalorder %v1835, 0
    %v3044 = vsel %vm3043, 3.1415927, 0.0
    %vm3045 = vcmp.eq.f32.partialorder %v1579, 0.0
    %v3046 = vsel %vm3045, %v3044, %v3042
    %vm3047 = vcmp.ne.f32.partialorder %v1835, %v1835
    %vm3048 = vcmp.ne.f32.partialorder %v1579, %v1579
    %vm3049 = vmor %vm3047, %vm3048
    %v3050 = vsel %vm3049, nan, %v3046
    %vm3051 = vcmp.lt.f32.partialorder %v1835, 0.0
    %v3052 = vsel %vm3051, 2.3561945, 0.7853982
    %vm3053 = vcmp.eq.s32.totalorder %v3013, inf
    %vm3054 = vcmp.eq.s32.totalorder %v3014, inf
    %vm3055 = vmand %vm3053, %vm3054
    %v3056 = vsel %vm3055, %v3052, %v3050
    %v3057 = vand.u32 2147483647, %v3056
    %v3058 = vand.u32 %v1579, 2147483648
    %v3059 = vor.u32 %v3057, %v3058
    %v3060 = vand.u32 2147483647, %v1842
    %v3061 = vand.u32 2147483647, %v1586
    %v3062 = vmin.f32 %v3060, %v3061
    %v3063 = vmax.f32 %v3060, %v3061
    %v3064 = vrcp.pop %v3063
    %v3065 = vmul.f32 %v3062, %v3064
    %v3066 = vmul.f32 %v3065, %v3065
    %v3067 = vmul.f32 0.002785687, %v3066
    %v3068 = vadd.f32 %v3067, -0.015866
    %v3069 = vmul.f32 %v3068, %v3066
    %v3070 = vadd.f32 %v3069, 0.04247222
    %v3071 = vmul.f32 %v3070, %v3066
    %v3072 = vadd.f32 %v3071, -0.074975304
    %v3073 = vmul.f32 %v3072, %v3066
    %v3074 = vadd.f32 %v3073, 0.1064488
    %v3075 = vmul.f32 %v3074, %v3066
    %v3076 = vadd.f32 %v3075, -0.14207031
    %v3077 = vmul.f32 %v3076, %v3066
    %v3078 = vadd.f32 %v3077, 0.19993454
    %v3079 = vmul.f32 %v3078, %v3066
    %v3080 = vadd.f32 %v3079, -0.33333147
    %v3081 = vmul.f32 %v3080, %v3066
    %v3082 = vmul.f32 %v3081, %v3065
    %v3083 = vadd.f32 %v3082, %v3065
    %vm3084 = vcmp.gt.f32.partialorder %v3061, %v3060
    %v3085 = vsub.f32 1.5707964, %v3083
    %v3086 = vsel %vm3084, %v3085, %v3083
    %vm3087 = vcmp.lt.f32.partialorder %v1842, 0.0
    %v3088 = vsub.f32 3.1415927, %v3086
    %v3089 = vsel %vm3087, %v3088, %v3086
    %vm3090 = vcmp.lt.s32.totalorder %v1842, 0
    %v3091 = vsel %vm3090, 3.1415927, 0.0
    %vm3092 = vcmp.eq.f32.partialorder %v1586, 0.0
    %v3093 = vsel %vm3092, %v3091, %v3089
    %vm3094 = vcmp.ne.f32.partialorder %v1842, %v1842
    %vm3095 = vcmp.ne.f32.partialorder %v1586, %v1586
    %vm3096 = vmor %vm3094, %vm3095
    %v3097 = vsel %vm3096, nan, %v3093
    %vm3098 = vcmp.lt.f32.partialorder %v1842, 0.0
    %v3099 = vsel %vm3098, 2.3561945, 0.7853982
    %vm3100 = vcmp.eq.s32.totalorder %v3060, inf
    %vm3101 = vcmp.eq.s32.totalorder %v3061, inf
    %vm3102 = vmand %vm3100, %vm3101
    %v3103 = vsel %vm3102, %v3099, %v3097
    %v3104 = vand.u32 2147483647, %v3103
    %v3105 = vand.u32 %v1586, 2147483648
    %v3106 = vor.u32 %v3104, %v3105
    %v3107 = vand.u32 2147483647, %v1849
    %v3108 = vand.u32 2147483647, %v1593
    %v3109 = vmin.f32 %v3107, %v3108
    %v3110 = vmax.f32 %v3107, %v3108
    %v3111 = vrcp.pop %v3110
    %v3112 = vmul.f32 %v3109, %v3111
    %v3113 = vmul.f32 %v3112, %v3112
    %v3114 = vmul.f32 0.002785687, %v3113
    %v3115 = vadd.f32 %v3114, -0.015866
    %v3116 = vmul.f32 %v3115, %v3113
    %v3117 = vadd.f32 %v3116, 0.04247222
    %v3118 = vmul.f32 %v3117, %v3113
    %v3119 = vadd.f32 %v3118, -0.074975304
    %v3120 = vmul.f32 %v3119, %v3113
    %v3121 = vadd.f32 %v3120, 0.1064488
    %v3122 = vmul.f32 %v3121, %v3113
    %v3123 = vadd.f32 %v3122, -0.14207031
    %v3124 = vmul.f32 %v3123, %v3113
    %v3125 = vadd.f32 %v3124, 0.19993454
    %v3126 = vmul.f32 %v3125, %v3113
    %v3127 = vadd.f32 %v3126, -0.33333147
    %v3128 = vmul.f32 %v3127, %v3113
    %v3129 = vmul.f32 %v3128, %v3112
    %v3130 = vadd.f32 %v3129, %v3112
    %vm3131 = vcmp.gt.f32.partialorder %v3108, %v3107
    %v3132 = vsub.f32 1.5707964, %v3130
    %v3133 = vsel %vm3131, %v3132, %v3130
    %vm3134 = vcmp.lt.f32.partialorder %v1849, 0.0
    %v3135 = vsub.f32 3.1415927, %v3133
    %v3136 = vsel %vm3134, %v3135, %v3133
    %vm3137 = vcmp.lt.s32.totalorder %v1849, 0
    %v3138 = vsel %vm3137, 3.1415927, 0.0
    %vm3139 = vcmp.eq.f32.partialorder %v1593, 0.0
    %v3140 = vsel %vm3139, %v3138, %v3136
    %vm3141 = vcmp.ne.f32.partialorder %v1849, %v1849
    %vm3142 = vcmp.ne.f32.partialorder %v1593, %v1593
    %vm3143 = vmor %vm3141, %vm3142
    %v3144 = vsel %vm3143, nan, %v3140
    %vm3145 = vcmp.lt.f32.partialorder %v1849, 0.0
    %v3146 = vsel %vm3145, 2.3561945, 0.7853982
    %vm3147 = vcmp.eq.s32.totalorder %v3107, inf
    %vm3148 = vcmp.eq.s32.totalorder %v3108, inf
    %vm3149 = vmand %vm3147, %vm3148
    %v3150 = vsel %vm3149, %v3146, %v3144
    %v3151 = vand.u32 2147483647, %v3150
    %v3152 = vand.u32 %v1593, 2147483648
    %v3153 = vor.u32 %v3151, %v3152
    %v3154 = vand.u32 2147483647, %v1856
    %v3155 = vand.u32 2147483647, %v1600
    %v3156 = vmin.f32 %v3154, %v3155
    %v3157 = vmax.f32 %v3154, %v3155
    %v3158 = vrcp.pop %v3157
    %v3159 = vmul.f32 %v3156, %v3158
    %v3160 = vmul.f32 %v3159, %v3159
    %v3161 = vmul.f32 0.002785687, %v3160
    %v3162 = vadd.f32 %v3161, -0.015866
    %v3163 = vmul.f32 %v3162, %v3160
    %v3164 = vadd.f32 %v3163, 0.04247222
    %v3165 = vmul.f32 %v3164, %v3160
    %v3166 = vadd.f32 %v3165, -0.074975304
    %v3167 = vmul.f32 %v3166, %v3160
    %v3168 = vadd.f32 %v3167, 0.1064488
    %v3169 = vmul.f32 %v3168, %v3160
    %v3170 = vadd.f32 %v3169, -0.14207031
    %v3171 = vmul.f32 %v3170, %v3160
    %v3172 = vadd.f32 %v3171, 0.19993454
    %v3173 = vmul.f32 %v3172, %v3160
    %v3174 = vadd.f32 %v3173, -0.33333147
    %v3175 = vmul.f32 %v3174, %v3160
    %v3176 = vmul.f32 %v3175, %v3159
    %v3177 = vadd.f32 %v3176, %v3159
    %vm3178 = vcmp.gt.f32.partialorder %v3155, %v3154
    %v3179 = vsub.f32 1.5707964, %v3177
    %v3180 = vsel %vm3178, %v3179, %v3177
    %vm3181 = vcmp.lt.f32.partialorder %v1856, 0.0
    %v3182 = vsub.f32 3.1415927, %v3180
    %v3183 = vsel %vm3181, %v3182, %v3180
    %vm3184 = vcmp.lt.s32.totalorder %v1856, 0
    %v3185 = vsel %vm3184, 3.1415927, 0.0
    %vm3186 = vcmp.eq.f32.partialorder %v1600, 0.0
    %v3187 = vsel %vm3186, %v3185, %v3183
    %vm3188 = vcmp.ne.f32.partialorder %v1856, %v1856
    %vm3189 = vcmp.ne.f32.partialorder %v1600, %v1600
    %vm3190 = vmor %vm3188, %vm3189
    %v3191 = vsel %vm3190, nan, %v3187
    %vm3192 = vcmp.lt.f32.partialorder %v1856, 0.0
    %v3193 = vsel %vm3192, 2.3561945, 0.7853982
    %vm3194 = vcmp.eq.s32.totalorder %v3154, inf
    %vm3195 = vcmp.eq.s32.totalorder %v3155, inf
    %vm3196 = vmand %vm3194, %vm3195
    %v3197 = vsel %vm3196, %v3193, %v3191
    %v3198 = vand.u32 2147483647, %v3197
    %v3199 = vand.u32 %v1600, 2147483648
    %v3200 = vor.u32 %v3198, %v3199
    %v3201 = vand.u32 2147483647, %v1863
    %v3202 = vand.u32 2147483647, %v1607
    %v3203 = vmin.f32 %v3201, %v3202
    %v3204 = vmax.f32 %v3201, %v3202
    %v3205 = vrcp.pop %v3204
    %v3206 = vmul.f32 %v3203, %v3205
    %v3207 = vmul.f32 %v3206, %v3206
    %v3208 = vmul.f32 0.002785687, %v3207
    %v3209 = vadd.f32 %v3208, -0.015866
    %v3210 = vmul.f32 %v3209, %v3207
    %v3211 = vadd.f32 %v3210, 0.04247222
    %v3212 = vmul.f32 %v3211, %v3207
    %v3213 = vadd.f32 %v3212, -0.074975304
    %v3214 = vmul.f32 %v3213, %v3207
    %v3215 = vadd.f32 %v3214, 0.1064488
    %v3216 = vmul.f32 %v3215, %v3207
    %v3217 = vadd.f32 %v3216, -0.14207031
    %v3218 = vmul.f32 %v3217, %v3207
    %v3219 = vadd.f32 %v3218, 0.19993454
    %v3220 = vmul.f32 %v3219, %v3207
    %v3221 = vadd.f32 %v3220, -0.33333147
    %v3222 = vmul.f32 %v3221, %v3207
    %v3223 = vmul.f32 %v3222, %v3206
    %v3224 = vadd.f32 %v3223, %v3206
    %vm3225 = vcmp.gt.f32.partialorder %v3202, %v3201
    %v3226 = vsub.f32 1.5707964, %v3224
    %v3227 = vsel %vm3225, %v3226, %v3224
    %vm3228 = vcmp.lt.f32.partialorder %v1863, 0.0
    %v3229 = vsub.f32 3.1415927, %v3227
    %v3230 = vsel %vm3228, %v3229, %v3227
    %vm3231 = vcmp.lt.s32.totalorder %v1863, 0
    %v3232 = vsel %vm3231, 3.1415927, 0.0
    %vm3233 = vcmp.eq.f32.partialorder %v1607, 0.0
    %v3234 = vsel %vm3233, %v3232, %v3230
    %vm3235 = vcmp.ne.f32.partialorder %v1863, %v1863
    %vm3236 = vcmp.ne.f32.partialorder %v1607, %v1607
    %vm3237 = vmor %vm3235, %vm3236
    %v3238 = vsel %vm3237, nan, %v3234
    %vm3239 = vcmp.lt.f32.partialorder %v1863, 0.0
    %v3240 = vsel %vm3239, 2.3561945, 0.7853982
    %vm3241 = vcmp.eq.s32.totalorder %v3201, inf
    %vm3242 = vcmp.eq.s32.totalorder %v3202, inf
    %vm3243 = vmand %vm3241, %vm3242
    %v3244 = vsel %vm3243, %v3240, %v3238
    %v3245 = vand.u32 2147483647, %v3244
    %v3246 = vand.u32 %v1607, 2147483648
    %v3247 = vor.u32 %v3245, %v3246
    %v3248 = vand.u32 2147483647, %v1870
    %v3249 = vand.u32 2147483647, %v1614
    %v3250 = vmin.f32 %v3248, %v3249
    %v3251 = vmax.f32 %v3248, %v3249
    %v3252 = vrcp.pop %v3251
    %v3253 = vmul.f32 %v3250, %v3252
    %v3254 = vmul.f32 %v3253, %v3253
    %v3255 = vmul.f32 0.002785687, %v3254
    %v3256 = vadd.f32 %v3255, -0.015866
    %v3257 = vmul.f32 %v3256, %v3254
    %v3258 = vadd.f32 %v3257, 0.04247222
    %v3259 = vmul.f32 %v3258, %v3254
    %v3260 = vadd.f32 %v3259, -0.074975304
    %v3261 = vmul.f32 %v3260, %v3254
    %v3262 = vadd.f32 %v3261, 0.1064488
    %v3263 = vmul.f32 %v3262, %v3254
    %v3264 = vadd.f32 %v3263, -0.14207031
    %v3265 = vmul.f32 %v3264, %v3254
    %v3266 = vadd.f32 %v3265, 0.19993454
    %v3267 = vmul.f32 %v3266, %v3254
    %v3268 = vadd.f32 %v3267, -0.33333147
    %v3269 = vmul.f32 %v3268, %v3254
    %v3270 = vmul.f32 %v3269, %v3253
    %v3271 = vadd.f32 %v3270, %v3253
    %vm3272 = vcmp.gt.f32.partialorder %v3249, %v3248
    %v3273 = vsub.f32 1.5707964, %v3271
    %v3274 = vsel %vm3272, %v3273, %v3271
    %vm3275 = vcmp.lt.f32.partialorder %v1870, 0.0
    %v3276 = vsub.f32 3.1415927, %v3274
    %v3277 = vsel %vm3275, %v3276, %v3274
    %vm3278 = vcmp.lt.s32.totalorder %v1870, 0
    %v3279 = vsel %vm3278, 3.1415927, 0.0
    %vm3280 = vcmp.eq.f32.partialorder %v1614, 0.0
    %v3281 = vsel %vm3280, %v3279, %v3277
    %vm3282 = vcmp.ne.f32.partialorder %v1870, %v1870
    %vm3283 = vcmp.ne.f32.partialorder %v1614, %v1614
    %vm3284 = vmor %vm3282, %vm3283
    %v3285 = vsel %vm3284, nan, %v3281
    %vm3286 = vcmp.lt.f32.partialorder %v1870, 0.0
    %v3287 = vsel %vm3286, 2.3561945, 0.7853982
    %vm3288 = vcmp.eq.s32.totalorder %v3248, inf
    %vm3289 = vcmp.eq.s32.totalorder %v3249, inf
    %vm3290 = vmand %vm3288, %vm3289
    %v3291 = vsel %vm3290, %v3287, %v3285
    %v3292 = vand.u32 2147483647, %v3291
    %v3293 = vand.u32 %v1614, 2147483648
    %v3294 = vor.u32 %v3292, %v3293
    %v3295 = vand.u32 2147483647, %v1877
    %v3296 = vand.u32 2147483647, %v1621
    %v3297 = vmin.f32 %v3295, %v3296
    %v3298 = vmax.f32 %v3295, %v3296
    %v3299 = vrcp.pop %v3298
    %v3300 = vmul.f32 %v3297, %v3299
    %v3301 = vmul.f32 %v3300, %v3300
    %v3302 = vmul.f32 0.002785687, %v3301
    %v3303 = vadd.f32 %v3302, -0.015866
    %v3304 = vmul.f32 %v3303, %v3301
    %v3305 = vadd.f32 %v3304, 0.04247222
    %v3306 = vmul.f32 %v3305, %v3301
    %v3307 = vadd.f32 %v3306, -0.074975304
    %v3308 = vmul.f32 %v3307, %v3301
    %v3309 = vadd.f32 %v3308, 0.1064488
    %v3310 = vmul.f32 %v3309, %v3301
    %v3311 = vadd.f32 %v3310, -0.14207031
    %v3312 = vmul.f32 %v3311, %v3301
    %v3313 = vadd.f32 %v3312, 0.19993454
    %v3314 = vmul.f32 %v3313, %v3301
    %v3315 = vadd.f32 %v3314, -0.33333147
    %v3316 = vmul.f32 %v3315, %v3301
    %v3317 = vmul.f32 %v3316, %v3300
    %v3318 = vadd.f32 %v3317, %v3300
    %vm3319 = vcmp.gt.f32.partialorder %v3296, %v3295
    %v3320 = vsub.f32 1.5707964, %v3318
    %v3321 = vsel %vm3319, %v3320, %v3318
    %vm3322 = vcmp.lt.f32.partialorder %v1877, 0.0
    %v3323 = vsub.f32 3.1415927, %v3321
    %v3324 = vsel %vm3322, %v3323, %v3321
    %vm3325 = vcmp.lt.s32.totalorder %v1877, 0
    %v3326 = vsel %vm3325, 3.1415927, 0.0
    %vm3327 = vcmp.eq.f32.partialorder %v1621, 0.0
    %v3328 = vsel %vm3327, %v3326, %v3324
    %vm3329 = vcmp.ne.f32.partialorder %v1877, %v1877
    %vm3330 = vcmp.ne.f32.partialorder %v1621, %v1621
    %vm3331 = vmor %vm3329, %vm3330
    %v3332 = vsel %vm3331, nan, %v3328
    %vm3333 = vcmp.lt.f32.partialorder %v1877, 0.0
    %v3334 = vsel %vm3333, 2.3561945, 0.7853982
    %vm3335 = vcmp.eq.s32.totalorder %v3295, inf
    %vm3336 = vcmp.eq.s32.totalorder %v3296, inf
    %vm3337 = vmand %vm3335, %vm3336
    %v3338 = vsel %vm3337, %v3334, %v3332
    %v3339 = vand.u32 2147483647, %v3338
    %v3340 = vand.u32 %v1621, 2147483648
    %v3341 = vor.u32 %v3339, %v3340
    %v3342 = vand.u32 2147483647, %v1884
    %v3343 = vand.u32 2147483647, %v1628
    %v3344 = vmin.f32 %v3342, %v3343
    %v3345 = vmax.f32 %v3342, %v3343
    %v3346 = vrcp.pop %v3345
    %v3347 = vmul.f32 %v3344, %v3346
    %v3348 = vmul.f32 %v3347, %v3347
    %v3349 = vmul.f32 0.002785687, %v3348
    %v3350 = vadd.f32 %v3349, -0.015866
    %v3351 = vmul.f32 %v3350, %v3348
    %v3352 = vadd.f32 %v3351, 0.04247222
    %v3353 = vmul.f32 %v3352, %v3348
    %v3354 = vadd.f32 %v3353, -0.074975304
    %v3355 = vmul.f32 %v3354, %v3348
    %v3356 = vadd.f32 %v3355, 0.1064488
    %v3357 = vmul.f32 %v3356, %v3348
    %v3358 = vadd.f32 %v3357, -0.14207031
    %v3359 = vmul.f32 %v3358, %v3348
    %v3360 = vadd.f32 %v3359, 0.19993454
    %v3361 = vmul.f32 %v3360, %v3348
    %v3362 = vadd.f32 %v3361, -0.33333147
    %v3363 = vmul.f32 %v3362, %v3348
    %v3364 = vmul.f32 %v3363, %v3347
    %v3365 = vadd.f32 %v3364, %v3347
    %vm3366 = vcmp.gt.f32.partialorder %v3343, %v3342
    %v3367 = vsub.f32 1.5707964, %v3365
    %v3368 = vsel %vm3366, %v3367, %v3365
    %vm3369 = vcmp.lt.f32.partialorder %v1884, 0.0
    %v3370 = vsub.f32 3.1415927, %v3368
    %v3371 = vsel %vm3369, %v3370, %v3368
    %vm3372 = vcmp.lt.s32.totalorder %v1884, 0
    %v3373 = vsel %vm3372, 3.1415927, 0.0
    %vm3374 = vcmp.eq.f32.partialorder %v1628, 0.0
    %v3375 = vsel %vm3374, %v3373, %v3371
    %vm3376 = vcmp.ne.f32.partialorder %v1884, %v1884
    %vm3377 = vcmp.ne.f32.partialorder %v1628, %v1628
    %vm3378 = vmor %vm3376, %vm3377
    %v3379 = vsel %vm3378, nan, %v3375
    %vm3380 = vcmp.lt.f32.partialorder %v1884, 0.0
    %v3381 = vsel %vm3380, 2.3561945, 0.7853982
    %vm3382 = vcmp.eq.s32.totalorder %v3342, inf
    %vm3383 = vcmp.eq.s32.totalorder %v3343, inf
    %vm3384 = vmand %vm3382, %vm3383
    %v3385 = vsel %vm3384, %v3381, %v3379
    %v3386 = vand.u32 2147483647, %v3385
    %v3387 = vand.u32 %v1628, 2147483648
    %v3388 = vor.u32 %v3386, %v3387
    %v3389 = vmul.f32 %v1931, 12742.0
    %v3390 = vmul.f32 %v1978, 12742.0
    %v3391 = vmul.f32 %v2025, 12742.0
    %v3392 = vmul.f32 %v2072, 12742.0
    %v3393 = vmul.f32 %v2119, 12742.0
    %v3394 = vmul.f32 %v2166, 12742.0
    %v3395 = vmul.f32 %v2213, 12742.0
    %v3396 = vmul.f32 %v2260, 12742.0
    %v3397 = vmul.f32 %v2307, 12742.0
    %v3398 = vmul.f32 %v2354, 12742.0
    %v3399 = vmul.f32 %v2401, 12742.0
    %v3400 = vmul.f32 %v2448, 12742.0
    %v3401 = vmul.f32 %v2495, 12742.0
    %v3402 = vmul.f32 %v2542, 12742.0
    %v3403 = vmul.f32 %v2589, 12742.0
    %v3404 = vmul.f32 %v2636, 12742.0
    %v3405 = vmul.f32 %v2683, 12742.0
    %v3406 = vmul.f32 %v2730, 12742.0
    %v3407 = vmul.f32 %v2777, 12742.0
    %v3408 = vmul.f32 %v2824, 12742.0
    %v3409 = vmul.f32 %v2871, 12742.0
    %v3410 = vmul.f32 %v2918, 12742.0
    %v3411 = vmul.f32 %v2965, 12742.0
    %v3412 = vmul.f32 %v3012, 12742.0
    %v3413 = vmul.f32 %v3059, 12742.0
    %v3414 = vmul.f32 %v3106, 12742.0
    %v3415 = vmul.f32 %v3153, 12742.0
    %v3416 = vmul.f32 %v3200, 12742.0
    %v3417 = vmul.f32 %v3247, 12742.0
    %v3418 = vmul.f32 %v3294, 12742.0
    %v3419 = vmul.f32 %v3341, 12742.0
    %v3420 = vmul.f32 %v3388, 12742.0
    %v3421 = vmul.f32 %v3389, %v3389
    %v3422 = vmul.f32 %v3390, %v3390
    %v3423 = vmul.f32 %v3391, %v3391
    %v3424 = vmul.f32 %v3392, %v3392
    %v3425 = vmul.f32 %v3393, %v3393
    %v3426 = vmul.f32 %v3394, %v3394
    %v3427 = vmul.f32 %v3395, %v3395
    %v3428 = vmul.f32 %v3396, %v3396
    %v3429 = vmul.f32 %v3397, %v3397
    %v3430 = vmul.f32 %v3398, %v3398
    %v3431 = vmul.f32 %v3399, %v3399
    %v3432 = vmul.f32 %v3400, %v3400
    %v3433 = vmul.f32 %v3401, %v3401
    %v3434 = vmul.f32 %v3402, %v3402
    %v3435 = vmul.f32 %v3403, %v3403
    %v3436 = vmul.f32 %v3404, %v3404
    %v3437 = vmul.f32 %v3405, %v3405
    %v3438 = vmul.f32 %v3406, %v3406
    %v3439 = vmul.f32 %v3407, %v3407
    %v3440 = vmul.f32 %v3408, %v3408
    %v3441 = vmul.f32 %v3409, %v3409
    %v3442 = vmul.f32 %v3410, %v3410
    %v3443 = vmul.f32 %v3411, %v3411
    %v3444 = vmul.f32 %v3412, %v3412
    %v3445 = vmul.f32 %v3413, %v3413
    %v3446 = vmul.f32 %v3414, %v3414
    %v3447 = vmul.f32 %v3415, %v3415
    %v3448 = vmul.f32 %v3416, %v3416
    %v3449 = vmul.f32 %v3417, %v3417
    %v3450 = vmul.f32 %v3418, %v3418
    %v3451 = vmul.f32 %v3419, %v3419
    %v3452 = vmul.f32 %v3420, %v3420
    %3453 = vset.pattern.permute.xlu0 5
    %3454 = vperm.xlu0 %3453, %v36
    %v3455 = vpop.permute.xlu0 %3454
    %v3457 = vadd.f32 %v3421, %v3455
    %v3458 = vadd.f32 %v3422, %v3455
    %v3459 = vadd.f32 %v3423, %v3455
    %v3460 = vadd.f32 %v3424, %v3455
    %v3461 = vadd.f32 %v3425, %v3455
    %v3462 = vadd.f32 %v3426, %v3455
    %v3463 = vadd.f32 %v3427, %v3455
    %v3464 = vadd.f32 %v3428, %v3455
    %v3465 = vadd.f32 %v3429, %v3455
    %v3466 = vadd.f32 %v3430, %v3455
    %v3467 = vadd.f32 %v3431, %v3455
    %v3468 = vadd.f32 %v3432, %v3455
    %v3469 = vadd.f32 %v3433, %v3455
    %v3470 = vadd.f32 %v3434, %v3455
    %v3471 = vadd.f32 %v3435, %v3455
    %v3472 = vadd.f32 %v3436, %v3455
    %v3473 = vadd.f32 %v3437, %v3455
    %v3474 = vadd.f32 %v3438, %v3455
    %v3475 = vadd.f32 %v3439, %v3455
    %v3476 = vadd.f32 %v3440, %v3455
    %v3477 = vadd.f32 %v3441, %v3455
    %v3478 = vadd.f32 %v3442, %v3455
    %v3479 = vadd.f32 %v3443, %v3455
    %v3480 = vadd.f32 %v3444, %v3455
    %v3481 = vadd.f32 %v3445, %v3455
    %v3482 = vadd.f32 %v3446, %v3455
    %v3483 = vadd.f32 %v3447, %v3455
    %v3484 = vadd.f32 %v3448, %v3455
    %v3485 = vadd.f32 %v3449, %v3455
    %v3486 = vadd.f32 %v3450, %v3455
    %v3487 = vadd.f32 %v3451, %v3455
    %v3488 = vadd.f32 %v3452, %v3455
    %v3489 = vrsqrt.pop %v3457
    %v3490 = vmul.f32 %v3457, %v3489
    %vm3491 = vcmp.eq.f32.partialorder %v3457, inf
    %v3492 = vsel %vm3491, %v3457, %v3490
    %vm3493 = vcmp.eq.f32.partialorder %v3457, 0.0
    %v3494 = vand.u32 %v3457, 2147483648
    %v3495 = vsel %vm3493, %v3494, %v3492
    %v3496 = vrsqrt.pop %v3458
    %v3497 = vmul.f32 %v3458, %v3496
    %vm3498 = vcmp.eq.f32.partialorder %v3458, inf
    %v3499 = vsel %vm3498, %v3458, %v3497
    %vm3500 = vcmp.eq.f32.partialorder %v3458, 0.0
    %v3501 = vand.u32 %v3458, 2147483648
    %v3502 = vsel %vm3500, %v3501, %v3499
    %v3503 = vrsqrt.pop %v3459
    %v3504 = vmul.f32 %v3459, %v3503
    %vm3505 = vcmp.eq.f32.partialorder %v3459, inf
    %v3506 = vsel %vm3505, %v3459, %v3504
    %vm3507 = vcmp.eq.f32.partialorder %v3459, 0.0
    %v3508 = vand.u32 %v3459, 2147483648
    %v3509 = vsel %vm3507, %v3508, %v3506
    %v3510 = vrsqrt.pop %v3460
    %v3511 = vmul.f32 %v3460, %v3510
    %vm3512 = vcmp.eq.f32.partialorder %v3460, inf
    %v3513 = vsel %vm3512, %v3460, %v3511
    %vm3514 = vcmp.eq.f32.partialorder %v3460, 0.0
    %v3515 = vand.u32 %v3460, 2147483648
    %v3516 = vsel %vm3514, %v3515, %v3513
    %v3517 = vrsqrt.pop %v3461
    %v3518 = vmul.f32 %v3461, %v3517
    %vm3519 = vcmp.eq.f32.partialorder %v3461, inf
    %v3520 = vsel %vm3519, %v3461, %v3518
    %vm3521 = vcmp.eq.f32.partialorder %v3461, 0.0
    %v3522 = vand.u32 %v3461, 2147483648
    %v3523 = vsel %vm3521, %v3522, %v3520
    %v3524 = vrsqrt.pop %v3462
    %v3525 = vmul.f32 %v3462, %v3524
    %vm3526 = vcmp.eq.f32.partialorder %v3462, inf
    %v3527 = vsel %vm3526, %v3462, %v3525
    %vm3528 = vcmp.eq.f32.partialorder %v3462, 0.0
    %v3529 = vand.u32 %v3462, 2147483648
    %v3530 = vsel %vm3528, %v3529, %v3527
    %v3531 = vrsqrt.pop %v3463
    %v3532 = vmul.f32 %v3463, %v3531
    %vm3533 = vcmp.eq.f32.partialorder %v3463, inf
    %v3534 = vsel %vm3533, %v3463, %v3532
    %vm3535 = vcmp.eq.f32.partialorder %v3463, 0.0
    %v3536 = vand.u32 %v3463, 2147483648
    %v3537 = vsel %vm3535, %v3536, %v3534
    %v3538 = vrsqrt.pop %v3464
    %v3539 = vmul.f32 %v3464, %v3538
    %vm3540 = vcmp.eq.f32.partialorder %v3464, inf
    %v3541 = vsel %vm3540, %v3464, %v3539
    %vm3542 = vcmp.eq.f32.partialorder %v3464, 0.0
    %v3543 = vand.u32 %v3464, 2147483648
    %v3544 = vsel %vm3542, %v3543, %v3541
    %v3545 = vrsqrt.pop %v3465
    %v3546 = vmul.f32 %v3465, %v3545
    %vm3547 = vcmp.eq.f32.partialorder %v3465, inf
    %v3548 = vsel %vm3547, %v3465, %v3546
    %vm3549 = vcmp.eq.f32.partialorder %v3465, 0.0
    %v3550 = vand.u32 %v3465, 2147483648
    %v3551 = vsel %vm3549, %v3550, %v3548
    %v3552 = vrsqrt.pop %v3466
    %v3553 = vmul.f32 %v3466, %v3552
    %vm3554 = vcmp.eq.f32.partialorder %v3466, inf
    %v3555 = vsel %vm3554, %v3466, %v3553
    %vm3556 = vcmp.eq.f32.partialorder %v3466, 0.0
    %v3557 = vand.u32 %v3466, 2147483648
    %v3558 = vsel %vm3556, %v3557, %v3555
    %v3559 = vrsqrt.pop %v3467
    %v3560 = vmul.f32 %v3467, %v3559
    %vm3561 = vcmp.eq.f32.partialorder %v3467, inf
    %v3562 = vsel %vm3561, %v3467, %v3560
    %vm3563 = vcmp.eq.f32.partialorder %v3467, 0.0
    %v3564 = vand.u32 %v3467, 2147483648
    %v3565 = vsel %vm3563, %v3564, %v3562
    %v3566 = vrsqrt.pop %v3468
    %v3567 = vmul.f32 %v3468, %v3566
    %vm3568 = vcmp.eq.f32.partialorder %v3468, inf
    %v3569 = vsel %vm3568, %v3468, %v3567
    %vm3570 = vcmp.eq.f32.partialorder %v3468, 0.0
    %v3571 = vand.u32 %v3468, 2147483648
    %v3572 = vsel %vm3570, %v3571, %v3569
    %v3573 = vrsqrt.pop %v3469
    %v3574 = vmul.f32 %v3469, %v3573
    %vm3575 = vcmp.eq.f32.partialorder %v3469, inf
    %v3576 = vsel %vm3575, %v3469, %v3574
    %vm3577 = vcmp.eq.f32.partialorder %v3469, 0.0
    %v3578 = vand.u32 %v3469, 2147483648
    %v3579 = vsel %vm3577, %v3578, %v3576
    %v3580 = vrsqrt.pop %v3470
    %v3581 = vmul.f32 %v3470, %v3580
    %vm3582 = vcmp.eq.f32.partialorder %v3470, inf
    %v3583 = vsel %vm3582, %v3470, %v3581
    %vm3584 = vcmp.eq.f32.partialorder %v3470, 0.0
    %v3585 = vand.u32 %v3470, 2147483648
    %v3586 = vsel %vm3584, %v3585, %v3583
    %v3587 = vrsqrt.pop %v3471
    %v3588 = vmul.f32 %v3471, %v3587
    %vm3589 = vcmp.eq.f32.partialorder %v3471, inf
    %v3590 = vsel %vm3589, %v3471, %v3588
    %vm3591 = vcmp.eq.f32.partialorder %v3471, 0.0
    %v3592 = vand.u32 %v3471, 2147483648
    %v3593 = vsel %vm3591, %v3592, %v3590
    %v3594 = vrsqrt.pop %v3472
    %v3595 = vmul.f32 %v3472, %v3594
    %vm3596 = vcmp.eq.f32.partialorder %v3472, inf
    %v3597 = vsel %vm3596, %v3472, %v3595
    %vm3598 = vcmp.eq.f32.partialorder %v3472, 0.0
    %v3599 = vand.u32 %v3472, 2147483648
    %v3600 = vsel %vm3598, %v3599, %v3597
    %v3601 = vrsqrt.pop %v3473
    %v3602 = vmul.f32 %v3473, %v3601
    %vm3603 = vcmp.eq.f32.partialorder %v3473, inf
    %v3604 = vsel %vm3603, %v3473, %v3602
    %vm3605 = vcmp.eq.f32.partialorder %v3473, 0.0
    %v3606 = vand.u32 %v3473, 2147483648
    %v3607 = vsel %vm3605, %v3606, %v3604
    %v3608 = vrsqrt.pop %v3474
    %v3609 = vmul.f32 %v3474, %v3608
    %vm3610 = vcmp.eq.f32.partialorder %v3474, inf
    %v3611 = vsel %vm3610, %v3474, %v3609
    %vm3612 = vcmp.eq.f32.partialorder %v3474, 0.0
    %v3613 = vand.u32 %v3474, 2147483648
    %v3614 = vsel %vm3612, %v3613, %v3611
    %v3615 = vrsqrt.pop %v3475
    %v3616 = vmul.f32 %v3475, %v3615
    %vm3617 = vcmp.eq.f32.partialorder %v3475, inf
    %v3618 = vsel %vm3617, %v3475, %v3616
    %vm3619 = vcmp.eq.f32.partialorder %v3475, 0.0
    %v3620 = vand.u32 %v3475, 2147483648
    %v3621 = vsel %vm3619, %v3620, %v3618
    %v3622 = vrsqrt.pop %v3476
    %v3623 = vmul.f32 %v3476, %v3622
    %vm3624 = vcmp.eq.f32.partialorder %v3476, inf
    %v3625 = vsel %vm3624, %v3476, %v3623
    %vm3626 = vcmp.eq.f32.partialorder %v3476, 0.0
    %v3627 = vand.u32 %v3476, 2147483648
    %v3628 = vsel %vm3626, %v3627, %v3625
    %v3629 = vrsqrt.pop %v3477
    %v3630 = vmul.f32 %v3477, %v3629
    %vm3631 = vcmp.eq.f32.partialorder %v3477, inf
    %v3632 = vsel %vm3631, %v3477, %v3630
    %vm3633 = vcmp.eq.f32.partialorder %v3477, 0.0
    %v3634 = vand.u32 %v3477, 2147483648
    %v3635 = vsel %vm3633, %v3634, %v3632
    %v3636 = vrsqrt.pop %v3478
    %v3637 = vmul.f32 %v3478, %v3636
    %vm3638 = vcmp.eq.f32.partialorder %v3478, inf
    %v3639 = vsel %vm3638, %v3478, %v3637
    %vm3640 = vcmp.eq.f32.partialorder %v3478, 0.0
    %v3641 = vand.u32 %v3478, 2147483648
    %v3642 = vsel %vm3640, %v3641, %v3639
    %v3643 = vrsqrt.pop %v3479
    %v3644 = vmul.f32 %v3479, %v3643
    %vm3645 = vcmp.eq.f32.partialorder %v3479, inf
    %v3646 = vsel %vm3645, %v3479, %v3644
    %vm3647 = vcmp.eq.f32.partialorder %v3479, 0.0
    %v3648 = vand.u32 %v3479, 2147483648
    %v3649 = vsel %vm3647, %v3648, %v3646
    %v3650 = vrsqrt.pop %v3480
    %v3651 = vmul.f32 %v3480, %v3650
    %vm3652 = vcmp.eq.f32.partialorder %v3480, inf
    %v3653 = vsel %vm3652, %v3480, %v3651
    %vm3654 = vcmp.eq.f32.partialorder %v3480, 0.0
    %v3655 = vand.u32 %v3480, 2147483648
    %v3656 = vsel %vm3654, %v3655, %v3653
    %v3657 = vrsqrt.pop %v3481
    %v3658 = vmul.f32 %v3481, %v3657
    %vm3659 = vcmp.eq.f32.partialorder %v3481, inf
    %v3660 = vsel %vm3659, %v3481, %v3658
    %vm3661 = vcmp.eq.f32.partialorder %v3481, 0.0
    %v3662 = vand.u32 %v3481, 2147483648
    %v3663 = vsel %vm3661, %v3662, %v3660
    %v3664 = vrsqrt.pop %v3482
    %v3665 = vmul.f32 %v3482, %v3664
    %vm3666 = vcmp.eq.f32.partialorder %v3482, inf
    %v3667 = vsel %vm3666, %v3482, %v3665
    %vm3668 = vcmp.eq.f32.partialorder %v3482, 0.0
    %v3669 = vand.u32 %v3482, 2147483648
    %v3670 = vsel %vm3668, %v3669, %v3667
    %v3671 = vrsqrt.pop %v3483
    %v3672 = vmul.f32 %v3483, %v3671
    %vm3673 = vcmp.eq.f32.partialorder %v3483, inf
    %v3674 = vsel %vm3673, %v3483, %v3672
    %vm3675 = vcmp.eq.f32.partialorder %v3483, 0.0
    %v3676 = vand.u32 %v3483, 2147483648
    %v3677 = vsel %vm3675, %v3676, %v3674
    %v3678 = vrsqrt.pop %v3484
    %v3679 = vmul.f32 %v3484, %v3678
    %vm3680 = vcmp.eq.f32.partialorder %v3484, inf
    %v3681 = vsel %vm3680, %v3484, %v3679
    %vm3682 = vcmp.eq.f32.partialorder %v3484, 0.0
    %v3683 = vand.u32 %v3484, 2147483648
    %v3684 = vsel %vm3682, %v3683, %v3681
    %v3685 = vrsqrt.pop %v3485
    %v3686 = vmul.f32 %v3485, %v3685
    %vm3687 = vcmp.eq.f32.partialorder %v3485, inf
    %v3688 = vsel %vm3687, %v3485, %v3686
    %vm3689 = vcmp.eq.f32.partialorder %v3485, 0.0
    %v3690 = vand.u32 %v3485, 2147483648
    %v3691 = vsel %vm3689, %v3690, %v3688
    %v3692 = vrsqrt.pop %v3486
    %v3693 = vmul.f32 %v3486, %v3692
    %vm3694 = vcmp.eq.f32.partialorder %v3486, inf
    %v3695 = vsel %vm3694, %v3486, %v3693
    %vm3696 = vcmp.eq.f32.partialorder %v3486, 0.0
    %v3697 = vand.u32 %v3486, 2147483648
    %v3698 = vsel %vm3696, %v3697, %v3695
    %v3699 = vrsqrt.pop %v3487
    %v3700 = vmul.f32 %v3487, %v3699
    %vm3701 = vcmp.eq.f32.partialorder %v3487, inf
    %v3702 = vsel %vm3701, %v3487, %v3700
    %vm3703 = vcmp.eq.f32.partialorder %v3487, 0.0
    %v3704 = vand.u32 %v3487, 2147483648
    %v3705 = vsel %vm3703, %v3704, %v3702
    %v3706 = vrsqrt.pop %v3488
    %v3707 = vmul.f32 %v3488, %v3706
    %vm3708 = vcmp.eq.f32.partialorder %v3488, inf
    %v3709 = vsel %vm3708, %v3488, %v3707
    %vm3710 = vcmp.eq.f32.partialorder %v3488, 0.0
    %v3711 = vand.u32 %v3488, 2147483648
    %v3712 = vsel %vm3710, %v3711, %v3709
    %3713 = vset.pattern.permute.xlu0 7
    %3714 = vperm.xlu0 %3713, %v36
    %v3715 = vpop.permute.xlu0 %3714
    %v3717 = vadd.f32 %v3495, %v3715
    %v3718 = vadd.f32 %v3502, %v3715
    %v3719 = vadd.f32 %v3509, %v3715
    %v3720 = vadd.f32 %v3516, %v3715
    %v3721 = vadd.f32 %v3523, %v3715
    %v3722 = vadd.f32 %v3530, %v3715
    %v3723 = vadd.f32 %v3537, %v3715
    %v3724 = vadd.f32 %v3544, %v3715
    %v3725 = vadd.f32 %v3551, %v3715
    %v3726 = vadd.f32 %v3558, %v3715
    %v3727 = vadd.f32 %v3565, %v3715
    %v3728 = vadd.f32 %v3572, %v3715
    %v3729 = vadd.f32 %v3579, %v3715
    %v3730 = vadd.f32 %v3586, %v3715
    %v3731 = vadd.f32 %v3593, %v3715
    %v3732 = vadd.f32 %v3600, %v3715
    %v3733 = vadd.f32 %v3607, %v3715
    %v3734 = vadd.f32 %v3614, %v3715
    %v3735 = vadd.f32 %v3621, %v3715
    %v3736 = vadd.f32 %v3628, %v3715
    %v3737 = vadd.f32 %v3635, %v3715
    %v3738 = vadd.f32 %v3642, %v3715
    %v3739 = vadd.f32 %v3649, %v3715
    %v3740 = vadd.f32 %v3656, %v3715
    %v3741 = vadd.f32 %v3663, %v3715
    %v3742 = vadd.f32 %v3670, %v3715
    %v3743 = vadd.f32 %v3677, %v3715
    %v3744 = vadd.f32 %v3684, %v3715
    %v3745 = vadd.f32 %v3691, %v3715
    %v3746 = vadd.f32 %v3698, %v3715
    %v3747 = vadd.f32 %v3705, %v3715
    %v3748 = vadd.f32 %v3712, %v3715
    %v3749 = vlog2.pop %v3717
    %v3750 = vmul.f32 %v3749, 0.6931472
    %v3751 = vlog2.pop %v3718
    %v3752 = vmul.f32 %v3751, 0.6931472
    %v3753 = vlog2.pop %v3719
    %v3754 = vmul.f32 %v3753, 0.6931472
    %v3755 = vlog2.pop %v3720
    %v3756 = vmul.f32 %v3755, 0.6931472
    %v3757 = vlog2.pop %v3721
    %v3758 = vmul.f32 %v3757, 0.6931472
    %v3759 = vlog2.pop %v3722
    %v3760 = vmul.f32 %v3759, 0.6931472
    %v3761 = vlog2.pop %v3723
    %v3762 = vmul.f32 %v3761, 0.6931472
    %v3763 = vlog2.pop %v3724
    %v3764 = vmul.f32 %v3763, 0.6931472
    %v3765 = vlog2.pop %v3725
    %v3766 = vmul.f32 %v3765, 0.6931472
    %v3767 = vlog2.pop %v3726
    %v3768 = vmul.f32 %v3767, 0.6931472
    %v3769 = vlog2.pop %v3727
    %v3770 = vmul.f32 %v3769, 0.6931472
    %v3771 = vlog2.pop %v3728
    %v3772 = vmul.f32 %v3771, 0.6931472
    %v3773 = vlog2.pop %v3729
    %v3774 = vmul.f32 %v3773, 0.6931472
    %v3775 = vlog2.pop %v3730
    %v3776 = vmul.f32 %v3775, 0.6931472
    %v3777 = vlog2.pop %v3731
    %v3778 = vmul.f32 %v3777, 0.6931472
    %v3779 = vlog2.pop %v3732
    %v3780 = vmul.f32 %v3779, 0.6931472
    %v3781 = vlog2.pop %v3733
    %v3782 = vmul.f32 %v3781, 0.6931472
    %v3783 = vlog2.pop %v3734
    %v3784 = vmul.f32 %v3783, 0.6931472
    %v3785 = vlog2.pop %v3735
    %v3786 = vmul.f32 %v3785, 0.6931472
    %v3787 = vlog2.pop %v3736
    %v3788 = vmul.f32 %v3787, 0.6931472
    %v3789 = vlog2.pop %v3737
    %v3790 = vmul.f32 %v3789, 0.6931472
    %v3791 = vlog2.pop %v3738
    %v3792 = vmul.f32 %v3791, 0.6931472
    %v3793 = vlog2.pop %v3739
    %v3794 = vmul.f32 %v3793, 0.6931472
    %v3795 = vlog2.pop %v3740
    %v3796 = vmul.f32 %v3795, 0.6931472
    %v3797 = vlog2.pop %v3741
    %v3798 = vmul.f32 %v3797, 0.6931472
    %v3799 = vlog2.pop %v3742
    %v3800 = vmul.f32 %v3799, 0.6931472
    %v3801 = vlog2.pop %v3743
    %v3802 = vmul.f32 %v3801, 0.6931472
    %v3803 = vlog2.pop %v3744
    %v3804 = vmul.f32 %v3803, 0.6931472
    %v3805 = vlog2.pop %v3745
    %v3806 = vmul.f32 %v3805, 0.6931472
    %v3807 = vlog2.pop %v3746
    %v3808 = vmul.f32 %v3807, 0.6931472
    %v3809 = vlog2.pop %v3747
    %v3810 = vmul.f32 %v3809, 0.6931472
    %v3811 = vlog2.pop %v3748
    %v3812 = vmul.f32 %v3811, 0.6931472
    %3813 = vset.pattern.permute.xlu0 6
    %3814 = vperm.xlu0 %3813, %v36
    %v3815 = vpop.permute.xlu0 %3814
    %v3817 = vsub.f32 %v3815, %v3750
    %v3818 = vsub.f32 %v3815, %v3752
    %v3819 = vsub.f32 %v3815, %v3754
    %v3820 = vsub.f32 %v3815, %v3756
    %v3821 = vsub.f32 %v3815, %v3758
    %v3822 = vsub.f32 %v3815, %v3760
    %v3823 = vsub.f32 %v3815, %v3762
    %v3824 = vsub.f32 %v3815, %v3764
    %v3825 = vsub.f32 %v3815, %v3766
    %v3826 = vsub.f32 %v3815, %v3768
    %v3827 = vsub.f32 %v3815, %v3770
    %v3828 = vsub.f32 %v3815, %v3772
    %v3829 = vsub.f32 %v3815, %v3774
    %v3830 = vsub.f32 %v3815, %v3776
    %v3831 = vsub.f32 %v3815, %v3778
    %v3832 = vsub.f32 %v3815, %v3780
    %v3833 = vsub.f32 %v3815, %v3782
    %v3834 = vsub.f32 %v3815, %v3784
    %v3835 = vsub.f32 %v3815, %v3786
    %v3836 = vsub.f32 %v3815, %v3788
    %v3837 = vsub.f32 %v3815, %v3790
    %v3838 = vsub.f32 %v3815, %v3792
    %v3839 = vsub.f32 %v3815, %v3794
    %v3840 = vsub.f32 %v3815, %v3796
    %v3841 = vsub.f32 %v3815, %v3798
    %v3842 = vsub.f32 %v3815, %v3800
    %v3843 = vsub.f32 %v3815, %v3802
    %v3844 = vsub.f32 %v3815, %v3804
    %v3845 = vsub.f32 %v3815, %v3806
    %v3846 = vsub.f32 %v3815, %v3808
    %v3847 = vsub.f32 %v3815, %v3810
    %v3848 = vsub.f32 %v3815, %v3812
    %v3849 = vmul.f32 %v3495, 0.002
    %v3850 = vmul.f32 %v3502, 0.002
    %v3851 = vmul.f32 %v3509, 0.002
    %v3852 = vmul.f32 %v3516, 0.002
    %v3853 = vmul.f32 %v3523, 0.002
    %v3854 = vmul.f32 %v3530, 0.002
    %v3855 = vmul.f32 %v3537, 0.002
    %v3856 = vmul.f32 %v3544, 0.002
    %v3857 = vmul.f32 %v3551, 0.002
    %v3858 = vmul.f32 %v3558, 0.002
    %v3859 = vmul.f32 %v3565, 0.002
    %v3860 = vmul.f32 %v3572, 0.002
    %v3861 = vmul.f32 %v3579, 0.002
    %v3862 = vmul.f32 %v3586, 0.002
    %v3863 = vmul.f32 %v3593, 0.002
    %v3864 = vmul.f32 %v3600, 0.002
    %v3865 = vmul.f32 %v3607, 0.002
    %v3866 = vmul.f32 %v3614, 0.002
    %v3867 = vmul.f32 %v3621, 0.002
    %v3868 = vmul.f32 %v3628, 0.002
    %v3869 = vmul.f32 %v3635, 0.002
    %v3870 = vmul.f32 %v3642, 0.002
    %v3871 = vmul.f32 %v3649, 0.002
    %v3872 = vmul.f32 %v3656, 0.002
    %v3873 = vmul.f32 %v3663, 0.002
    %v3874 = vmul.f32 %v3670, 0.002
    %v3875 = vmul.f32 %v3677, 0.002
    %v3876 = vmul.f32 %v3684, 0.002
    %v3877 = vmul.f32 %v3691, 0.002
    %v3878 = vmul.f32 %v3698, 0.002
    %v3879 = vmul.f32 %v3705, 0.002
    %v3880 = vmul.f32 %v3712, 0.002
    %v3881 = vsub.f32 %v3817, %v3849
    %v3882 = vsub.f32 %v3818, %v3850
    %v3883 = vsub.f32 %v3819, %v3851
    %v3884 = vsub.f32 %v3820, %v3852
    %v3885 = vsub.f32 %v3821, %v3853
    %v3886 = vsub.f32 %v3822, %v3854
    %v3887 = vsub.f32 %v3823, %v3855
    %v3888 = vsub.f32 %v3824, %v3856
    %v3889 = vsub.f32 %v3825, %v3857
    %v3890 = vsub.f32 %v3826, %v3858
    %v3891 = vsub.f32 %v3827, %v3859
    %v3892 = vsub.f32 %v3828, %v3860
    %v3893 = vsub.f32 %v3829, %v3861
    %v3894 = vsub.f32 %v3830, %v3862
    %v3895 = vsub.f32 %v3831, %v3863
    %v3896 = vsub.f32 %v3832, %v3864
    %v3897 = vsub.f32 %v3833, %v3865
    %v3898 = vsub.f32 %v3834, %v3866
    %v3899 = vsub.f32 %v3835, %v3867
    %v3900 = vsub.f32 %v3836, %v3868
    %v3901 = vsub.f32 %v3837, %v3869
    %v3902 = vsub.f32 %v3838, %v3870
    %v3903 = vsub.f32 %v3839, %v3871
    %v3904 = vsub.f32 %v3840, %v3872
    %v3905 = vsub.f32 %v3841, %v3873
    %v3906 = vsub.f32 %v3842, %v3874
    %v3907 = vsub.f32 %v3843, %v3875
    %v3908 = vsub.f32 %v3844, %v3876
    %v3909 = vsub.f32 %v3845, %v3877
    %v3910 = vsub.f32 %v3846, %v3878
    %v3911 = vsub.f32 %v3847, %v3879
    %v3912 = vsub.f32 %v3848, %v3880
    %v3917 = vlaneseq
    %v3918 = vshrl.u32 %v3917, 7
    %v3919 = vsub.s32 0, %v3918
    %v3920 = vrot.slane %v119, %v3919
    %v3921 = vlaneseq
    %v3922 = vshrl.u32 %v3921, 7
    %v3923 = vsub.s32 1, %v3922
    %v3924 = vrot.slane %v119, %v3923
    %v3925 = vlaneseq
    %v3926 = vshrl.u32 %v3925, 7
    %v3927 = vsub.s32 2, %v3926
    %v3928 = vrot.slane %v119, %v3927
    %v3929 = vlaneseq
    %v3930 = vshrl.u32 %v3929, 7
    %v3931 = vsub.s32 3, %v3930
    %v3932 = vrot.slane %v119, %v3931
    %v3933 = vlaneseq
    %v3934 = vshrl.u32 %v3933, 7
    %v3935 = vsub.s32 4, %v3934
    %v3936 = vrot.slane %v119, %v3935
    %v3937 = vlaneseq
    %v3938 = vshrl.u32 %v3937, 7
    %v3939 = vsub.s32 5, %v3938
    %v3940 = vrot.slane %v119, %v3939
    %v3941 = vlaneseq
    %v3942 = vshrl.u32 %v3941, 7
    %v3943 = vsub.s32 6, %v3942
    %v3944 = vrot.slane %v119, %v3943
    %v3945 = vlaneseq
    %v3946 = vshrl.u32 %v3945, 7
    %v3947 = vsub.s32 7, %v3946
    %v3948 = vrot.slane %v119, %v3947
    %v3949 = vlaneseq
    %v3950 = vshrl.u32 %v3949, 7
    %v3951 = vsub.s32 0, %v3950
    %v3952 = vrot.slane %v123, %v3951
    %v3953 = vlaneseq
    %v3954 = vshrl.u32 %v3953, 7
    %v3955 = vsub.s32 1, %v3954
    %v3956 = vrot.slane %v123, %v3955
    %v3957 = vlaneseq
    %v3958 = vshrl.u32 %v3957, 7
    %v3959 = vsub.s32 2, %v3958
    %v3960 = vrot.slane %v123, %v3959
    %v3961 = vlaneseq
    %v3962 = vshrl.u32 %v3961, 7
    %v3963 = vsub.s32 3, %v3962
    %v3964 = vrot.slane %v123, %v3963
    %v3965 = vlaneseq
    %v3966 = vshrl.u32 %v3965, 7
    %v3967 = vsub.s32 4, %v3966
    %v3968 = vrot.slane %v123, %v3967
    %v3969 = vlaneseq
    %v3970 = vshrl.u32 %v3969, 7
    %v3971 = vsub.s32 5, %v3970
    %v3972 = vrot.slane %v123, %v3971
    %v3973 = vlaneseq
    %v3974 = vshrl.u32 %v3973, 7
    %v3975 = vsub.s32 6, %v3974
    %v3976 = vrot.slane %v123, %v3975
    %v3977 = vlaneseq
    %v3978 = vshrl.u32 %v3977, 7
    %v3979 = vsub.s32 7, %v3978
    %v3980 = vrot.slane %v123, %v3979
    %v3981 = vlaneseq
    %v3982 = vshrl.u32 %v3981, 7
    %v3983 = vsub.s32 0, %v3982
    %v3984 = vrot.slane %v127, %v3983
    %v3985 = vlaneseq
    %v3986 = vshrl.u32 %v3985, 7
    %v3987 = vsub.s32 1, %v3986
    %v3988 = vrot.slane %v127, %v3987
    %v3989 = vlaneseq
    %v3990 = vshrl.u32 %v3989, 7
    %v3991 = vsub.s32 2, %v3990
    %v3992 = vrot.slane %v127, %v3991
    %v3993 = vlaneseq
    %v3994 = vshrl.u32 %v3993, 7
    %v3995 = vsub.s32 3, %v3994
    %v3996 = vrot.slane %v127, %v3995
    %v3997 = vlaneseq
    %v3998 = vshrl.u32 %v3997, 7
    %v3999 = vsub.s32 4, %v3998
    %v4000 = vrot.slane %v127, %v3999
    %v4001 = vlaneseq
    %v4002 = vshrl.u32 %v4001, 7
    %v4003 = vsub.s32 5, %v4002
    %v4004 = vrot.slane %v127, %v4003
    %v4005 = vlaneseq
    %v4006 = vshrl.u32 %v4005, 7
    %v4007 = vsub.s32 6, %v4006
    %v4008 = vrot.slane %v127, %v4007
    %v4009 = vlaneseq
    %v4010 = vshrl.u32 %v4009, 7
    %v4011 = vsub.s32 7, %v4010
    %v4012 = vrot.slane %v127, %v4011
    %v4013 = vlaneseq
    %v4014 = vshrl.u32 %v4013, 7
    %v4015 = vsub.s32 0, %v4014
    %v4016 = vrot.slane %v131, %v4015
    %v4017 = vlaneseq
    %v4018 = vshrl.u32 %v4017, 7
    %v4019 = vsub.s32 1, %v4018
    %v4020 = vrot.slane %v131, %v4019
    %v4021 = vlaneseq
    %v4022 = vshrl.u32 %v4021, 7
    %v4023 = vsub.s32 2, %v4022
    %v4024 = vrot.slane %v131, %v4023
    %v4025 = vlaneseq
    %v4026 = vshrl.u32 %v4025, 7
    %v4027 = vsub.s32 3, %v4026
    %v4028 = vrot.slane %v131, %v4027
    %v4029 = vlaneseq
    %v4030 = vshrl.u32 %v4029, 7
    %v4031 = vsub.s32 4, %v4030
    %v4032 = vrot.slane %v131, %v4031
    %v4033 = vlaneseq
    %v4034 = vshrl.u32 %v4033, 7
    %v4035 = vsub.s32 5, %v4034
    %v4036 = vrot.slane %v131, %v4035
    %v4037 = vlaneseq
    %v4038 = vshrl.u32 %v4037, 7
    %v4039 = vsub.s32 6, %v4038
    %v4040 = vrot.slane %v131, %v4039
    %v4041 = vlaneseq
    %v4042 = vshrl.u32 %v4041, 7
    %v4043 = vsub.s32 7, %v4042
    %v4044 = vrot.slane %v131, %v4043
    %v4077 = vadd.f32 %v3881, %v3920
    %v4078 = vadd.f32 %v3882, %v3924
    %v4079 = vadd.f32 %v3883, %v3928
    %v4080 = vadd.f32 %v3884, %v3932
    %v4081 = vadd.f32 %v3885, %v3936
    %v4082 = vadd.f32 %v3886, %v3940
    %v4083 = vadd.f32 %v3887, %v3944
    %v4084 = vadd.f32 %v3888, %v3948
    %v4085 = vadd.f32 %v3889, %v3952
    %v4086 = vadd.f32 %v3890, %v3956
    %v4087 = vadd.f32 %v3891, %v3960
    %v4088 = vadd.f32 %v3892, %v3964
    %v4089 = vadd.f32 %v3893, %v3968
    %v4090 = vadd.f32 %v3894, %v3972
    %v4091 = vadd.f32 %v3895, %v3976
    %v4092 = vadd.f32 %v3896, %v3980
    %v4093 = vadd.f32 %v3897, %v3984
    %v4094 = vadd.f32 %v3898, %v3988
    %v4095 = vadd.f32 %v3899, %v3992
    %v4096 = vadd.f32 %v3900, %v3996
    %v4097 = vadd.f32 %v3901, %v4000
    %v4098 = vadd.f32 %v3902, %v4004
    %v4099 = vadd.f32 %v3903, %v4008
    %v4100 = vadd.f32 %v3904, %v4012
    %v4101 = vadd.f32 %v3905, %v4016
    %v4102 = vadd.f32 %v3906, %v4020
    %v4103 = vadd.f32 %v3907, %v4024
    %v4104 = vadd.f32 %v3908, %v4028
    %v4105 = vadd.f32 %v3909, %v4032
    %v4106 = vadd.f32 %v3910, %v4036
    %v4107 = vadd.f32 %v3911, %v4040
    %v4108 = vadd.f32 %v3912, %v4044
    %v4109 = vmul.f32 %v4077, 0.213
    %v4110 = vmul.f32 %v4078, 0.213
    %v4111 = vmul.f32 %v4079, 0.213
    %v4112 = vmul.f32 %v4080, 0.213
    %v4113 = vmul.f32 %v4081, 0.213
    %v4114 = vmul.f32 %v4082, 0.213
    %v4115 = vmul.f32 %v4083, 0.213
    %v4116 = vmul.f32 %v4084, 0.213
    %v4117 = vmul.f32 %v4085, 0.213
    %v4118 = vmul.f32 %v4086, 0.213
    %v4119 = vmul.f32 %v4087, 0.213
    %v4120 = vmul.f32 %v4088, 0.213
    %v4121 = vmul.f32 %v4089, 0.213
    %v4122 = vmul.f32 %v4090, 0.213
    %v4123 = vmul.f32 %v4091, 0.213
    %v4124 = vmul.f32 %v4092, 0.213
    %v4125 = vmul.f32 %v4093, 0.213
    %v4126 = vmul.f32 %v4094, 0.213
    %v4127 = vmul.f32 %v4095, 0.213
    %v4128 = vmul.f32 %v4096, 0.213
    %v4129 = vmul.f32 %v4097, 0.213
    %v4130 = vmul.f32 %v4098, 0.213
    %v4131 = vmul.f32 %v4099, 0.213
    %v4132 = vmul.f32 %v4100, 0.213
    %v4133 = vmul.f32 %v4101, 0.213
    %v4134 = vmul.f32 %v4102, 0.213
    %v4135 = vmul.f32 %v4103, 0.213
    %v4136 = vmul.f32 %v4104, 0.213
    %v4137 = vmul.f32 %v4105, 0.213
    %v4138 = vmul.f32 %v4106, 0.213
    %v4139 = vmul.f32 %v4107, 0.213
    %v4140 = vmul.f32 %v4108, 0.213
    %v4141 = vsub.f32 2.603, %v4109
    %v4142 = vsub.f32 2.603, %v4110
    %v4143 = vsub.f32 2.603, %v4111
    %v4144 = vsub.f32 2.603, %v4112
    %v4145 = vsub.f32 2.603, %v4113
    %v4146 = vsub.f32 2.603, %v4114
    %v4147 = vsub.f32 2.603, %v4115
    %v4148 = vsub.f32 2.603, %v4116
    %v4149 = vsub.f32 2.603, %v4117
    %v4150 = vsub.f32 2.603, %v4118
    %v4151 = vsub.f32 2.603, %v4119
    %v4152 = vsub.f32 2.603, %v4120
    %v4153 = vsub.f32 2.603, %v4121
    %v4154 = vsub.f32 2.603, %v4122
    %v4155 = vsub.f32 2.603, %v4123
    %v4156 = vsub.f32 2.603, %v4124
    %v4157 = vsub.f32 2.603, %v4125
    %v4158 = vsub.f32 2.603, %v4126
    %v4159 = vsub.f32 2.603, %v4127
    %v4160 = vsub.f32 2.603, %v4128
    %v4161 = vsub.f32 2.603, %v4129
    %v4162 = vsub.f32 2.603, %v4130
    %v4163 = vsub.f32 2.603, %v4131
    %v4164 = vsub.f32 2.603, %v4132
    %v4165 = vsub.f32 2.603, %v4133
    %v4166 = vsub.f32 2.603, %v4134
    %v4167 = vsub.f32 2.603, %v4135
    %v4168 = vsub.f32 2.603, %v4136
    %v4169 = vsub.f32 2.603, %v4137
    %v4170 = vsub.f32 2.603, %v4138
    %v4171 = vsub.f32 2.603, %v4139
    %v4172 = vsub.f32 2.603, %v4140
    %v4173 = vmul.f32 %v4077, %v4141
    %v4174 = vmul.f32 %v4078, %v4142
    %v4175 = vmul.f32 %v4079, %v4143
    %v4176 = vmul.f32 %v4080, %v4144
    %v4177 = vmul.f32 %v4081, %v4145
    %v4178 = vmul.f32 %v4082, %v4146
    %v4179 = vmul.f32 %v4083, %v4147
    %v4180 = vmul.f32 %v4084, %v4148
    %v4181 = vmul.f32 %v4085, %v4149
    %v4182 = vmul.f32 %v4086, %v4150
    %v4183 = vmul.f32 %v4087, %v4151
    %v4184 = vmul.f32 %v4088, %v4152
    %v4185 = vmul.f32 %v4089, %v4153
    %v4186 = vmul.f32 %v4090, %v4154
    %v4187 = vmul.f32 %v4091, %v4155
    %v4188 = vmul.f32 %v4092, %v4156
    %v4189 = vmul.f32 %v4093, %v4157
    %v4190 = vmul.f32 %v4094, %v4158
    %v4191 = vmul.f32 %v4095, %v4159
    %v4192 = vmul.f32 %v4096, %v4160
    %v4193 = vmul.f32 %v4097, %v4161
    %v4194 = vmul.f32 %v4098, %v4162
    %v4195 = vmul.f32 %v4099, %v4163
    %v4196 = vmul.f32 %v4100, %v4164
    %v4197 = vmul.f32 %v4101, %v4165
    %v4198 = vmul.f32 %v4102, %v4166
    %v4199 = vmul.f32 %v4103, %v4167
    %v4200 = vmul.f32 %v4104, %v4168
    %v4201 = vmul.f32 %v4105, %v4169
    %v4202 = vmul.f32 %v4106, %v4170
    %v4203 = vmul.f32 %v4107, %v4171
    %v4204 = vmul.f32 %v4108, %v4172
    %v4205 = vadd.f32 %v4173, 2.002
    %v4206 = vadd.f32 %v4174, 2.002
    %v4207 = vadd.f32 %v4175, 2.002
    %v4208 = vadd.f32 %v4176, 2.002
    %v4209 = vadd.f32 %v4177, 2.002
    %v4210 = vadd.f32 %v4178, 2.002
    %v4211 = vadd.f32 %v4179, 2.002
    %v4212 = vadd.f32 %v4180, 2.002
    %v4213 = vadd.f32 %v4181, 2.002
    %v4214 = vadd.f32 %v4182, 2.002
    %v4215 = vadd.f32 %v4183, 2.002
    %v4216 = vadd.f32 %v4184, 2.002
    %v4217 = vadd.f32 %v4185, 2.002
    %v4218 = vadd.f32 %v4186, 2.002
    %v4219 = vadd.f32 %v4187, 2.002
    %v4220 = vadd.f32 %v4188, 2.002
    %v4221 = vadd.f32 %v4189, 2.002
    %v4222 = vadd.f32 %v4190, 2.002
    %v4223 = vadd.f32 %v4191, 2.002
    %v4224 = vadd.f32 %v4192, 2.002
    %v4225 = vadd.f32 %v4193, 2.002
    %v4226 = vadd.f32 %v4194, 2.002
    %v4227 = vadd.f32 %v4195, 2.002
    %v4228 = vadd.f32 %v4196, 2.002
    %v4229 = vadd.f32 %v4197, 2.002
    %v4230 = vadd.f32 %v4198, 2.002
    %v4231 = vadd.f32 %v4199, 2.002
    %v4232 = vadd.f32 %v4200, 2.002
    %v4233 = vadd.f32 %v4201, 2.002
    %v4234 = vadd.f32 %v4202, 2.002
    %v4235 = vadd.f32 %v4203, 2.002
    %v4236 = vadd.f32 %v4204, 2.002
    %v4237 = vmul.f32 %v4077, 2.262
    %v4238 = vmul.f32 %v4078, 2.262
    %v4239 = vmul.f32 %v4079, 2.262
    %v4240 = vmul.f32 %v4080, 2.262
    %v4241 = vmul.f32 %v4081, 2.262
    %v4242 = vmul.f32 %v4082, 2.262
    %v4243 = vmul.f32 %v4083, 2.262
    %v4244 = vmul.f32 %v4084, 2.262
    %v4245 = vmul.f32 %v4085, 2.262
    %v4246 = vmul.f32 %v4086, 2.262
    %v4247 = vmul.f32 %v4087, 2.262
    %v4248 = vmul.f32 %v4088, 2.262
    %v4249 = vmul.f32 %v4089, 2.262
    %v4250 = vmul.f32 %v4090, 2.262
    %v4251 = vmul.f32 %v4091, 2.262
    %v4252 = vmul.f32 %v4092, 2.262
    %v4253 = vmul.f32 %v4093, 2.262
    %v4254 = vmul.f32 %v4094, 2.262
    %v4255 = vmul.f32 %v4095, 2.262
    %v4256 = vmul.f32 %v4096, 2.262
    %v4257 = vmul.f32 %v4097, 2.262
    %v4258 = vmul.f32 %v4098, 2.262
    %v4259 = vmul.f32 %v4099, 2.262
    %v4260 = vmul.f32 %v4100, 2.262
    %v4261 = vmul.f32 %v4101, 2.262
    %v4262 = vmul.f32 %v4102, 2.262
    %v4263 = vmul.f32 %v4103, 2.262
    %v4264 = vmul.f32 %v4104, 2.262
    %v4265 = vmul.f32 %v4105, 2.262
    %v4266 = vmul.f32 %v4106, 2.262
    %v4267 = vmul.f32 %v4107, 2.262
    %v4268 = vmul.f32 %v4108, 2.262
    %v4269 = vadd.f32 %v4237, 2.165
    %v4270 = vadd.f32 %v4238, 2.165
    %v4271 = vadd.f32 %v4239, 2.165
    %v4272 = vadd.f32 %v4240, 2.165
    %v4273 = vadd.f32 %v4241, 2.165
    %v4274 = vadd.f32 %v4242, 2.165
    %v4275 = vadd.f32 %v4243, 2.165
    %v4276 = vadd.f32 %v4244, 2.165
    %v4277 = vadd.f32 %v4245, 2.165
    %v4278 = vadd.f32 %v4246, 2.165
    %v4279 = vadd.f32 %v4247, 2.165
    %v4280 = vadd.f32 %v4248, 2.165
    %v4281 = vadd.f32 %v4249, 2.165
    %v4282 = vadd.f32 %v4250, 2.165
    %v4283 = vadd.f32 %v4251, 2.165
    %v4284 = vadd.f32 %v4252, 2.165
    %v4285 = vadd.f32 %v4253, 2.165
    %v4286 = vadd.f32 %v4254, 2.165
    %v4287 = vadd.f32 %v4255, 2.165
    %v4288 = vadd.f32 %v4256, 2.165
    %v4289 = vadd.f32 %v4257, 2.165
    %v4290 = vadd.f32 %v4258, 2.165
    %v4291 = vadd.f32 %v4259, 2.165
    %v4292 = vadd.f32 %v4260, 2.165
    %v4293 = vadd.f32 %v4261, 2.165
    %v4294 = vadd.f32 %v4262, 2.165
    %v4295 = vadd.f32 %v4263, 2.165
    %v4296 = vadd.f32 %v4264, 2.165
    %v4297 = vadd.f32 %v4265, 2.165
    %v4298 = vadd.f32 %v4266, 2.165
    %v4299 = vadd.f32 %v4267, 2.165
    %v4300 = vadd.f32 %v4268, 2.165
    %vm4301 = vcmp.gt.f32.partialorder %v4205, 4.0
    %vm4302 = vcmp.gt.f32.partialorder %v4206, 4.0
    %vm4303 = vcmp.gt.f32.partialorder %v4207, 4.0
    %vm4304 = vcmp.gt.f32.partialorder %v4208, 4.0
    %vm4305 = vcmp.gt.f32.partialorder %v4209, 4.0
    %vm4306 = vcmp.gt.f32.partialorder %v4210, 4.0
    %vm4307 = vcmp.gt.f32.partialorder %v4211, 4.0
    %vm4308 = vcmp.gt.f32.partialorder %v4212, 4.0
    %vm4309 = vcmp.gt.f32.partialorder %v4213, 4.0
    %vm4310 = vcmp.gt.f32.partialorder %v4214, 4.0
    %vm4311 = vcmp.gt.f32.partialorder %v4215, 4.0
    %vm4312 = vcmp.gt.f32.partialorder %v4216, 4.0
    %vm4313 = vcmp.gt.f32.partialorder %v4217, 4.0
    %vm4314 = vcmp.gt.f32.partialorder %v4218, 4.0
    %vm4315 = vcmp.gt.f32.partialorder %v4219, 4.0
    %vm4316 = vcmp.gt.f32.partialorder %v4220, 4.0
    %vm4317 = vcmp.gt.f32.partialorder %v4221, 4.0
    %vm4318 = vcmp.gt.f32.partialorder %v4222, 4.0
    %vm4319 = vcmp.gt.f32.partialorder %v4223, 4.0
    %vm4320 = vcmp.gt.f32.partialorder %v4224, 4.0
    %vm4321 = vcmp.gt.f32.partialorder %v4225, 4.0
    %vm4322 = vcmp.gt.f32.partialorder %v4226, 4.0
    %vm4323 = vcmp.gt.f32.partialorder %v4227, 4.0
    %vm4324 = vcmp.gt.f32.partialorder %v4228, 4.0
    %vm4325 = vcmp.gt.f32.partialorder %v4229, 4.0
    %vm4326 = vcmp.gt.f32.partialorder %v4230, 4.0
    %vm4327 = vcmp.gt.f32.partialorder %v4231, 4.0
    %vm4328 = vcmp.gt.f32.partialorder %v4232, 4.0
    %vm4329 = vcmp.gt.f32.partialorder %v4233, 4.0
    %vm4330 = vcmp.gt.f32.partialorder %v4234, 4.0
    %vm4331 = vcmp.gt.f32.partialorder %v4235, 4.0
    %vm4332 = vcmp.gt.f32.partialorder %v4236, 4.0
    %v4333 = vsel %vm4301, %v4205, %v4269
    %v4334 = vsel %vm4302, %v4206, %v4270
    %v4335 = vsel %vm4303, %v4207, %v4271
    %v4336 = vsel %vm4304, %v4208, %v4272
    %v4337 = vsel %vm4305, %v4209, %v4273
    %v4338 = vsel %vm4306, %v4210, %v4274
    %v4339 = vsel %vm4307, %v4211, %v4275
    %v4340 = vsel %vm4308, %v4212, %v4276
    %v4341 = vsel %vm4309, %v4213, %v4277
    %v4342 = vsel %vm4310, %v4214, %v4278
    %v4343 = vsel %vm4311, %v4215, %v4279
    %v4344 = vsel %vm4312, %v4216, %v4280
    %v4345 = vsel %vm4313, %v4217, %v4281
    %v4346 = vsel %vm4314, %v4218, %v4282
    %v4347 = vsel %vm4315, %v4219, %v4283
    %v4348 = vsel %vm4316, %v4220, %v4284
    %v4349 = vsel %vm4317, %v4221, %v4285
    %v4350 = vsel %vm4318, %v4222, %v4286
    %v4351 = vsel %vm4319, %v4223, %v4287
    %v4352 = vsel %vm4320, %v4224, %v4288
    %v4353 = vsel %vm4321, %v4225, %v4289
    %v4354 = vsel %vm4322, %v4226, %v4290
    %v4355 = vsel %vm4323, %v4227, %v4291
    %v4356 = vsel %vm4324, %v4228, %v4292
    %v4357 = vsel %vm4325, %v4229, %v4293
    %v4358 = vsel %vm4326, %v4230, %v4294
    %v4359 = vsel %vm4327, %v4231, %v4295
    %v4360 = vsel %vm4328, %v4232, %v4296
    %v4361 = vsel %vm4329, %v4233, %v4297
    %v4362 = vsel %vm4330, %v4234, %v4298
    %v4363 = vsel %vm4331, %v4235, %v4299
    %v4364 = vsel %vm4332, %v4236, %v4300
    %v4369 = vlaneseq
    %v4370 = vshrl.u32 %v4369, 7
    %v4371 = vsub.s32 0, %v4370
    %v4372 = vrot.slane %v135, %v4371
    %v4373 = vlaneseq
    %v4374 = vshrl.u32 %v4373, 7
    %v4375 = vsub.s32 1, %v4374
    %v4376 = vrot.slane %v135, %v4375
    %v4377 = vlaneseq
    %v4378 = vshrl.u32 %v4377, 7
    %v4379 = vsub.s32 2, %v4378
    %v4380 = vrot.slane %v135, %v4379
    %v4381 = vlaneseq
    %v4382 = vshrl.u32 %v4381, 7
    %v4383 = vsub.s32 3, %v4382
    %v4384 = vrot.slane %v135, %v4383
    %v4385 = vlaneseq
    %v4386 = vshrl.u32 %v4385, 7
    %v4387 = vsub.s32 4, %v4386
    %v4388 = vrot.slane %v135, %v4387
    %v4389 = vlaneseq
    %v4390 = vshrl.u32 %v4389, 7
    %v4391 = vsub.s32 5, %v4390
    %v4392 = vrot.slane %v135, %v4391
    %v4393 = vlaneseq
    %v4394 = vshrl.u32 %v4393, 7
    %v4395 = vsub.s32 6, %v4394
    %v4396 = vrot.slane %v135, %v4395
    %v4397 = vlaneseq
    %v4398 = vshrl.u32 %v4397, 7
    %v4399 = vsub.s32 7, %v4398
    %v4400 = vrot.slane %v135, %v4399
    %v4401 = vlaneseq
    %v4402 = vshrl.u32 %v4401, 7
    %v4403 = vsub.s32 0, %v4402
    %v4404 = vrot.slane %v139, %v4403
    %v4405 = vlaneseq
    %v4406 = vshrl.u32 %v4405, 7
    %v4407 = vsub.s32 1, %v4406
    %v4408 = vrot.slane %v139, %v4407
    %v4409 = vlaneseq
    %v4410 = vshrl.u32 %v4409, 7
    %v4411 = vsub.s32 2, %v4410
    %v4412 = vrot.slane %v139, %v4411
    %v4413 = vlaneseq
    %v4414 = vshrl.u32 %v4413, 7
    %v4415 = vsub.s32 3, %v4414
    %v4416 = vrot.slane %v139, %v4415
    %v4417 = vlaneseq
    %v4418 = vshrl.u32 %v4417, 7
    %v4419 = vsub.s32 4, %v4418
    %v4420 = vrot.slane %v139, %v4419
    %v4421 = vlaneseq
    %v4422 = vshrl.u32 %v4421, 7
    %v4423 = vsub.s32 5, %v4422
    %v4424 = vrot.slane %v139, %v4423
    %v4425 = vlaneseq
    %v4426 = vshrl.u32 %v4425, 7
    %v4427 = vsub.s32 6, %v4426
    %v4428 = vrot.slane %v139, %v4427
    %v4429 = vlaneseq
    %v4430 = vshrl.u32 %v4429, 7
    %v4431 = vsub.s32 7, %v4430
    %v4432 = vrot.slane %v139, %v4431
    %v4433 = vlaneseq
    %v4434 = vshrl.u32 %v4433, 7
    %v4435 = vsub.s32 0, %v4434
    %v4436 = vrot.slane %v143, %v4435
    %v4437 = vlaneseq
    %v4438 = vshrl.u32 %v4437, 7
    %v4439 = vsub.s32 1, %v4438
    %v4440 = vrot.slane %v143, %v4439
    %v4441 = vlaneseq
    %v4442 = vshrl.u32 %v4441, 7
    %v4443 = vsub.s32 2, %v4442
    %v4444 = vrot.slane %v143, %v4443
    %v4445 = vlaneseq
    %v4446 = vshrl.u32 %v4445, 7
    %v4447 = vsub.s32 3, %v4446
    %v4448 = vrot.slane %v143, %v4447
    %v4449 = vlaneseq
    %v4450 = vshrl.u32 %v4449, 7
    %v4451 = vsub.s32 4, %v4450
    %v4452 = vrot.slane %v143, %v4451
    %v4453 = vlaneseq
    %v4454 = vshrl.u32 %v4453, 7
    %v4455 = vsub.s32 5, %v4454
    %v4456 = vrot.slane %v143, %v4455
    %v4457 = vlaneseq
    %v4458 = vshrl.u32 %v4457, 7
    %v4459 = vsub.s32 6, %v4458
    %v4460 = vrot.slane %v143, %v4459
    %v4461 = vlaneseq
    %v4462 = vshrl.u32 %v4461, 7
    %v4463 = vsub.s32 7, %v4462
    %v4464 = vrot.slane %v143, %v4463
    %v4465 = vlaneseq
    %v4466 = vshrl.u32 %v4465, 7
    %v4467 = vsub.s32 0, %v4466
    %v4468 = vrot.slane %v147, %v4467
    %v4469 = vlaneseq
    %v4470 = vshrl.u32 %v4469, 7
    %v4471 = vsub.s32 1, %v4470
    %v4472 = vrot.slane %v147, %v4471
    %v4473 = vlaneseq
    %v4474 = vshrl.u32 %v4473, 7
    %v4475 = vsub.s32 2, %v4474
    %v4476 = vrot.slane %v147, %v4475
    %v4477 = vlaneseq
    %v4478 = vshrl.u32 %v4477, 7
    %v4479 = vsub.s32 3, %v4478
    %v4480 = vrot.slane %v147, %v4479
    %v4481 = vlaneseq
    %v4482 = vshrl.u32 %v4481, 7
    %v4483 = vsub.s32 4, %v4482
    %v4484 = vrot.slane %v147, %v4483
    %v4485 = vlaneseq
    %v4486 = vshrl.u32 %v4485, 7
    %v4487 = vsub.s32 5, %v4486
    %v4488 = vrot.slane %v147, %v4487
    %v4489 = vlaneseq
    %v4490 = vshrl.u32 %v4489, 7
    %v4491 = vsub.s32 6, %v4490
    %v4492 = vrot.slane %v147, %v4491
    %v4493 = vlaneseq
    %v4494 = vshrl.u32 %v4493, 7
    %v4495 = vsub.s32 7, %v4494
    %v4496 = vrot.slane %v147, %v4495
    %v4529 = vmul.f32 %v4333, %v4372
    %v4530 = vmul.f32 %v4334, %v4376
    %v4531 = vmul.f32 %v4335, %v4380
    %v4532 = vmul.f32 %v4336, %v4384
    %v4533 = vmul.f32 %v4337, %v4388
    %v4534 = vmul.f32 %v4338, %v4392
    %v4535 = vmul.f32 %v4339, %v4396
    %v4536 = vmul.f32 %v4340, %v4400
    %v4537 = vmul.f32 %v4341, %v4404
    %v4538 = vmul.f32 %v4342, %v4408
    %v4539 = vmul.f32 %v4343, %v4412
    %v4540 = vmul.f32 %v4344, %v4416
    %v4541 = vmul.f32 %v4345, %v4420
    %v4542 = vmul.f32 %v4346, %v4424
    %v4543 = vmul.f32 %v4347, %v4428
    %v4544 = vmul.f32 %v4348, %v4432
    %v4545 = vmul.f32 %v4349, %v4436
    %v4546 = vmul.f32 %v4350, %v4440
    %v4547 = vmul.f32 %v4351, %v4444
    %v4548 = vmul.f32 %v4352, %v4448
    %v4549 = vmul.f32 %v4353, %v4452
    %v4550 = vmul.f32 %v4354, %v4456
    %v4551 = vmul.f32 %v4355, %v4460
    %v4552 = vmul.f32 %v4356, %v4464
    %v4553 = vmul.f32 %v4357, %v4468
    %v4554 = vmul.f32 %v4358, %v4472
    %v4555 = vmul.f32 %v4359, %v4476
    %v4556 = vmul.f32 %v4360, %v4480
    %v4557 = vmul.f32 %v4361, %v4484
    %v4558 = vmul.f32 %v4362, %v4488
    %v4559 = vmul.f32 %v4363, %v4492
    %v4560 = vmul.f32 %v4364, %v4496
    %4561 = vst [vmem:[#allocation7] sm:$0xff] %v4529
    %4562 = vst [vmem:[#allocation7 + $0x8] sm:$0xff] %v4530
    %4563 = vst [vmem:[#allocation7 + $0x10] sm:$0xff] %v4531
    %4564 = vst [vmem:[#allocation7 + $0x18] sm:$0xff] %v4532
    %4565 = vst [vmem:[#allocation7 + $0x20] sm:$0xff] %v4533
    %4566 = vst [vmem:[#allocation7 + $0x28] sm:$0xff] %v4534
    %4567 = vst [vmem:[#allocation7 + $0x30] sm:$0xff] %v4535
    %4568 = vst [vmem:[#allocation7 + $0x38] sm:$0xff] %v4536
    %4569 = vst [vmem:[#allocation7 + $0x40] sm:$0xff] %v4537
    %4570 = vst [vmem:[#allocation7 + $0x48] sm:$0xff] %v4538
    %4571 = vst [vmem:[#allocation7 + $0x50] sm:$0xff] %v4539
    %4572 = vst [vmem:[#allocation7 + $0x58] sm:$0xff] %v4540
    %4573 = vst [vmem:[#allocation7 + $0x60] sm:$0xff] %v4541
    %4574 = vst [vmem:[#allocation7 + $0x68] sm:$0xff] %v4542
    %4575 = vst [vmem:[#allocation7 + $0x70] sm:$0xff] %v4543
    %4576 = vst [vmem:[#allocation7 + $0x78] sm:$0xff] %v4544
    %4577 = vst [vmem:[#allocation7 + $0x80] sm:$0xff] %v4545
    %4578 = vst [vmem:[#allocation7 + $0x88] sm:$0xff] %v4546
    %4579 = vst [vmem:[#allocation7 + $0x90] sm:$0xff] %v4547
    %4580 = vst [vmem:[#allocation7 + $0x98] sm:$0xff] %v4548
    %4581 = vst [vmem:[#allocation7 + $0xa0] sm:$0xff] %v4549
    %4582 = vst [vmem:[#allocation7 + $0xa8] sm:$0xff] %v4550
    %4583 = vst [vmem:[#allocation7 + $0xb0] sm:$0xff] %v4551
    %4584 = vst [vmem:[#allocation7 + $0xb8] sm:$0xff] %v4552
    %4585 = vst [vmem:[#allocation7 + $0xc0] sm:$0xff] %v4553
    %4586 = vst [vmem:[#allocation7 + $0xc8] sm:$0xff] %v4554
    %4587 = vst [vmem:[#allocation7 + $0xd0] sm:$0xff] %v4555
    %4588 = vst [vmem:[#allocation7 + $0xd8] sm:$0xff] %v4556
    %4589 = vst [vmem:[#allocation7 + $0xe0] sm:$0xff] %v4557
    %4590 = vst [vmem:[#allocation7 + $0xe8] sm:$0xff] %v4558
    %4591 = vst [vmem:[#allocation7 + $0xf0] sm:$0xff] %v4559
    %4592 = vst [vmem:[#allocation7 + $0xf8] sm:$0xff] %v4560
    // Predicated region
    $region18: #{tpu_custom_call.1} parent=1 // pred_check
      _
    $region19: #{tpu_custom_call.1} parent=1 // pred_check_branch
      %4594 = sbr.rel (0) target = $region21
    $region20: #{tpu_custom_call.1} parent=1 // pred_region
      %s4596 = ssub.s32 4096, 4096
      %4597 = vsyncadd [#allocation4], %s4596
      %s4599 = sshll.u32 [#allocation7], 4
      %s4600 = int_to_ptr.vmem [resolvable:$true] %s4599
      %4602 = dma.vmem_to_hbm [thread:$0]  %s4600, 4096, %s2, [#allocation4]
    $region21: #{tpu_custom_call.1} parent=1 // pred_fallthru
      _
    // Predicated region
    $region22: #{tpu_custom_call.1} parent=1 // pred_check
      _
    $region23: #{tpu_custom_call.1} parent=1 // pred_check_branch
      %4604 = sbr.rel (0) target = $region25
    $region24: #{tpu_custom_call.1} parent=1 // pred_region
      %4605 = dma.done [#allocation4], 4096
    $region25: #{tpu_custom_call.1} parent=1 // pred_fallthru
      _
    %4606 = vsyncpa [#allocation3], 1
    %4607 = vsyncpa [#allocation6], 1
    %4608 = vsyncpa [#allocation4], 1

</llo_original>
